<compile_context>
chip_gen: v6e
topology: v6e:2x2x1
jax: 0.10.0
libtpu: 0.0.40
codegen_flags: <defaults>
</compile_context>

<pallas_src>
import functools

import jax
import jax.numpy as jnp
from jax.experimental import pallas as pl
from jax.experimental.pallas import tpu as pltpu


def _rup(n, m):
    return ((n + m - 1) // m) * m


def _largest_div(n, cap, mult=1):
    """Largest d <= cap with d % mult == 0 and d | n (None if there is none)."""
    best = None
    d = mult
    cap = min(cap, n)
    while d <= cap:
        if n % d == 0:
            best = d
        d += mult
    return best


# ----------------------------------------------------------------------------
# Direct 3x3 conv (pad=1) with fused input BN-apply+ReLU, fused bias, fused
# per-image BatchNorm partial statistics.  Grid = (image, row_block); the whole
# image and the (3, 3*Cin, Cout) weights stay resident in VMEM.
# ----------------------------------------------------------------------------
def _conv3x3_kernel(x_ref, w_ref, scale_ref, shift_ref, b_ref,
                    o_ref, sum_ref, sq_ref, qcat_ref, *, rc, apply_act):
    """x_ref:(1,H,W,Cin) bf16 resident image; w_ref:(3,3*Cin,Cout) bf16 (dw folded into K);
    scale/shift:(1,Cin) f32 BN of the INPUT tensor; b_ref:(1,Cout) f32 conv bias;
    o_ref:(1,th,W,Cout) bf16 pre-BN conv+bias rows; sum/sq_ref:(1,1,Cout) f32 per-image stats;
    qcat_ref:(th+2,W,3*Cin) bf16 scratch (1-row halos + three width-shifted channel blocks)."""
    i = pl.program_id(1)
    nb = pl.num_programs(1)
    _, _, W, cin = x_ref.shape
    th = o_ref.shape[1]
    cout = o_ref.shape[3]
    r0g = i * th

    @pl.when(i == 0)
    def _():
        sum_ref[...] = jnp.zeros_like(sum_ref)
        sq_ref[...] = jnp.zeros_like(sq_ref)

    def act(v):                                       # fused BN-apply + ReLU of the input
        if not apply_act:
            return v
        y = v.astype(jnp.float32) * scale_ref[...] + shift_ref[...]
        return jnp.maximum(y, 0.0).astype(jnp.bfloat16)

    # ---- centre (dw=1) channel block: activated rows + 1-row halos ------------------
    fill = 8 if th % 8 == 0 else (7 if th % 7 == 0 else 1)   # keep elementwise temps small

    def _fill(k, carry):
        qcat_ref[pl.ds(1 + k * fill, fill), :, pl.ds(cin, cin)] = act(
            x_ref[0, pl.ds(r0g + k * fill, fill), :, :])
        return carry

    jax.lax.fori_loop(0, th // fill, _fill, 0)

    @pl.when(i > 0)
    def _():
        qcat_ref[0, :, pl.ds(cin, cin)] = act(x_ref[0, r0g - 1, :, :])

    @pl.when(i == 0)
    def _():
        qcat_ref[0, :, pl.ds(cin, cin)] = jnp.zeros((W, cin), jnp.bfloat16)

    @pl.when(i < nb - 1)
    def _():
        qcat_ref[th + 1, :, pl.ds(cin, cin)] = act(x_ref[0, r0g + th, :, :])

    @pl.when(i == nb - 1)
    def _():
        qcat_ref[th + 1, :, pl.ds(cin, cin)] = jnp.zeros((W, cin), jnp.bfloat16)

    # ---- dw=0 / dw=2 channel blocks: width-shifted copies of the centre block -------
    qcat_ref[:, pl.ds(1, W - 1), pl.ds(0, cin)] = qcat_ref[:, pl.ds(0, W - 1), pl.ds(cin, cin)]
    qcat_ref[:, 0, pl.ds(0, cin)] = jnp.zeros((th + 2, cin), jnp.bfloat16)
    qcat_ref[:, pl.ds(0, W - 1), pl.ds(2 * cin, cin)] = qcat_ref[:, pl.ds(1, W - 1), pl.ds(cin, cin)]
    qcat_ref[:, W - 1, pl.ds(2 * cin, cin)] = jnp.zeros((th + 2, cin), jnp.bfloat16)

    # ---- compute: per row-chunk, 3 MXU dots with K = 3*Cin, M = rc*W -----------------
    bias = b_ref[...]
    nchunk = th // rc

    def _chunk(c, carry):
        s_acc, q_acc = carry
        r0 = c * rc
        acc = None
        for dh in range(3):
            lhs = qcat_ref[pl.ds(r0 + dh, rc), :, :].reshape(rc * W, 3 * cin)
            p = jnp.dot(lhs, w_ref[dh], preferred_element_type=jnp.float32)
            acc = p if acc is None else acc + p
        r = acc + bias                                            # (rc*W, Cout) f32
        o_ref[0, pl.ds(r0, rc), :, :] = r.reshape(rc, W, cout).astype(o_ref.dtype)
        s_acc = s_acc + jnp.sum(r, axis=0, keepdims=True)
        q_acc = q_acc + jnp.sum(r * r, axis=0, keepdims=True)
        return s_acc, q_acc

    init = (jnp.zeros((1, cout), jnp.float32), jnp.zeros((1, cout), jnp.float32))
    s_tot, q_tot = jax.lax.fori_loop(0, nchunk, _chunk, init)
    sum_ref[...] = sum_ref[...] + s_tot.reshape(1, 1, cout)
    sq_ref[...] = sq_ref[...] + q_tot.reshape(1, 1, cout)


@functools.partial(jax.jit, static_argnames=("apply_act",))
def conv_bn(x, w3, b, scale_in, shift_in, apply_act):
    """x:(N,H,W,Cin) bf16; w3:(3,3*Cin,Cout) bf16; b:(Cout,) f32; scale/shift_in:(Cin,) f32.
    Returns (pre-BN conv+bias output bf16, per-channel sum, per-channel sum of squares)."""
    N, H, W, Cin = x.shape
    Cout = w3.shape[-1]
    th = min(H, 56)
    if H % th:
        th = H
    nb = H // th
    rc = 1                                    # rows folded into one MXU dot
    for d in range(1, th + 1):
        if th % d == 0 and d * W <= 224 and d * W * Cout * 4 <= 262144:
            rc = d
    kernel = functools.partial(_conv3x3_kernel, rc=rc, apply_act=apply_act)
    out, sums, sqs = pl.pallas_call(
        kernel,
        out_shape=(jax.ShapeDtypeStruct((N, H, W, Cout), jnp.bfloat16),
                   jax.ShapeDtypeStruct((N, 1, Cout), jnp.float32),
                   jax.ShapeDtypeStruct((N, 1, Cout), jnp.float32)),
        grid=(N, nb),
        in_specs=[
            pl.BlockSpec((1, H, W, Cin), lambda n, i: (n, 0, 0, 0)),    # resident image
            pl.BlockSpec((3, 3 * Cin, Cout), lambda n, i: (0, 0, 0)),   # resident weights
            pl.BlockSpec((1, Cin), lambda n, i: (0, 0)),
            pl.BlockSpec((1, Cin), lambda n, i: (0, 0)),
            pl.BlockSpec((1, Cout), lambda n, i: (0, 0)),
        ],
        out_specs=(
            pl.BlockSpec((1, th, W, Cout), lambda n, i: (n, i, 0, 0)),
            pl.BlockSpec((1, 1, Cout), lambda n, i: (n, 0, 0)),
            pl.BlockSpec((1, 1, Cout), lambda n, i: (n, 0, 0)),
        ),
        scratch_shapes=[pltpu.VMEM((th + 2, W, 3 * Cin), jnp.bfloat16)],
        compiler_params=pltpu.CompilerParams(
            dimension_semantics=("parallel", "arbitrary"),
            vmem_limit_bytes=40 * 1024 * 1024),
    )(x.astype(jnp.bfloat16), w3,
      scale_in.reshape(1, Cin).astype(jnp.float32),
      shift_in.reshape(1, Cin).astype(jnp.float32),
      b.reshape(1, Cout).astype(jnp.float32))
    return out, jnp.sum(sums, axis=(0, 1)), jnp.sum(sqs, axis=(0, 1))


# ----------------------------------------------------------------------------
# MaxPool2d(2,2) with the producing conv's BatchNorm-apply + ReLU fused in.
# Operates on a free (N*Ho, 2, Wo, 2C) re-view of the NHWC activation.
# ----------------------------------------------------------------------------
def _maxpool_bn_relu_kernel(x_ref, scale_ref, shift_ref, o_ref, *, c):
    x = x_ref[...].astype(jnp.float32)                             # (th, 2, Wo, 2C)
    y = jnp.maximum(x * scale_ref[...] + shift_ref[...], 0.0)      # BN + ReLU
    h = jnp.max(y, axis=1)                                         # max over the H pair
    o_ref[...] = jnp.maximum(h[..., :c], h[..., c:]).astype(o_ref.dtype)   # max over W pair


@jax.jit
def maxpool_bn_relu(x, scale, shift):
    """x:(N,H,W,C) pre-BN conv output bf16 -> relu(bn(x)) maxpooled 2x2, bf16."""
    N, H, W, C = x.shape
    Ho, Wo = H // 2, W // 2
    R = N * Ho
    xr = x.reshape(R, 2, Wo, 2 * C)                 # metadata-only re-view of NHWC
    th = _largest_div(R, max(min(R // 2, 64), 1))   # >=2 grid steps (megacore), modest blocks
    s2 = jnp.concatenate([scale, scale]).reshape(1, 2 * C).astype(jnp.float32)
    b2 = jnp.concatenate([shift, shift]).reshape(1, 2 * C).astype(jnp.float32)
    out = pl.pallas_call(
        functools.partial(_maxpool_bn_relu_kernel, c=C),
        out_shape=jax.ShapeDtypeStruct((R, Wo, C), jnp.bfloat16),
        grid=(R // th,),
        in_specs=[pl.BlockSpec((th, 2, Wo, 2 * C), lambda i: (i, 0, 0, 0)),
                  pl.BlockSpec((1, 2 * C), lambda i: (0, 0)),
                  pl.BlockSpec((1, 2 * C), lambda i: (0, 0))],
        out_specs=pl.BlockSpec((th, Wo, C), lambda i: (i, 0, 0)),
        compiler_params=pltpu.CompilerParams(dimension_semantics=("parallel",)),
    )(xr, s2, b2)
    return out.reshape(N, Ho, Wo, C)


# ----------------------------------------------------------------------------
# Tiled matmul with fused bias (+ optional ReLU) for the fc stack.  bf16 weight
# streaming, f32 accumulation.
# ----------------------------------------------------------------------------
def _matmul_kernel(a_ref, b_ref, bias_ref, o_ref, acc_ref, *, relu):
    @pl.when(pl.program_id(2) == 0)
    def _():
        acc_ref[...] = jnp.zeros_like(acc_ref)

    acc_ref[...] += jnp.dot(a_ref[...], b_ref[...],
                            preferred_element_type=jnp.float32)

    @pl.when(pl.program_id(2) == pl.num_programs(2) - 1)
    def _():
        r = acc_ref[...] + bias_ref[...]
        if relu:
            r = jnp.maximum(r, 0.0)
        o_ref[...] = r.astype(o_ref.dtype)


@functools.partial(jax.jit, static_argnames=("relu",))
def matmul_bias(a, b, bias, relu=False):
    """relu(a @ b + bias); a is cast to bf16 (tiny), b is already bf16, f32 output."""
    M, K = a.shape
    _, N = b.shape
    a = a.astype(jnp.bfloat16)
    b = b.astype(jnp.bfloat16)
    tm = min(128, _rup(M, 8))
    Mp = _rup(M, tm)
    tk = _largest_div(K, 2048, 128)
    if tk is None:
        tk = min(2048, _rup(K, 128))
        Kp = _rup(_rup(K, 128), tk)
    else:
        Kp = K
    tn = _largest_div(N, 1024, 128)
    if tn is None:
        tn = min(1024, _rup(N, 128))
        Np = _rup(_rup(N, 128), tn)
    else:
        Np = N
    a_p = a if (Mp == M and Kp == K) else jnp.pad(a, ((0, Mp - M), (0, Kp - K)))
    b_p = b if (Kp == K and Np == N) else jnp.pad(b, ((0, Kp - K), (0, Np - N)))
    bias_p = (bias if Np == N else jnp.pad(bias, (0, Np - N))).reshape(1, Np).astype(jnp.float32)
    out = pl.pallas_call(
        functools.partial(_matmul_kernel, relu=relu),
        out_shape=jax.ShapeDtypeStruct((Mp, Np), jnp.float32),
        grid_spec=pltpu.PrefetchScalarGridSpec(
            num_scalar_prefetch=0,
            grid=(Mp // tm, Np // tn, Kp // tk),
            in_specs=[
                pl.BlockSpec((tm, tk), lambda i, j, k: (i, k)),
                pl.BlockSpec((tk, tn), lambda i, j, k: (k, j)),
                pl.BlockSpec((1, tn), lambda i, j, k: (0, j)),
            ],
            out_specs=pl.BlockSpec((tm, tn), lambda i, j, k: (i, j)),
            scratch_shapes=[pltpu.VMEM((tm, tn), jnp.float32)],
        ),
        compiler_params=pltpu.CompilerParams(
            dimension_semantics=("parallel", "parallel", "arbitrary")),
    )(a_p, b_p, bias_p)
    return out[:M, :N]


# ----------------------------------------------------------------------------
# Row softmax (Softmax(dim=1)) for the tiny final logits.
# ----------------------------------------------------------------------------
def _softmax_kernel(x_ref, o_ref):
    x = x_ref[...]
    m = jnp.max(x, axis=1, keepdims=True)
    e = jnp.exp(x - m)
    o_ref[...] = e / jnp.sum(e, axis=1, keepdims=True)


@jax.jit
def softmax_rows(x):
    B, C = x.shape
    Bp, Cp = _rup(max(B, 8), 8), _rup(C, 128)
    x_p = jnp.full((Bp, Cp), -1e30, dtype=jnp.float32)
    x_p = x_p.at[:B, :C].set(x)
    out = pl.pallas_call(
        _softmax_kernel,
        out_shape=jax.ShapeDtypeStruct((Bp, Cp), jnp.float32),
        grid=(1,),
        in_specs=[pl.BlockSpec((Bp, Cp), lambda i: (0, 0))],
        out_specs=pl.BlockSpec((Bp, Cp), lambda i: (0, 0)),
    )(x_p)
    return out[:B, :C]


# ----------------------------------------------------------------------------
# VGG16 network
# ----------------------------------------------------------------------------
VGG16_CFG = [64, 64, 'Maxpool', 128, 128, 'Maxpool', 256, 256, 256, 'Maxpool',
             512, 512, 512, 'Maxpool', 512, 512, 512, 'Maxpool']


def init_params(key):
    """Kernel-ready parameters: conv weights as (3, 3*Cin, Cout) bf16 (Cin of layer 1 padded
    3->8 with zero taps), FC weights bf16 (converted ONCE here, not per forward)."""
    params = {"conv": [], "fc": []}
    in_c = 3
    for v in VGG16_CFG:
        if v == 'Maxpool':
            continue
        key, k1, k2 = jax.random.split(key, 3)
        fan_in = in_c * 9
        w = jax.random.normal(k1, (3, 3, in_c, v), jnp.float32) / jnp.sqrt(fan_in)
        b = jax.random.normal(k2, (v,), jnp.float32) * 0.01
        cin_p = max(in_c, 8)
        if cin_p != in_c:
            w = jnp.pad(w, ((0, 0), (0, 0), (0, cin_p - in_c), (0, 0)))
        w3 = w.reshape(3, 3 * cin_p, v).astype(jnp.bfloat16)   # index (dh, dw*Cin+ci, co)
        gamma = jnp.ones((v,), jnp.float32)                     # BatchNorm2d default init
        beta = jnp.zeros((v,), jnp.float32)
        params["conv"].append((w3, b, gamma, beta))
        in_c = v
    for (din, dout) in [(7 * 7 * 512, 4096), (4096, 4096), (4096, 2)]:
        key, k1, k2 = jax.random.split(key, 3)
        wfc = (jax.random.normal(k1, (din, dout), jnp.float32) / jnp.sqrt(din)).astype(jnp.bfloat16)
        bfc = jax.random.normal(k2, (dout,), jnp.float32) * 0.01
        params["fc"].append((wfc, bfc))
    return params


def vgg_forward(params, x_nchw):
    eps = 1e-5
    # layout: NCHW (PyTorch) -> NHWC; pad channels 3->8 (exact, zero taps) and cast to bf16.
    x = jnp.transpose(x_nchw, (0, 2, 3, 1)).astype(jnp.float32)
    x = jnp.pad(x, ((0, 0), (0, 0), (0, 0), (0, 8 - x.shape[-1]))).astype(jnp.bfloat16)

    pending = None           # (scale, shift) of a conv output whose BN+ReLU is not applied yet
    conv_idx = 0
    for v in VGG16_CFG:
        if v == 'Maxpool':
            scale, shift = pending
            x = maxpool_bn_relu(x, scale, shift)     # BN+ReLU of previous conv fused into pool
            pending = None
        else:
            w3, b, gamma, beta = params["conv"][conv_idx]
            conv_idx += 1
            cin = x.shape[-1]
            if pending is None:                       # input is the image or a pool output
                scale_in = jnp.ones((cin,), jnp.float32)
                shift_in = jnp.zeros((cin,), jnp.float32)
                apply_act = False
            else:                                     # BN+ReLU of previous conv fused here
                scale_in, shift_in = pending
                apply_act = True
            x, s, q = conv_bn(x, w3, b, scale_in, shift_in, apply_act=apply_act)
            # BatchNorm2d training-mode (fresh torch module): biased batch statistics.
            # NOTE: E[x^2]-E[x]^2 in f32; clamped - adequate here since the batch mean is O(1).
            cnt = x.shape[0] * x.shape[1] * x.shape[2]
            mean = s / cnt
            var = jnp.maximum(q / cnt - mean * mean, 0.0)
            sc = gamma / jnp.sqrt(var + eps)
            sh = beta - mean * sc
            pending = (sc, sh)

    # Flatten in PyTorch NCHW order to match conv.view(N, -1).
    N = x.shape[0]
    res = jnp.transpose(x, (0, 3, 1, 2)).reshape(N, -1)     # (N, 512*7*7) bf16
    for (wfc, bfc) in params["fc"]:
        # NB: this module really has ReLU after EVERY Linear (incl. the last one) before Softmax.
        res = matmul_bias(res, wfc, bfc, relu=True)
    return softmax_rows(res)


# ----------------------------------------------------------------------------
# Small self-check of the conv kernel against lax.conv (exercises row-block halos).
# ----------------------------------------------------------------------------
def _self_check(key):
    kx, kw, kb = jax.random.split(key, 3)
    Cin, Cout, H, W = 16, 32, 112, 16              # H=112 -> 2 row blocks of 56 (halo path)
    x = jax.random.normal(kx, (2, H, W, Cin), jnp.float32).astype(jnp.bfloat16)
    w = (jax.random.normal(kw, (3, 3, Cin, Cout), jnp.float32) * 0.1).astype(jnp.bfloat16)
    b = jax.random.normal(kb, (Cout,), jnp.float32) * 0.1
    out, _, _ = conv_bn(x, w.reshape(3, 3 * Cin, Cout), b,
                        jnp.ones((Cin,), jnp.float32), jnp.zeros((Cin,), jnp.float32),
                        apply_act=False)
    ref = jax.lax.conv_general_dilated(
        x.astype(jnp.float32), w.astype(jnp.float32), window_strides=(1, 1), padding="SAME",
        dimension_numbers=("NHWC", "HWIO", "NHWC"),
        precision=jax.lax.Precision.HIGHEST) + b.reshape(1, 1, 1, -1)
    err = float(jnp.max(jnp.abs(out.astype(jnp.float32) - ref)))
    assert err < 0.1, f"conv3x3 self-check failed, max abs err {err}"


if __name__ == "__main__":
    key = jax.random.PRNGKey(0)
    kp, kx, kc = jax.random.split(key, 3)
    _self_check(kc)
    params = init_params(kp)
    # 224x224x3 input is what the module's fc (7*7*512 flatten after 5 pools) implies; batch=2.
    x = jax.random.normal(kx, (2, 3, 224, 224), jnp.float32)
    out = jax.block_until_ready(vgg_forward(params, x))
    assert out.shape == (2, 2), out.shape
    assert bool(jnp.all(jnp.isfinite(out)))
    # rows of a softmax must sum to 1
    assert bool(jnp.all(jnp.abs(jnp.sum(out, axis=1) - 1.0) < 1e-3))
    print("KERNEL_OK")
</pallas_src>

<mosaic_0001>
module attributes {stable_mosaic.version = 11 : i64} {
  func.func @_conv3x3_kernel(%arg0: i32, %arg1: i32, %arg2: memref<1x112x16x16xbf16, #tpu.memory_space<vmem>>, %arg3: memref<3x48x32xbf16, #tpu.memory_space<vmem>>, %arg4: memref<1x16xf32, #tpu.memory_space<vmem>>, %arg5: memref<1x16xf32, #tpu.memory_space<vmem>>, %arg6: memref<1x32xf32, #tpu.memory_space<vmem>>, %arg7: memref<1x56x16x32xbf16, #tpu.memory_space<vmem>>, %arg8: memref<1x1x32xf32, #tpu.memory_space<vmem>>, %arg9: memref<1x1x32xf32, #tpu.memory_space<vmem>>, %arg10: memref<58x16x48xbf16, #tpu.memory_space<vmem>>) attributes {dimension_semantics = [#tpu.dimension_semantics<parallel>, #tpu.dimension_semantics<arbitrary>], iteration_bounds = array<i64: 2, 2>, scalar_prefetch = 0 : i64, scratch_operands = 1 : i64, tpu.core_type = #tpu.core_type<tc>, window_params = [{transform_indices = @transform_0, window_bounds = array<i64: 1, 112, 16, 16>}, {pipeline_mode = #tpu.pipeline_mode<synchronous>, transform_indices = @transform_1, window_bounds = array<i64: 3, 48, 32>}, {pipeline_mode = #tpu.pipeline_mode<synchronous>, transform_indices = @transform_2, window_bounds = array<i64: 1, 16>}, {pipeline_mode = #tpu.pipeline_mode<synchronous>, transform_indices = @transform_3, window_bounds = array<i64: 1, 16>}, {pipeline_mode = #tpu.pipeline_mode<synchronous>, transform_indices = @transform_4, window_bounds = array<i64: 1, 32>}, {transform_indices = @transform_5, window_bounds = array<i64: 1, 56, 16, 32>}, {transform_indices = @transform_6, window_bounds = array<i64: 1, 1, 32>}, {transform_indices = @transform_7, window_bounds = array<i64: 1, 1, 32>}]} {
    %c56_i32 = arith.constant 56 : i32
    %0 = arith.muli %arg1, %c56_i32 : i32
    %c0_i32 = arith.constant 0 : i32
    %1 = arith.cmpi eq, %arg1, %c0_i32 : i32
    %2 = arith.extui %1 : i1 to i32
    %c0_i32_0 = arith.constant 0 : i32
    %3 = arith.cmpi ne, %2, %c0_i32_0 : i32
    scf.if %3 {
      %cst_44 = arith.constant 0.000000e+00 : f32
      %42 = vector.broadcast %cst_44 : f32 to vector<1x1x32xf32>
      %c0_45 = arith.constant 0 : index
      %c0_46 = arith.constant 0 : index
      %c0_47 = arith.constant 0 : index
      %43 = vector.load %arg8[%c0_45, %c0_46, %c0_47] : memref<1x1x32xf32, #tpu.memory_space<vmem>>, vector<1x1x32xf32>
      tpu.vector_store %arg8[%c0_45, %c0_46, %c0_47], %42 {strides = array<i32>} : memref<1x1x32xf32, #tpu.memory_space<vmem>>, vector<1x1x32xf32>,
      %cst_48 = arith.constant 0.000000e+00 : f32
      %44 = vector.broadcast %cst_48 : f32 to vector<1x1x32xf32>
      %c0_49 = arith.constant 0 : index
      %c0_50 = arith.constant 0 : index
      %c0_51 = arith.constant 0 : index
      %45 = vector.load %arg9[%c0_49, %c0_50, %c0_51] : memref<1x1x32xf32, #tpu.memory_space<vmem>>, vector<1x1x32xf32>
      tpu.vector_store %arg9[%c0_49, %c0_50, %c0_51], %44 {strides = array<i32>} : memref<1x1x32xf32, #tpu.memory_space<vmem>>, vector<1x1x32xf32>,
    } else {
    }
    %c0_i32_1 = arith.constant 0 : i32
    %c7_i32 = arith.constant 7 : i32
    %4 = arith.addi %c0_i32_1, %c7_i32 : i32
    %c1_i32 = arith.constant 1 : i32
    scf.for %arg11 = %c0_i32_1 to %4 step %c1_i32  : i32 {
      %c8_i32 = arith.constant 8 : i32
      %42 = arith.muli %arg11, %c8_i32 : i32
      %43 = arith.addi %0, %42 : i32
      %c0_44 = arith.constant 0 : index
      %44 = arith.index_cast %43 : i32 to index
      %c0_45 = arith.constant 0 : index
      %c0_46 = arith.constant 0 : index
      %45 = vector.load %arg2[%c0_44, %44, %c0_45, %c0_46] : memref<1x112x16x16xbf16, #tpu.memory_space<vmem>>, vector<1x8x16x16xbf16>
      %46 = vector.shape_cast %45 : vector<1x8x16x16xbf16> to vector<8x16x16xbf16>
      %c8_i32_47 = arith.constant 8 : i32
      %47 = arith.muli %arg11, %c8_i32_47 : i32
      %c1_i32_48 = arith.constant 1 : i32
      %48 = arith.addi %c1_i32_48, %47 : i32
      %49 = arith.index_cast %48 : i32 to index
      %c0_49 = arith.constant 0 : index
      %c16_50 = arith.constant 16 : index
      %50 = vector.load %arg10[%49, %c0_49, %c16_50] : memref<58x16x48xbf16, #tpu.memory_space<vmem>>, vector<8x16x16xbf16>
      tpu.vector_store %arg10[%49, %c0_49, %c16_50], %46 {strides = array<i32>} : memref<58x16x48xbf16, #tpu.memory_space<vmem>>, vector<8x16x16xbf16>,
    }
    %c7_i32_2 = arith.constant 7 : i32
    %c0_i32_3 = arith.constant 0 : i32
    %5 = arith.cmpi sgt, %arg1, %c0_i32_3 : i32
    %6 = arith.extui %5 : i1 to i32
    %c0_i32_4 = arith.constant 0 : i32
    %7 = arith.cmpi ne, %6, %c0_i32_4 : i32
    scf.if %7 {
      %c1_i32_44 = arith.constant 1 : i32
      %42 = arith.subi %0, %c1_i32_44 : i32
      %c0_45 = arith.constant 0 : index
      %43 = arith.index_cast %42 : i32 to index
      %c0_46 = arith.constant 0 : index
      %c0_47 = arith.constant 0 : index
      %44 = vector.load %arg2[%c0_45, %43, %c0_46, %c0_47] : memref<1x112x16x16xbf16, #tpu.memory_space<vmem>>, vector<1x1x16x16xbf16>
      %45 = vector.shape_cast %44 : vector<1x1x16x16xbf16> to vector<16x16xbf16>
      %c0_48 = arith.constant 0 : index
      %c0_49 = arith.constant 0 : index
      %c16_50 = arith.constant 16 : index
      %46 = vector.load %arg10[%c0_48, %c0_49, %c16_50] : memref<58x16x48xbf16, #tpu.memory_space<vmem>>, vector<1x16x16xbf16>
      %47 = vector.shape_cast %46 : vector<1x16x16xbf16> to vector<16x16xbf16>
      %48 = vector.shape_cast %45 : vector<16x16xbf16> to vector<1x16x16xbf16>
      tpu.vector_store %arg10[%c0_48, %c0_49, %c16_50], %48 {strides = array<i32>} : memref<58x16x48xbf16, #tpu.memory_space<vmem>>, vector<1x16x16xbf16>,
    } else {
    }
    %c0_i32_5 = arith.constant 0 : i32
    %8 = arith.cmpi eq, %arg1, %c0_i32_5 : i32
    %9 = arith.extui %8 : i1 to i32
    %c0_i32_6 = arith.constant 0 : i32
    %10 = arith.cmpi ne, %9, %c0_i32_6 : i32
    scf.if %10 {
      %cst_44 = arith.constant 0.000000e+00 : bf16
      %42 = vector.broadcast %cst_44 : bf16 to vector<16x16xbf16>
      %c0_45 = arith.constant 0 : index
      %c0_46 = arith.constant 0 : index
      %c16_47 = arith.constant 16 : index
      %43 = vector.load %arg10[%c0_45, %c0_46, %c16_47] : memref<58x16x48xbf16, #tpu.memory_space<vmem>>, vector<1x16x16xbf16>
      %44 = vector.shape_cast %43 : vector<1x16x16xbf16> to vector<16x16xbf16>
      %45 = vector.shape_cast %42 : vector<16x16xbf16> to vector<1x16x16xbf16>
      tpu.vector_store %arg10[%c0_45, %c0_46, %c16_47], %45 {strides = array<i32>} : memref<58x16x48xbf16, #tpu.memory_space<vmem>>, vector<1x16x16xbf16>,
    } else {
    }
    %c1_i32_7 = arith.constant 1 : i32
    %11 = arith.cmpi slt, %arg1, %c1_i32_7 : i32
    %12 = arith.extui %11 : i1 to i32
    %c0_i32_8 = arith.constant 0 : i32
    %13 = arith.cmpi ne, %12, %c0_i32_8 : i32
    scf.if %13 {
      %c56_i32_44 = arith.constant 56 : i32
      %42 = arith.addi %0, %c56_i32_44 : i32
      %c0_45 = arith.constant 0 : index
      %43 = arith.index_cast %42 : i32 to index
      %c0_46 = arith.constant 0 : index
      %c0_47 = arith.constant 0 : index
      %44 = vector.load %arg2[%c0_45, %43, %c0_46, %c0_47] : memref<1x112x16x16xbf16, #tpu.memory_space<vmem>>, vector<1x1x16x16xbf16>
      %45 = vector.shape_cast %44 : vector<1x1x16x16xbf16> to vector<16x16xbf16>
      %c57 = arith.constant 57 : index
      %c0_48 = arith.constant 0 : index
      %c16_49 = arith.constant 16 : index
      %46 = vector.load %arg10[%c57, %c0_48, %c16_49] : memref<58x16x48xbf16, #tpu.memory_space<vmem>>, vector<1x16x16xbf16>
      %47 = vector.shape_cast %46 : vector<1x16x16xbf16> to vector<16x16xbf16>
      %48 = vector.shape_cast %45 : vector<16x16xbf16> to vector<1x16x16xbf16>
      tpu.vector_store %arg10[%c57, %c0_48, %c16_49], %48 {strides = array<i32>} : memref<58x16x48xbf16, #tpu.memory_space<vmem>>, vector<1x16x16xbf16>,
    } else {
    }
    %c1_i32_9 = arith.constant 1 : i32
    %14 = arith.cmpi eq, %arg1, %c1_i32_9 : i32
    %15 = arith.extui %14 : i1 to i32
    %c0_i32_10 = arith.constant 0 : i32
    %16 = arith.cmpi ne, %15, %c0_i32_10 : i32
    scf.if %16 {
      %cst_44 = arith.constant 0.000000e+00 : bf16
      %42 = vector.broadcast %cst_44 : bf16 to vector<16x16xbf16>
      %c57 = arith.constant 57 : index
      %c0_45 = arith.constant 0 : index
      %c16_46 = arith.constant 16 : index
      %43 = vector.load %arg10[%c57, %c0_45, %c16_46] : memref<58x16x48xbf16, #tpu.memory_space<vmem>>, vector<1x16x16xbf16>
      %44 = vector.shape_cast %43 : vector<1x16x16xbf16> to vector<16x16xbf16>
      %45 = vector.shape_cast %42 : vector<16x16xbf16> to vector<1x16x16xbf16>
      tpu.vector_store %arg10[%c57, %c0_45, %c16_46], %45 {strides = array<i32>} : memref<58x16x48xbf16, #tpu.memory_space<vmem>>, vector<1x16x16xbf16>,
    } else {
    }
    %c0 = arith.constant 0 : index
    %c0_11 = arith.constant 0 : index
    %c16 = arith.constant 16 : index
    %17 = vector.load %arg10[%c0, %c0_11, %c16] : memref<58x16x48xbf16, #tpu.memory_space<vmem>>, vector<58x15x16xbf16>
    %c0_12 = arith.constant 0 : index
    %c1 = arith.constant 1 : index
    %c0_13 = arith.constant 0 : index
    %18 = vector.load %arg10[%c0_12, %c1, %c0_13] : memref<58x16x48xbf16, #tpu.memory_space<vmem>>, vector<58x15x16xbf16>
    tpu.vector_store %arg10[%c0_12, %c1, %c0_13], %17 {strides = array<i32>} : memref<58x16x48xbf16, #tpu.memory_space<vmem>>, vector<58x15x16xbf16>,
    %cst = arith.constant 0.000000e+00 : bf16
    %19 = vector.broadcast %cst : bf16 to vector<58x16xbf16>
    %c0_14 = arith.constant 0 : index
    %c0_15 = arith.constant 0 : index
    %c0_16 = arith.constant 0 : index
    %20 = vector.load %arg10[%c0_14, %c0_15, %c0_16] : memref<58x16x48xbf16, #tpu.memory_space<vmem>>, vector<58x1x16xbf16>
    %21 = vector.shape_cast %20 : vector<58x1x16xbf16> to vector<58x16xbf16>
    %22 = vector.shape_cast %19 : vector<58x16xbf16> to vector<58x1x16xbf16>
    tpu.vector_store %arg10[%c0_14, %c0_15, %c0_16], %22 {strides = array<i32>} : memref<58x16x48xbf16, #tpu.memory_space<vmem>>, vector<58x1x16xbf16>,
    %c0_17 = arith.constant 0 : index
    %c1_18 = arith.constant 1 : index
    %c16_19 = arith.constant 16 : index
    %23 = vector.load %arg10[%c0_17, %c1_18, %c16_19] : memref<58x16x48xbf16, #tpu.memory_space<vmem>>, vector<58x15x16xbf16>
    %c0_20 = arith.constant 0 : index
    %c0_21 = arith.constant 0 : index
    %c32 = arith.constant 32 : index
    %24 = vector.load %arg10[%c0_20, %c0_21, %c32] : memref<58x16x48xbf16, #tpu.memory_space<vmem>>, vector<58x15x16xbf16>
    tpu.vector_store %arg10[%c0_20, %c0_21, %c32], %23 {strides = array<i32>} : memref<58x16x48xbf16, #tpu.memory_space<vmem>>, vector<58x15x16xbf16>,
    %cst_22 = arith.constant 0.000000e+00 : bf16
    %25 = vector.broadcast %cst_22 : bf16 to vector<58x16xbf16>
    %c0_23 = arith.constant 0 : index
    %c15 = arith.constant 15 : index
    %c32_24 = arith.constant 32 : index
    %26 = vector.load %arg10[%c0_23, %c15, %c32_24] : memref<58x16x48xbf16, #tpu.memory_space<vmem>>, vector<58x1x16xbf16>
    %27 = vector.shape_cast %26 : vector<58x1x16xbf16> to vector<58x16xbf16>
    %28 = vector.shape_cast %25 : vector<58x16xbf16> to vector<58x1x16xbf16>
    tpu.vector_store %arg10[%c0_23, %c15, %c32_24], %28 {strides = array<i32>} : memref<58x16x48xbf16, #tpu.memory_space<vmem>>, vector<58x1x16xbf16>,
    %c0_25 = arith.constant 0 : index
    %c0_26 = arith.constant 0 : index
    %29 = vector.load %arg6[%c0_25, %c0_26] : memref<1x32xf32, #tpu.memory_space<vmem>>, vector<1x32xf32>
    %cst_27 = arith.constant 0.000000e+00 : f32
    %30 = vector.broadcast %cst_27 : f32 to vector<1x32xf32>
    %cst_28 = arith.constant 0.000000e+00 : f32
    %31 = vector.broadcast %cst_28 : f32 to vector<1x32xf32>
    %c0_i32_29 = arith.constant 0 : i32
    %c4_i32 = arith.constant 4 : i32
    %32 = arith.addi %c0_i32_29, %c4_i32 : i32
    %c1_i32_30 = arith.constant 1 : i32
    %33:2 = scf.for %arg11 = %c0_i32_29 to %32 step %c1_i32_30 iter_args(%arg12 = %30, %arg13 = %31) -> (vector<1x32xf32>, vector<1x32xf32>)  : i32 {
      %c14_i32 = arith.constant 14 : i32
      %42 = arith.muli %arg11, %c14_i32 : i32
      %c0_i32_44 = arith.constant 0 : i32
      %43 = arith.addi %42, %c0_i32_44 : i32
      %44 = arith.index_cast %43 : i32 to index
      %c0_45 = arith.constant 0 : index
      %c0_46 = arith.constant 0 : index
      %45 = vector.load %arg10[%44, %c0_45, %c0_46] : memref<58x16x48xbf16, #tpu.memory_space<vmem>>, vector<14x16x48xbf16>
      %46 = vector.shape_cast %45 : vector<14x16x48xbf16> to vector<224x48xbf16>
      %c0_47 = arith.constant 0 : index
      %c0_48 = arith.constant 0 : index
      %c0_49 = arith.constant 0 : index
      %47 = vector.load %arg3[%c0_47, %c0_48, %c0_49] : memref<3x48x32xbf16, #tpu.memory_space<vmem>>, vector<1x48x32xbf16>
      %48 = vector.shape_cast %47 : vector<1x48x32xbf16> to vector<48x32xbf16>
      %cst_50 = arith.constant dense<0.000000e+00> : vector<224x32xf32>
      %49 = tpu.matmul %46, %48, %cst_50 {dimension_numbers = #tpu.dot_dimension_numbers<[1], [0], [0], [1], [0, 0, 1, 1], [], []>} : vector<224x48xbf16>, vector<48x32xbf16>, vector<224x32xf32> -> vector<224x32xf32>
      %c1_i32_51 = arith.constant 1 : i32
      %50 = arith.addi %42, %c1_i32_51 : i32
      %51 = arith.index_cast %50 : i32 to index
      %c0_52 = arith.constant 0 : index
      %c0_53 = arith.constant 0 : index
      %52 = vector.load %arg10[%51, %c0_52, %c0_53] : memref<58x16x48xbf16, #tpu.memory_space<vmem>>, vector<14x16x48xbf16>
      %53 = vector.shape_cast %52 : vector<14x16x48xbf16> to vector<224x48xbf16>
      %c1_54 = arith.constant 1 : index
      %c0_55 = arith.constant 0 : index
      %c0_56 = arith.constant 0 : index
      %54 = vector.load %arg3[%c1_54, %c0_55, %c0_56] : memref<3x48x32xbf16, #tpu.memory_space<vmem>>, vector<1x48x32xbf16>
      %55 = vector.shape_cast %54 : vector<1x48x32xbf16> to vector<48x32xbf16>
      %cst_57 = arith.constant dense<0.000000e+00> : vector<224x32xf32>
      %56 = tpu.matmul %53, %55, %cst_57 {dimension_numbers = #tpu.dot_dimension_numbers<[1], [0], [0], [1], [0, 0, 1, 1], [], []>} : vector<224x48xbf16>, vector<48x32xbf16>, vector<224x32xf32> -> vector<224x32xf32>
      %57 = arith.addf %49, %56 : vector<224x32xf32>
      %c2_i32 = arith.constant 2 : i32
      %58 = arith.addi %42, %c2_i32 : i32
      %59 = arith.index_cast %58 : i32 to index
      %c0_58 = arith.constant 0 : index
      %c0_59 = arith.constant 0 : index
      %60 = vector.load %arg10[%59, %c0_58, %c0_59] : memref<58x16x48xbf16, #tpu.memory_space<vmem>>, vector<14x16x48xbf16>
      %61 = vector.shape_cast %60 : vector<14x16x48xbf16> to vector<224x48xbf16>
      %c2 = arith.constant 2 : index
      %c0_60 = arith.constant 0 : index
      %c0_61 = arith.constant 0 : index
      %62 = vector.load %arg3[%c2, %c0_60, %c0_61] : memref<3x48x32xbf16, #tpu.memory_space<vmem>>, vector<1x48x32xbf16>
      %63 = vector.shape_cast %62 : vector<1x48x32xbf16> to vector<48x32xbf16>
      %cst_62 = arith.constant dense<0.000000e+00> : vector<224x32xf32>
      %64 = tpu.matmul %61, %63, %cst_62 {dimension_numbers = #tpu.dot_dimension_numbers<[1], [0], [0], [1], [0, 0, 1, 1], [], []>} : vector<224x48xbf16>, vector<48x32xbf16>, vector<224x32xf32> -> vector<224x32xf32>
      %65 = arith.addf %57, %64 : vector<224x32xf32>
      %66 = vector.broadcast %29 : vector<1x32xf32> to vector<224x32xf32>
      %67 = arith.addf %65, %66 : vector<224x32xf32>
      %68 = vector.shape_cast %67 : vector<224x32xf32> to vector<14x16x32xf32>
      %69 = arith.truncf %68 : vector<14x16x32xf32> to vector<14x16x32xbf16>
      %c0_63 = arith.constant 0 : index
      %70 = arith.index_cast %42 : i32 to index
      %c0_64 = arith.constant 0 : index
      %c0_65 = arith.constant 0 : index
      %71 = vector.load %arg7[%c0_63, %70, %c0_64, %c0_65] : memref<1x56x16x32xbf16, #tpu.memory_space<vmem>>, vector<1x14x16x32xbf16>
      %72 = vector.shape_cast %71 : vector<1x14x16x32xbf16> to vector<14x16x32xbf16>
      %73 = vector.shape_cast %69 : vector<14x16x32xbf16> to vector<1x14x16x32xbf16>
      tpu.vector_store %arg7[%c0_63, %70, %c0_64, %c0_65], %73 {strides = array<i32>} : memref<1x56x16x32xbf16, #tpu.memory_space<vmem>>, vector<1x14x16x32xbf16>,
      %cst_66 = arith.constant dense<0.000000e+00> : vector<32xf32>
      %74 = vector.multi_reduction <add>, %67, %cst_66 [0] : vector<224x32xf32> to vector<32xf32>
      %75 = vector.shape_cast %74 : vector<32xf32> to vector<1x32xf32>
      %76 = arith.addf %arg12, %75 : vector<1x32xf32>
      %77 = arith.mulf %67, %67 : vector<224x32xf32>
      %cst_67 = arith.constant dense<0.000000e+00> : vector<32xf32>
      %78 = vector.multi_reduction <add>, %77, %cst_67 [0] : vector<224x32xf32> to vector<32xf32>
      %79 = vector.shape_cast %78 : vector<32xf32> to vector<1x32xf32>
      %80 = arith.addf %arg13, %79 : vector<1x32xf32>
      scf.yield %76, %80 : vector<1x32xf32>, vector<1x32xf32>
    }
    %c4_i32_31 = arith.constant 4 : i32
    %c0_32 = arith.constant 0 : index
    %c0_33 = arith.constant 0 : index
    %c0_34 = arith.constant 0 : index
    %34 = vector.load %arg8[%c0_32, %c0_33, %c0_34] : memref<1x1x32xf32, #tpu.memory_space<vmem>>, vector<1x1x32xf32>
    %35 = vector.shape_cast %33#0 : vector<1x32xf32> to vector<1x1x32xf32>
    %36 = arith.addf %34, %35 : vector<1x1x32xf32>
    %c0_35 = arith.constant 0 : index
    %c0_36 = arith.constant 0 : index
    %c0_37 = arith.constant 0 : index
    %37 = vector.load %arg8[%c0_35, %c0_36, %c0_37] : memref<1x1x32xf32, #tpu.memory_space<vmem>>, vector<1x1x32xf32>
    tpu.vector_store %arg8[%c0_35, %c0_36, %c0_37], %36 {strides = array<i32>} : memref<1x1x32xf32, #tpu.memory_space<vmem>>, vector<1x1x32xf32>,
    %c0_38 = arith.constant 0 : index
    %c0_39 = arith.constant 0 : index
    %c0_40 = arith.constant 0 : index
    %38 = vector.load %arg9[%c0_38, %c0_39, %c0_40] : memref<1x1x32xf32, #tpu.memory_space<vmem>>, vector<1x1x32xf32>
    %39 = vector.shape_cast %33#1 : vector<1x32xf32> to vector<1x1x32xf32>
    %40 = arith.addf %38, %39 : vector<1x1x32xf32>
    %c0_41 = arith.constant 0 : index
    %c0_42 = arith.constant 0 : index
    %c0_43 = arith.constant 0 : index
    %41 = vector.load %arg9[%c0_41, %c0_42, %c0_43] : memref<1x1x32xf32, #tpu.memory_space<vmem>>, vector<1x1x32xf32>
    tpu.vector_store %arg9[%c0_41, %c0_42, %c0_43], %40 {strides = array<i32>} : memref<1x1x32xf32, #tpu.memory_space<vmem>>, vector<1x1x32xf32>,
    return
  }
  func.func @transform_0(%arg0: i32, %arg1: i32) -> (i32, i32, i32, i32) {
    %c0_i32 = arith.constant 0 : i32
    %c0_i32_0 = arith.constant 0 : i32
    %c0_i32_1 = arith.constant 0 : i32
    %c0_i32_2 = arith.constant 0 : i32
    return %arg0, %c0_i32, %c0_i32_0, %c0_i32_1 : i32, i32, i32, i32
  }
  func.func @transform_1(%arg0: i32, %arg1: i32) -> (i32, i32, i32) {
    %c0_i32 = arith.constant 0 : i32
    %c0_i32_0 = arith.constant 0 : i32
    %c0_i32_1 = arith.constant 0 : i32
    %c0_i32_2 = arith.constant 0 : i32
    return %c0_i32, %c0_i32_0, %c0_i32_1 : i32, i32, i32
  }
  func.func @transform_2(%arg0: i32, %arg1: i32) -> (i32, i32) {
    %c0_i32 = arith.constant 0 : i32
    %c0_i32_0 = arith.constant 0 : i32
    %c0_i32_1 = arith.constant 0 : i32
    return %c0_i32, %c0_i32_0 : i32, i32
  }
  func.func @transform_3(%arg0: i32, %arg1: i32) -> (i32, i32) {
    %c0_i32 = arith.constant 0 : i32
    %c0_i32_0 = arith.constant 0 : i32
    %c0_i32_1 = arith.constant 0 : i32
    return %c0_i32, %c0_i32_0 : i32, i32
  }
  func.func @transform_4(%arg0: i32, %arg1: i32) -> (i32, i32) {
    %c0_i32 = arith.constant 0 : i32
    %c0_i32_0 = arith.constant 0 : i32
    %c0_i32_1 = arith.constant 0 : i32
    return %c0_i32, %c0_i32_0 : i32, i32
  }
  func.func @transform_5(%arg0: i32, %arg1: i32) -> (i32, i32, i32, i32) {
    %c0_i32 = arith.constant 0 : i32
    %c0_i32_0 = arith.constant 0 : i32
    %c0_i32_1 = arith.constant 0 : i32
    return %arg0, %arg1, %c0_i32, %c0_i32_0 : i32, i32, i32, i32
  }
  func.func @transform_6(%arg0: i32, %arg1: i32) -> (i32, i32, i32) {
    %c0_i32 = arith.constant 0 : i32
    %c0_i32_0 = arith.constant 0 : i32
    %c0_i32_1 = arith.constant 0 : i32
    return %arg0, %c0_i32, %c0_i32_0 : i32, i32, i32
  }
  func.func @transform_7(%arg0: i32, %arg1: i32) -> (i32, i32, i32) {
    %c0_i32 = arith.constant 0 : i32
    %c0_i32_0 = arith.constant 0 : i32
    %c0_i32_1 = arith.constant 0 : i32
    return %arg0, %c0_i32, %c0_i32_0 : i32, i32, i32
  }
}

</mosaic_0001>

<llo_original>
// kernel: conv_bn.1
$region0: #{conv_bn.1}
  #allocation0 [shape = 'u32[]', space=smem, size = 0x4, offset = 0x4, fixed_abs, tag = 'smem constant byte address 0x4 - core index']
  #allocation1 [shape = 'u32[144,128]{1,0:T(1,128)}', space=vmem, size = 0x12000, scoped, tag = 'internal scratch']
  #allocation2 [shape = 'bf16[58,16,48]{2,1,0:T(8,128)(2,1)}', space=vmem, size = 0x3a000, scoped, tag = 'scratch operand']
  %s0 = inlined_call_operand.vmem [shape: bf16[2,112,16,16], index: 0, kind: input, shape index: {}]
  %s1 = inlined_call_operand.vmem [shape: bf16[3,48,32], index: 1, kind: input, shape index: {}]
  %s2 = inlined_call_operand.vmem [shape: f32[1,16], index: 2, kind: input, shape index: {}]
  %s3 = inlined_call_operand.vmem [shape: f32[1,16], index: 3, kind: input, shape index: {}]
  %s4 = inlined_call_operand.vmem [shape: f32[1,32], index: 4, kind: input, shape index: {}]
  %s5 = inlined_call_operand.vmem [shape: bf16[2,112,16,32], index: 5, kind: output, shape index: {0}]
  %s6 = inlined_call_operand.vmem [shape: f32[2,1,32], index: 6, kind: output, shape index: {1}]
  %s7 = inlined_call_operand.vmem [shape: f32[2,1,32], index: 7, kind: output, shape index: {2}]
  %8 = xla_tuple %s5, %s6, %s7
  %s9 = sld [smem:[#allocation0]]
  $region103: #{conv_bn.1} parent=0
    _
  %s11 = ssub.s32 1, %s9
  %s12 = scalar_select 0, %s11, %s9
  loop: start=0, step=1, limit=6
  $region2: #{conv_bn.1} parent=0 // loop_pre_header
    _
  $region3: #{conv_bn.1} parent=0 // loop_header
    %s14 = sphi 0, %s18
    %p15 = scmp.ge.s32.totalorder %s14, 6
    %s21 = sphi 0, %s33
    %s22 = sphi 0, %s29
    %s23 = sphi 0, %s21
    %s24 = sphi 0, %s22
    %s25 = sphi 0, %s23
    %s26 = sphi 0, %s24
    %s36 = sphi 0, %s38
    %s39 = sphi 0, %s36
    %s40 = sphi 0, %s39
    %s56 = sphi 0, %s40
    %s60 = sphi 0, %s60
    %s62 = sphi 0, %s60
    %s63 = sphi 0, %s62
    %s77 = sphi 0, %s63
    %s81 = sphi 0, %s81
    %s83 = sphi 0, %s81
    %s84 = sphi 0, %s83
    %s98 = sphi 0, %s84
    %s102 = sphi 0, %s102
    %s104 = sphi 0, %s102
    %s105 = sphi 0, %s104
    %s119 = sphi 0, %s105
    %s123 = sphi 0, %s123
    %s125 = sphi 0, %s123
    %s126 = sphi 0, %s125
    %s140 = sphi 0, %s126
    %s148 = sphi 0, %s150
    %s151 = sphi 0, %s148
    %s152 = sphi 0, %s151
    %s168 = sphi 0, %s152
    %s174 = sphi 0, %s176
    %s177 = sphi 0, %s174
    %s178 = sphi 0, %s177
    %s194 = sphi 0, %s178
    %s200 = sphi 0, %s202
    %s203 = sphi 0, %s200
    %s204 = sphi 0, %s203
    %s220 = sphi 0, %s204
  $region4: #{conv_bn.1} parent=0 // loop_header_branch
    %17 = sbr.rel (%p15) target = $region8
  $region5: #{conv_bn.1} parent=0 // loop_body
    %s19 = ssub.s32 %s14, 1
    %s20 = ssub.s32 %s14, 2
    %s27 = sadd.s32 1, %s22
    %p28 = scmp.ge.s32.totalorder %s27, 2
    %s29 = scalar_select %p28, 0, %s27
    %s30 = sadd.s32 1, %s21
    %s31 = scalar_select %p28, %s30, %s21
    %p32 = scmp.ge.s32.totalorder %s31, 2
    %s33 = scalar_select %p32, 0, %s31
    %s34 = ssub.s32 %s21, %s33
    %p35 = scmp.eq.s32.totalorder %s34, 0
    %s37 = sadd.s32 %s36, 1
    %s38 = scalar_select %p35, %s36, %s37
    %p41 = pneg %p35
    %p42 = scmp.eq.s32.totalorder %s14, 3
    %p43 = por %p41, %p42
    %p44 = scmp.ne.s32.totalorder %s36, %s39
    %p45 = scmp.eq.s32.totalorder %s14, 0
    %p46 = por %p44, %p45
    %p47 = scmp.ne.s32.totalorder %s36, %s39
    %p48 = scmp.eq.s32.totalorder %s19, 3
    %p49 = por %p47, %p48
    %p50 = scmp.ne.s32.totalorder %s39, %s40
    %p51 = scmp.eq.s32.totalorder %s19, 0
    %p52 = por %p50, %p51
    %p53 = scmp.ne.s32.totalorder %s39, %s40
    %p54 = scmp.eq.s32.totalorder %s20, 3
    %p55 = por %p53, %p54
    %p57 = scmp.ne.s32.totalorder %s40, %s56
    %p58 = scmp.eq.s32.totalorder %s20, 0
    %p59 = por %p57, %p58
    %s61 = sadd.s32 %s60, 1
    %p64 = scmp.eq.s32.totalorder %s14, 3
    %p65 = scmp.ne.s32.totalorder %s60, %s62
    %p66 = scmp.eq.s32.totalorder %s14, 0
    %p67 = por %p65, %p66
    %p68 = scmp.ne.s32.totalorder %s60, %s62
    %p69 = scmp.eq.s32.totalorder %s19, 3
    %p70 = por %p68, %p69
    %p71 = scmp.ne.s32.totalorder %s62, %s63
    %p72 = scmp.eq.s32.totalorder %s19, 0
    %p73 = por %p71, %p72
    %p74 = scmp.ne.s32.totalorder %s62, %s63
    %p75 = scmp.eq.s32.totalorder %s20, 3
    %p76 = por %p74, %p75
    %p78 = scmp.ne.s32.totalorder %s63, %s77
    %p79 = scmp.eq.s32.totalorder %s20, 0
    %p80 = por %p78, %p79
    %s82 = sadd.s32 %s81, 1
    %p85 = scmp.eq.s32.totalorder %s14, 3
    %p86 = scmp.ne.s32.totalorder %s81, %s83
    %p87 = scmp.eq.s32.totalorder %s14, 0
    %p88 = por %p86, %p87
    %p89 = scmp.ne.s32.totalorder %s81, %s83
    %p90 = scmp.eq.s32.totalorder %s19, 3
    %p91 = por %p89, %p90
    %p92 = scmp.ne.s32.totalorder %s83, %s84
    %p93 = scmp.eq.s32.totalorder %s19, 0
    %p94 = por %p92, %p93
    %p95 = scmp.ne.s32.totalorder %s83, %s84
    %p96 = scmp.eq.s32.totalorder %s20, 3
    %p97 = por %p95, %p96
    %p99 = scmp.ne.s32.totalorder %s84, %s98
    %p100 = scmp.eq.s32.totalorder %s20, 0
    %p101 = por %p99, %p100
    %s103 = sadd.s32 %s102, 1
    %p106 = scmp.eq.s32.totalorder %s14, 3
    %p107 = scmp.ne.s32.totalorder %s102, %s104
    %p108 = scmp.eq.s32.totalorder %s14, 0
    %p109 = por %p107, %p108
    %p110 = scmp.ne.s32.totalorder %s102, %s104
    %p111 = scmp.eq.s32.totalorder %s19, 3
    %p112 = por %p110, %p111
    %p113 = scmp.ne.s32.totalorder %s104, %s105
    %p114 = scmp.eq.s32.totalorder %s19, 0
    %p115 = por %p113, %p114
    %p116 = scmp.ne.s32.totalorder %s104, %s105
    %p117 = scmp.eq.s32.totalorder %s20, 3
    %p118 = por %p116, %p117
    %p120 = scmp.ne.s32.totalorder %s105, %s119
    %p121 = scmp.eq.s32.totalorder %s20, 0
    %p122 = por %p120, %p121
    %s124 = sadd.s32 %s123, 1
    %p127 = scmp.eq.s32.totalorder %s14, 3
    %p128 = scmp.ne.s32.totalorder %s123, %s125
    %p129 = scmp.eq.s32.totalorder %s14, 0
    %p130 = por %p128, %p129
    %p131 = scmp.ne.s32.totalorder %s123, %s125
    %p132 = scmp.eq.s32.totalorder %s19, 3
    %p133 = por %p131, %p132
    %p134 = scmp.ne.s32.totalorder %s125, %s126
    %p135 = scmp.eq.s32.totalorder %s19, 0
    %p136 = por %p134, %p135
    %p137 = scmp.ne.s32.totalorder %s125, %s126
    %p138 = scmp.eq.s32.totalorder %s20, 3
    %p139 = por %p137, %p138
    %p141 = scmp.ne.s32.totalorder %s126, %s140
    %p142 = scmp.eq.s32.totalorder %s20, 0
    %p143 = por %p141, %p142
    %s144 = ssub.s32 %s21, %s33
    %s145 = ssub.s32 %s22, %s29
    %s146 = sor.u32 %s144, %s145
    %p147 = scmp.eq.s32.totalorder %s146, 0
    %s149 = sadd.s32 %s148, 1
    %s150 = scalar_select %p147, %s148, %s149
    %p153 = pneg %p147
    %p154 = scmp.eq.s32.totalorder %s14, 3
    %p155 = por %p153, %p154
    %p156 = scmp.ne.s32.totalorder %s148, %s151
    %p157 = scmp.eq.s32.totalorder %s14, 0
    %p158 = por %p156, %p157
    %p159 = scmp.ne.s32.totalorder %s148, %s151
    %p160 = scmp.eq.s32.totalorder %s19, 3
    %p161 = por %p159, %p160
    %p162 = scmp.ne.s32.totalorder %s151, %s152
    %p163 = scmp.eq.s32.totalorder %s19, 0
    %p164 = por %p162, %p163
    %p165 = scmp.ne.s32.totalorder %s151, %s152
    %p166 = scmp.eq.s32.totalorder %s20, 3
    %p167 = por %p165, %p166
    %p169 = scmp.ne.s32.totalorder %s152, %s168
    %p170 = scmp.eq.s32.totalorder %s20, 0
    %p171 = por %p169, %p170
    %s172 = ssub.s32 %s21, %s33
    %p173 = scmp.eq.s32.totalorder %s172, 0
    %s175 = sadd.s32 %s174, 1
    %s176 = scalar_select %p173, %s174, %s175
    %p179 = pneg %p173
    %p180 = scmp.eq.s32.totalorder %s14, 3
    %p181 = por %p179, %p180
    %p182 = scmp.ne.s32.totalorder %s174, %s177
    %p183 = scmp.eq.s32.totalorder %s14, 0
    %p184 = por %p182, %p183
    %p185 = scmp.ne.s32.totalorder %s174, %s177
    %p186 = scmp.eq.s32.totalorder %s19, 3
    %p187 = por %p185, %p186
    %p188 = scmp.ne.s32.totalorder %s177, %s178
    %p189 = scmp.eq.s32.totalorder %s19, 0
    %p190 = por %p188, %p189
    %p191 = scmp.ne.s32.totalorder %s177, %s178
    %p192 = scmp.eq.s32.totalorder %s20, 3
    %p193 = por %p191, %p192
    %p195 = scmp.ne.s32.totalorder %s178, %s194
    %p196 = scmp.eq.s32.totalorder %s20, 0
    %p197 = por %p195, %p196
    %s198 = ssub.s32 %s21, %s33
    %p199 = scmp.eq.s32.totalorder %s198, 0
    %s201 = sadd.s32 %s200, 1
    %s202 = scalar_select %p199, %s200, %s201
    %p205 = pneg %p199
    %p206 = scmp.eq.s32.totalorder %s14, 3
    %p207 = por %p205, %p206
    %p208 = scmp.ne.s32.totalorder %s200, %s203
    %p209 = scmp.eq.s32.totalorder %s14, 0
    %p210 = por %p208, %p209
    %p211 = scmp.ne.s32.totalorder %s200, %s203
    %p212 = scmp.eq.s32.totalorder %s19, 3
    %p213 = por %p211, %p212
    %p214 = scmp.ne.s32.totalorder %s203, %s204
    %p215 = scmp.eq.s32.totalorder %s19, 0
    %p216 = por %p214, %p215
    %p217 = scmp.ne.s32.totalorder %s203, %s204
    %p218 = scmp.eq.s32.totalorder %s20, 3
    %p219 = por %p217, %p218
    %p221 = scmp.ne.s32.totalorder %s204, %s220
    %p222 = scmp.eq.s32.totalorder %s20, 0
    %p223 = por %p221, %p222
    %p224 = scmp.le.s32.totalorder 1, %s14
    %p225 = scmp.lt.s32.totalorder %s14, 5
    %p226 = pnand %p224, %p225
    %p227 = pneg %p226
    // Predicated region
    $region9: #{conv_bn.1} parent=5 // pred_check
      _
    $region10: #{conv_bn.1} parent=5 // pred_check_branch
      %229 = sbr.rel (%p226) target = $region12
    $region11: #{conv_bn.1} parent=5 // pred_region
      %s230 = ssub.s32 %s14, 1
      // Predicated region
      $region13: #{conv_bn.1} parent=11 // pred_check
        %p231 = pneg %p73
      $region14: #{conv_bn.1} parent=11 // pred_check_branch
        %233 = sbr.rel (%p231) target = $region16
      $region15: #{conv_bn.1} parent=11 // pred_region
        _
      $region16: #{conv_bn.1} parent=11 // pred_fallthru
        _
      // Predicated region
      $region17: #{conv_bn.1} parent=11 // pred_check
        %p234 = pneg %p94
      $region18: #{conv_bn.1} parent=11 // pred_check_branch
        %236 = sbr.rel (%p234) target = $region20
      $region19: #{conv_bn.1} parent=11 // pred_region
        _
      $region20: #{conv_bn.1} parent=11 // pred_fallthru
        _
      // Predicated region
      $region21: #{conv_bn.1} parent=11 // pred_check
        %p237 = pneg %p115
      $region22: #{conv_bn.1} parent=11 // pred_check_branch
        %239 = sbr.rel (%p237) target = $region24
      $region23: #{conv_bn.1} parent=11 // pred_region
        _
      $region24: #{conv_bn.1} parent=11 // pred_fallthru
        _
      // Predicated region
      $region25: #{conv_bn.1} parent=11 // pred_check
        %p240 = pneg %p136
      $region26: #{conv_bn.1} parent=11 // pred_check_branch
        %242 = sbr.rel (%p240) target = $region28
      $region27: #{conv_bn.1} parent=11 // pred_region
        _
      $region28: #{conv_bn.1} parent=11 // pred_fallthru
        _
    $region12: #{conv_bn.1} parent=5 // pred_fallthru
      _
    %p243 = scmp.lt.s32.totalorder %s14, 4
    // Predicated region
    $region29: #{conv_bn.1} parent=5 // pred_check
      %p244 = pneg %p243
    $region30: #{conv_bn.1} parent=5 // pred_check_branch
      %246 = sbr.rel (%p244) target = $region32
    $region31: #{conv_bn.1} parent=5 // pred_region
      // Predicated region
      $region33: #{conv_bn.1} parent=31 // pred_check
        %p247 = pneg %p46
      $region34: #{conv_bn.1} parent=31 // pred_check_branch
        %249 = sbr.rel (%p247) target = $region36
      $region35: #{conv_bn.1} parent=31 // pred_region
        %p250 = scmp.lt.s32.totalorder %s21, 1
        %s251 = scalar_select %p250, %s21, 1
        %s252 = smul.addr %s251, 224
        %s253 = smul.addr %s252, 4
        %s254 = scalar_lea.vmem %s0, %s253
      $region36: #{conv_bn.1} parent=31 // pred_fallthru
        _
    $region32: #{conv_bn.1} parent=5 // pred_fallthru
      _
    %p255 = scmp.le.s32.totalorder 1, %s14
    %p256 = scmp.lt.s32.totalorder %s14, 5
    %p257 = pnand %p255, %p256
    %p258 = pneg %p257
    // Predicated region
    $region37: #{conv_bn.1} parent=5 // pred_check
      _
    $region38: #{conv_bn.1} parent=5 // pred_check_branch
      %260 = sbr.rel (%p257) target = $region40
    $region39: #{conv_bn.1} parent=5 // pred_region
      %s261 = ssub.s32 %s14, 1
      %p262 = scmp.lt.s32.totalorder %s23, 1
      %s263 = scalar_select %p262, %s23, 1
      %s264 = smul.addr %s263, 224
      %s265 = smul.addr %s264, 4
      %s266 = scalar_lea.vmem %s0, %s265
      %p267 = pneg %p52
      %p268 = pneg %p49
      %p269 = pneg %p73
      %p270 = pneg %p70
      %p271 = pneg %p94
      %p272 = pneg %p91
      %p273 = pneg %p115
      %p274 = pneg %p112
      %p275 = pneg %p136
      %p276 = pneg %p133
      %p277 = pneg %p164
      %p278 = pneg %p161
      %s279 = smul.u32 56, %s24
      %p280 = scmp.lt.s32.totalorder %s23, 1
      %s281 = scalar_select %p280, %s23, 1
      %p282 = scmp.lt.s32.totalorder %s279, 111
      %s283 = scalar_select %p282, %s279, 111
      %s284 = smul.addr %s283, 2
      %s285 = smul.addr %s281, 224
      %s286 = sadd.s32 %s284, %s285
      %s287 = smul.addr %s286, 4
      %s288 = scalar_lea.vmem %s5, %s287
      %p289 = pneg %p190
      %p290 = pneg %p187
      %p291 = scmp.lt.s32.totalorder %s23, 1
      %s292 = scalar_select %p291, %s23, 1
      %s293 = scalar_lea.vmem %s6, %s292
      %p294 = pneg %p216
      %p295 = pneg %p213
      %p296 = scmp.lt.s32.totalorder %s23, 1
      %s297 = scalar_select %p296, %s23, 1
      %s298 = scalar_lea.vmem %s7, %s297
      %p299 = scmp.lt.s32.totalorder %s23, 1
      %s300 = scalar_select %p299, %s23, 1
      %s301 = smul.addr %s300, 224
      %s302 = smul.addr %s301, 4
      %s303 = scalar_lea.vmem %s0, %s302
      %s304 = smul.u32 56, %s24
      %p305 = scmp.lt.s32.totalorder %s23, 1
      %s306 = scalar_select %p305, %s23, 1
      %p307 = scmp.lt.s32.totalorder %s304, 111
      %s308 = scalar_select %p307, %s304, 111
      %s309 = smul.addr %s308, 2
      %s310 = smul.addr %s306, 224
      %s311 = sadd.s32 %s309, %s310
      %s312 = smul.addr %s311, 4
      %s313 = scalar_lea.vmem %s5, %s312
      %s314 = smul.u32 56, %s24
      %p315 = scmp.lt.s32.totalorder %s23, 1
      %s316 = scalar_select %p315, %s23, 1
      %s317 = scalar_lea.vmem %s6, %s316
      %p318 = scmp.lt.s32.totalorder %s23, 1
      %s319 = scalar_select %p318, %s23, 1
      %s320 = scalar_lea.vmem %s7, %s319
      %s322 = smul.u32 %s24, 56
      %p323 = scmp.eq.s32.totalorder %s24, 0
      // Predicated region
      $region41: #{conv_bn.1} parent=39 // pred_check
        %p324 = pneg %p323
      $region42: #{conv_bn.1} parent=39 // pred_check_branch
        %326 = sbr.rel (%p324) target = $region44
      $region43: #{conv_bn.1} parent=39 // pred_region
        %vm327 = vcmask 253952
        %328 = vst.msk [vmem:[%s317] sm:$0x1] %vm327, 0.0
        %329 = vst.msk [vmem:[%s320] sm:$0x1] %vm327, 0.0
      $region44: #{conv_bn.1} parent=39 // pred_fallthru
        _
      loop: start=0, step=1, limit=7
      $region45: #{conv_bn.1} parent=39 // loop_pre_header
        _
      $region46: #{conv_bn.1} parent=39 // loop_header
        %s331 = sphi 0, %s335
        %p332 = scmp.ge.s32.totalorder %s331, 7
      $region47: #{conv_bn.1} parent=39 // loop_header_branch
        %334 = sbr.rel (%p332) target = $region51
      $region48: #{conv_bn.1} parent=39 // loop_body
        %s336 = smul.u32 %s331, 8
        %s337 = sadd.s32 %s322, %s336
        %s338 = smul.u32 %s337, 2
        %s339 = smul.addr %s338, 4
        %s340 = scalar_lea.vmem %s303, %s339
        %v341 = vld [vmem:[%s340] sm:$0xf]
        %v342 = vld [vmem:[%s340 + $0x4] sm:$0xf]
        %v343 = vld [vmem:[%s340 + $0x8] sm:$0xf]
        %v344 = vld [vmem:[%s340 + $0xc] sm:$0xf]
        %v345 = vld [vmem:[%s340 + $0x10] sm:$0xf]
        %v346 = vld [vmem:[%s340 + $0x14] sm:$0xf]
        %v347 = vld [vmem:[%s340 + $0x18] sm:$0xf]
        %v348 = vld [vmem:[%s340 + $0x1c] sm:$0xf]
        %v349 = vld [vmem:[%s340 + $0x20] sm:$0xf]
        %v350 = vld [vmem:[%s340 + $0x24] sm:$0xf]
        %v351 = vld [vmem:[%s340 + $0x28] sm:$0xf]
        %v352 = vld [vmem:[%s340 + $0x2c] sm:$0xf]
        %v353 = vld [vmem:[%s340 + $0x30] sm:$0xf]
        %v354 = vld [vmem:[%s340 + $0x34] sm:$0xf]
        %v355 = vld [vmem:[%s340 + $0x38] sm:$0xf]
        %v356 = vld [vmem:[%s340 + $0x3c] sm:$0xf]
        %s357 = sadd.s32 %s336, 1
        %374 = vrot.lane.b32.xlu0 %v341, 16
        %v375 = vpop.permute.xlu0 %374
        %376 = vrot.lane.b32.xlu0 %v342, 16
        %v377 = vpop.permute.xlu0 %376
        %378 = vrot.lane.b32.xlu0 %v343, 16
        %v379 = vpop.permute.xlu0 %378
        %380 = vrot.lane.b32.xlu0 %v344, 16
        %v381 = vpop.permute.xlu0 %380
        %382 = vrot.lane.b32.xlu0 %v345, 16
        %v383 = vpop.permute.xlu0 %382
        %384 = vrot.lane.b32.xlu0 %v346, 16
        %v385 = vpop.permute.xlu0 %384
        %386 = vrot.lane.b32.xlu0 %v347, 16
        %v387 = vpop.permute.xlu0 %386
        %388 = vrot.lane.b32.xlu0 %v348, 16
        %v389 = vpop.permute.xlu0 %388
        %390 = vrot.lane.b32.xlu0 %v349, 16
        %v391 = vpop.permute.xlu0 %390
        %392 = vrot.lane.b32.xlu0 %v350, 16
        %v393 = vpop.permute.xlu0 %392
        %394 = vrot.lane.b32.xlu0 %v351, 16
        %v395 = vpop.permute.xlu0 %394
        %396 = vrot.lane.b32.xlu0 %v352, 16
        %v397 = vpop.permute.xlu0 %396
        %398 = vrot.lane.b32.xlu0 %v353, 16
        %v399 = vpop.permute.xlu0 %398
        %400 = vrot.lane.b32.xlu0 %v354, 16
        %v401 = vpop.permute.xlu0 %400
        %402 = vrot.lane.b32.xlu0 %v355, 16
        %v403 = vpop.permute.xlu0 %402
        %404 = vrot.lane.b32.xlu0 %v356, 16
        %v405 = vpop.permute.xlu0 %404
        %s422 = smul.u32 %s357, 2
        %s423 = smul.addr %s422, 4
        %s424 = scalar_lea.vmem [#allocation2], %s423
        %vm425 = vcmask 257152
        %426 = vst.msk [vmem:[%s424] sm:$0xf] %vm425, %v375
        %427 = vst.msk [vmem:[%s424 + $0x4] sm:$0xf] %vm425, %v377
        %428 = vst.msk [vmem:[%s424 + $0x8] sm:$0xf] %vm425, %v379
        %429 = vst.msk [vmem:[%s424 + $0xc] sm:$0xf] %vm425, %v381
        %430 = vst.msk [vmem:[%s424 + $0x10] sm:$0xf] %vm425, %v383
        %431 = vst.msk [vmem:[%s424 + $0x14] sm:$0xf] %vm425, %v385
        %432 = vst.msk [vmem:[%s424 + $0x18] sm:$0xf] %vm425, %v387
        %433 = vst.msk [vmem:[%s424 + $0x1c] sm:$0xf] %vm425, %v389
        %434 = vst.msk [vmem:[%s424 + $0x20] sm:$0xf] %vm425, %v391
        %435 = vst.msk [vmem:[%s424 + $0x24] sm:$0xf] %vm425, %v393
        %436 = vst.msk [vmem:[%s424 + $0x28] sm:$0xf] %vm425, %v395
        %437 = vst.msk [vmem:[%s424 + $0x2c] sm:$0xf] %vm425, %v397
        %438 = vst.msk [vmem:[%s424 + $0x30] sm:$0xf] %vm425, %v399
        %439 = vst.msk [vmem:[%s424 + $0x34] sm:$0xf] %vm425, %v401
        %440 = vst.msk [vmem:[%s424 + $0x38] sm:$0xf] %vm425, %v403
        %441 = vst.msk [vmem:[%s424 + $0x3c] sm:$0xf] %vm425, %v405
      $region49: #{conv_bn.1} parent=39 // loop_footer
        %s335 = sadd.s32 1, %s331
      $region50: #{conv_bn.1} parent=39 // loop_footer_branch
        %330 = sbr.rel target = $region46
      $region51: #{conv_bn.1} parent=39 // loop_exit
        _
      %p442 = scmp.gt.s32.totalorder %s24, 0
      // Predicated region
      $region52: #{conv_bn.1} parent=39 // pred_check
        %p443 = pneg %p442
      $region53: #{conv_bn.1} parent=39 // pred_check_branch
        %445 = sbr.rel (%p443) target = $region55
      $region54: #{conv_bn.1} parent=39 // pred_region
        %s446 = ssub.s32 %s322, 1
        %s447 = smul.u32 %s446, 2
        %s448 = smul.addr %s447, 4
        %s449 = scalar_lea.vmem %s303, %s448
        %v450 = vld [vmem:[%s449] sm:$0xf]
        %v451 = vld [vmem:[%s449 + $0x4] sm:$0xf]
        %454 = vrot.lane.b32.xlu0 %v450, 16
        %v455 = vpop.permute.xlu0 %454
        %456 = vrot.lane.b32.xlu0 %v451, 16
        %v457 = vpop.permute.xlu0 %456
        %vm460 = vcmask 257152
        %461 = vst.msk [vmem:[#allocation2] sm:$0xf] %vm460, %v455
        %462 = vst.msk [vmem:[#allocation2 + $0x4] sm:$0xf] %vm460, %v457
      $region55: #{conv_bn.1} parent=39 // pred_fallthru
        _
      // Predicated region
      $region56: #{conv_bn.1} parent=39 // pred_check
        %p463 = pneg %p323
      $region57: #{conv_bn.1} parent=39 // pred_check_branch
        %465 = sbr.rel (%p463) target = $region59
      $region58: #{conv_bn.1} parent=39 // pred_region
        %vm466 = vcmask 257152
        %467 = vst.msk [vmem:[#allocation2] sm:$0xf] %vm466, 0
        %468 = vst.msk [vmem:[#allocation2 + $0x4] sm:$0xf] %vm466, 0
      $region59: #{conv_bn.1} parent=39 // pred_fallthru
        _
      %p469 = scmp.lt.s32.totalorder %s24, 1
      // Predicated region
      $region60: #{conv_bn.1} parent=39 // pred_check
        %p470 = pneg %p469
      $region61: #{conv_bn.1} parent=39 // pred_check_branch
        %472 = sbr.rel (%p470) target = $region63
      $region62: #{conv_bn.1} parent=39 // pred_region
        %s473 = sadd.s32 %s322, 56
        %s474 = smul.u32 %s473, 2
        %s475 = smul.addr %s474, 4
        %s476 = scalar_lea.vmem %s303, %s475
        %v477 = vld [vmem:[%s476] sm:$0xf]
        %v478 = vld [vmem:[%s476 + $0x4] sm:$0xf]
        %481 = vrot.lane.b32.xlu0 %v477, 16
        %v482 = vpop.permute.xlu0 %481
        %483 = vrot.lane.b32.xlu0 %v478, 16
        %v484 = vpop.permute.xlu0 %483
        %s487 = scalar_lea.vmem [#allocation2], 456
        %vm488 = vcmask 257152
        %489 = vst.msk [vmem:[%s487] sm:$0xf] %vm488, %v482
        %490 = vst.msk [vmem:[%s487 + $0x4] sm:$0xf] %vm488, %v484
      $region63: #{conv_bn.1} parent=39 // pred_fallthru
        _
      %p491 = scmp.eq.s32.totalorder %s24, 1
      // Predicated region
      $region64: #{conv_bn.1} parent=39 // pred_check
        %p492 = pneg %p491
      $region65: #{conv_bn.1} parent=39 // pred_check_branch
        %494 = sbr.rel (%p492) target = $region67
      $region66: #{conv_bn.1} parent=39 // pred_region
        %s495 = scalar_lea.vmem [#allocation2], 456
        %vm496 = vcmask 257152
        %497 = vst.msk [vmem:[%s495] sm:$0xf] %vm496, 0
        %498 = vst.msk [vmem:[%s495 + $0x4] sm:$0xf] %vm496, 0
      $region67: #{conv_bn.1} parent=39 // pred_fallthru
        _
      %v499 = vld [vmem:[#allocation2] sm:$0xf]
      %v500 = vld [vmem:[#allocation2 + $0x4] sm:$0xf]
      %v501 = vld [vmem:[#allocation2 + $0x8] sm:$0xf]
      %v502 = vld [vmem:[#allocation2 + $0xc] sm:$0xf]
      %v503 = vld [vmem:[#allocation2 + $0x10] sm:$0xf]
      %v504 = vld [vmem:[#allocation2 + $0x14] sm:$0xf]
      %v505 = vld [vmem:[#allocation2 + $0x18] sm:$0xf]
      %v506 = vld [vmem:[#allocation2 + $0x1c] sm:$0xf]
      %v507 = vld [vmem:[#allocation2 + $0x20] sm:$0xf]
      %v508 = vld [vmem:[#allocation2 + $0x24] sm:$0xf]
      %v509 = vld [vmem:[#allocation2 + $0x28] sm:$0xf]
      %v510 = vld [vmem:[#allocation2 + $0x2c] sm:$0xf]
      %v511 = vld [vmem:[#allocation2 + $0x30] sm:$0xf]
      %v512 = vld [vmem:[#allocation2 + $0x34] sm:$0xf]
      %v513 = vld [vmem:[#allocation2 + $0x38] sm:$0xf]
      %v514 = vld [vmem:[#allocation2 + $0x3c] sm:$0xf]
      %v515 = vld [vmem:[#allocation2 + $0x40] sm:$0xf]
      %v516 = vld [vmem:[#allocation2 + $0x44] sm:$0xf]
      %v517 = vld [vmem:[#allocation2 + $0x48] sm:$0xf]
      %v518 = vld [vmem:[#allocation2 + $0x4c] sm:$0xf]
      %v519 = vld [vmem:[#allocation2 + $0x50] sm:$0xf]
      %v520 = vld [vmem:[#allocation2 + $0x54] sm:$0xf]
      %v521 = vld [vmem:[#allocation2 + $0x58] sm:$0xf]
      %v522 = vld [vmem:[#allocation2 + $0x5c] sm:$0xf]
      %v523 = vld [vmem:[#allocation2 + $0x60] sm:$0xf]
      %v524 = vld [vmem:[#allocation2 + $0x64] sm:$0xf]
      %v525 = vld [vmem:[#allocation2 + $0x68] sm:$0xf]
      %v526 = vld [vmem:[#allocation2 + $0x6c] sm:$0xf]
      %v527 = vld [vmem:[#allocation2 + $0x70] sm:$0xf]
      %v528 = vld [vmem:[#allocation2 + $0x74] sm:$0xf]
      %v529 = vld [vmem:[#allocation2 + $0x78] sm:$0xf]
      %v530 = vld [vmem:[#allocation2 + $0x7c] sm:$0xf]
      %v531 = vld [vmem:[#allocation2 + $0x80] sm:$0xf]
      %v532 = vld [vmem:[#allocation2 + $0x84] sm:$0xf]
      %v533 = vld [vmem:[#allocation2 + $0x88] sm:$0xf]
      %v534 = vld [vmem:[#allocation2 + $0x8c] sm:$0xf]
      %v535 = vld [vmem:[#allocation2 + $0x90] sm:$0xf]
      %v536 = vld [vmem:[#allocation2 + $0x94] sm:$0xf]
      %v537 = vld [vmem:[#allocation2 + $0x98] sm:$0xf]
      %v538 = vld [vmem:[#allocation2 + $0x9c] sm:$0xf]
      %v539 = vld [vmem:[#allocation2 + $0xa0] sm:$0xf]
      %v540 = vld [vmem:[#allocation2 + $0xa4] sm:$0xf]
      %v541 = vld [vmem:[#allocation2 + $0xa8] sm:$0xf]
      %v542 = vld [vmem:[#allocation2 + $0xac] sm:$0xf]
      %v543 = vld [vmem:[#allocation2 + $0xb0] sm:$0xf]
      %v544 = vld [vmem:[#allocation2 + $0xb4] sm:$0xf]
      %v545 = vld [vmem:[#allocation2 + $0xb8] sm:$0xf]
      %v546 = vld [vmem:[#allocation2 + $0xbc] sm:$0xf]
      %v547 = vld [vmem:[#allocation2 + $0xc0] sm:$0xf]
      %v548 = vld [vmem:[#allocation2 + $0xc4] sm:$0xf]
      %v549 = vld [vmem:[#allocation2 + $0xc8] sm:$0xf]
      %v550 = vld [vmem:[#allocation2 + $0xcc] sm:$0xf]
      %v551 = vld [vmem:[#allocation2 + $0xd0] sm:$0xf]
      %v552 = vld [vmem:[#allocation2 + $0xd4] sm:$0xf]
      %v553 = vld [vmem:[#allocation2 + $0xd8] sm:$0xf]
      %v554 = vld [vmem:[#allocation2 + $0xdc] sm:$0xf]
      %v555 = vld [vmem:[#allocation2 + $0xe0] sm:$0xf]
      %v556 = vld [vmem:[#allocation2 + $0xe4] sm:$0xf]
      %v557 = vld [vmem:[#allocation2 + $0xe8] sm:$0xf]
      %v558 = vld [vmem:[#allocation2 + $0xec] sm:$0xf]
      %v559 = vld [vmem:[#allocation2 + $0xf0] sm:$0xf]
      %v560 = vld [vmem:[#allocation2 + $0xf4] sm:$0xf]
      %v561 = vld [vmem:[#allocation2 + $0xf8] sm:$0xf]
      %v562 = vld [vmem:[#allocation2 + $0xfc] sm:$0xf]
      %v563 = vld [vmem:[#allocation2 + $0x100] sm:$0xf]
      %v564 = vld [vmem:[#allocation2 + $0x104] sm:$0xf]
      %v565 = vld [vmem:[#allocation2 + $0x108] sm:$0xf]
      %v566 = vld [vmem:[#allocation2 + $0x10c] sm:$0xf]
      %v567 = vld [vmem:[#allocation2 + $0x110] sm:$0xf]
      %v568 = vld [vmem:[#allocation2 + $0x114] sm:$0xf]
      %v569 = vld [vmem:[#allocation2 + $0x118] sm:$0xf]
      %v570 = vld [vmem:[#allocation2 + $0x11c] sm:$0xf]
      %v571 = vld [vmem:[#allocation2 + $0x120] sm:$0xf]
      %v572 = vld [vmem:[#allocation2 + $0x124] sm:$0xf]
      %v573 = vld [vmem:[#allocation2 + $0x128] sm:$0xf]
      %v574 = vld [vmem:[#allocation2 + $0x12c] sm:$0xf]
      %v575 = vld [vmem:[#allocation2 + $0x130] sm:$0xf]
      %v576 = vld [vmem:[#allocation2 + $0x134] sm:$0xf]
      %v577 = vld [vmem:[#allocation2 + $0x138] sm:$0xf]
      %v578 = vld [vmem:[#allocation2 + $0x13c] sm:$0xf]
      %v579 = vld [vmem:[#allocation2 + $0x140] sm:$0xf]
      %v580 = vld [vmem:[#allocation2 + $0x144] sm:$0xf]
      %v581 = vld [vmem:[#allocation2 + $0x148] sm:$0xf]
      %v582 = vld [vmem:[#allocation2 + $0x14c] sm:$0xf]
      %v583 = vld [vmem:[#allocation2 + $0x150] sm:$0xf]
      %v584 = vld [vmem:[#allocation2 + $0x154] sm:$0xf]
      %v585 = vld [vmem:[#allocation2 + $0x158] sm:$0xf]
      %v586 = vld [vmem:[#allocation2 + $0x15c] sm:$0xf]
      %v587 = vld [vmem:[#allocation2 + $0x160] sm:$0xf]
      %v588 = vld [vmem:[#allocation2 + $0x164] sm:$0xf]
      %v589 = vld [vmem:[#allocation2 + $0x168] sm:$0xf]
      %v590 = vld [vmem:[#allocation2 + $0x16c] sm:$0xf]
      %v591 = vld [vmem:[#allocation2 + $0x170] sm:$0xf]
      %v592 = vld [vmem:[#allocation2 + $0x174] sm:$0xf]
      %v593 = vld [vmem:[#allocation2 + $0x178] sm:$0xf]
      %v594 = vld [vmem:[#allocation2 + $0x17c] sm:$0xf]
      %v595 = vld [vmem:[#allocation2 + $0x180] sm:$0xf]
      %v596 = vld [vmem:[#allocation2 + $0x184] sm:$0xf]
      %v597 = vld [vmem:[#allocation2 + $0x188] sm:$0xf]
      %v598 = vld [vmem:[#allocation2 + $0x18c] sm:$0xf]
      %v599 = vld [vmem:[#allocation2 + $0x190] sm:$0xf]
      %v600 = vld [vmem:[#allocation2 + $0x194] sm:$0xf]
      %v601 = vld [vmem:[#allocation2 + $0x198] sm:$0xf]
      %v602 = vld [vmem:[#allocation2 + $0x19c] sm:$0xf]
      %v603 = vld [vmem:[#allocation2 + $0x1a0] sm:$0xf]
      %v604 = vld [vmem:[#allocation2 + $0x1a4] sm:$0xf]
      %v605 = vld [vmem:[#allocation2 + $0x1a8] sm:$0xf]
      %v606 = vld [vmem:[#allocation2 + $0x1ac] sm:$0xf]
      %v607 = vld [vmem:[#allocation2 + $0x1b0] sm:$0xf]
      %v608 = vld [vmem:[#allocation2 + $0x1b4] sm:$0xf]
      %v609 = vld [vmem:[#allocation2 + $0x1b8] sm:$0xf]
      %v610 = vld [vmem:[#allocation2 + $0x1bc] sm:$0xf]
      %v611 = vld [vmem:[#allocation2 + $0x1c0] sm:$0xf]
      %v612 = vld [vmem:[#allocation2 + $0x1c4] sm:$0xf]
      %v613 = vld [vmem:[#allocation2 + $0x1c8] sm:$0xf]
      %v614 = vld [vmem:[#allocation2 + $0x1cc] sm:$0xf]
      %vm615 = vsmask.f32 256
      %vm616 = vsmask.f32 4368
      %vm617 = vmor %vm615, %vm616
      %v619 = vshrl.u32 %v499, 16
      %v621 = vrot.slane %v619, 7
      %v622 = vshll.u32 %v499, 16
      %v624 = vor.u32 %v621, %v622
      %v625 = vrot.slane %v621, 4
      %v627 = vshrl.u32 %v500, 16
      %v629 = vrot.slane %v627, 7
      %v630 = vshll.u32 %v500, 16
      %v632 = vor.u32 %v629, %v630
      %v633 = vsel %vm617, %v625, %v632
      %v635 = vshrl.u32 %v501, 16
      %v637 = vrot.slane %v635, 7
      %v638 = vshll.u32 %v501, 16
      %v640 = vor.u32 %v637, %v638
      %v641 = vrot.slane %v637, 4
      %v643 = vshrl.u32 %v502, 16
      %v645 = vrot.slane %v643, 7
      %v646 = vshll.u32 %v502, 16
      %v648 = vor.u32 %v645, %v646
      %v649 = vsel %vm617, %v641, %v648
      %v651 = vshrl.u32 %v503, 16
      %v653 = vrot.slane %v651, 7
      %v654 = vshll.u32 %v503, 16
      %v656 = vor.u32 %v653, %v654
      %v657 = vrot.slane %v653, 4
      %v659 = vshrl.u32 %v504, 16
      %v661 = vrot.slane %v659, 7
      %v662 = vshll.u32 %v504, 16
      %v664 = vor.u32 %v661, %v662
      %v665 = vsel %vm617, %v657, %v664
      %v667 = vshrl.u32 %v505, 16
      %v669 = vrot.slane %v667, 7
      %v670 = vshll.u32 %v505, 16
      %v672 = vor.u32 %v669, %v670
      %v673 = vrot.slane %v669, 4
      %v675 = vshrl.u32 %v506, 16
      %v677 = vrot.slane %v675, 7
      %v678 = vshll.u32 %v506, 16
      %v680 = vor.u32 %v677, %v678
      %v681 = vsel %vm617, %v673, %v680
      %v683 = vshrl.u32 %v507, 16
      %v685 = vrot.slane %v683, 7
      %v686 = vshll.u32 %v507, 16
      %v688 = vor.u32 %v685, %v686
      %v689 = vrot.slane %v685, 4
      %v691 = vshrl.u32 %v508, 16
      %v693 = vrot.slane %v691, 7
      %v694 = vshll.u32 %v508, 16
      %v696 = vor.u32 %v693, %v694
      %v697 = vsel %vm617, %v689, %v696
      %v699 = vshrl.u32 %v509, 16
      %v701 = vrot.slane %v699, 7
      %v702 = vshll.u32 %v509, 16
      %v704 = vor.u32 %v701, %v702
      %v705 = vrot.slane %v701, 4
      %v707 = vshrl.u32 %v510, 16
      %v709 = vrot.slane %v707, 7
      %v710 = vshll.u32 %v510, 16
      %v712 = vor.u32 %v709, %v710
      %v713 = vsel %vm617, %v705, %v712
      %v715 = vshrl.u32 %v511, 16
      %v717 = vrot.slane %v715, 7
      %v718 = vshll.u32 %v511, 16
      %v720 = vor.u32 %v717, %v718
      %v721 = vrot.slane %v717, 4
      %v723 = vshrl.u32 %v512, 16
      %v725 = vrot.slane %v723, 7
      %v726 = vshll.u32 %v512, 16
      %v728 = vor.u32 %v725, %v726
      %v729 = vsel %vm617, %v721, %v728
      %v731 = vshrl.u32 %v513, 16
      %v733 = vrot.slane %v731, 7
      %v734 = vshll.u32 %v513, 16
      %v736 = vor.u32 %v733, %v734
      %v737 = vrot.slane %v733, 4
      %v739 = vshrl.u32 %v514, 16
      %v741 = vrot.slane %v739, 7
      %v742 = vshll.u32 %v514, 16
      %v744 = vor.u32 %v741, %v742
      %v745 = vsel %vm617, %v737, %v744
      %v747 = vshrl.u32 %v515, 16
      %v749 = vrot.slane %v747, 7
      %v750 = vshll.u32 %v515, 16
      %v752 = vor.u32 %v749, %v750
      %v753 = vrot.slane %v749, 4
      %v755 = vshrl.u32 %v516, 16
      %v757 = vrot.slane %v755, 7
      %v758 = vshll.u32 %v516, 16
      %v760 = vor.u32 %v757, %v758
      %v761 = vsel %vm617, %v753, %v760
      %v763 = vshrl.u32 %v517, 16
      %v765 = vrot.slane %v763, 7
      %v766 = vshll.u32 %v517, 16
      %v768 = vor.u32 %v765, %v766
      %v769 = vrot.slane %v765, 4
      %v771 = vshrl.u32 %v518, 16
      %v773 = vrot.slane %v771, 7
      %v774 = vshll.u32 %v518, 16
      %v776 = vor.u32 %v773, %v774
      %v777 = vsel %vm617, %v769, %v776
      %v779 = vshrl.u32 %v519, 16
      %v781 = vrot.slane %v779, 7
      %v782 = vshll.u32 %v519, 16
      %v784 = vor.u32 %v781, %v782
      %v785 = vrot.slane %v781, 4
      %v787 = vshrl.u32 %v520, 16
      %v789 = vrot.slane %v787, 7
      %v790 = vshll.u32 %v520, 16
      %v792 = vor.u32 %v789, %v790
      %v793 = vsel %vm617, %v785, %v792
      %v795 = vshrl.u32 %v521, 16
      %v797 = vrot.slane %v795, 7
      %v798 = vshll.u32 %v521, 16
      %v800 = vor.u32 %v797, %v798
      %v801 = vrot.slane %v797, 4
      %v803 = vshrl.u32 %v522, 16
      %v805 = vrot.slane %v803, 7
      %v806 = vshll.u32 %v522, 16
      %v808 = vor.u32 %v805, %v806
      %v809 = vsel %vm617, %v801, %v808
      %v811 = vshrl.u32 %v523, 16
      %v813 = vrot.slane %v811, 7
      %v814 = vshll.u32 %v523, 16
      %v816 = vor.u32 %v813, %v814
      %v817 = vrot.slane %v813, 4
      %v819 = vshrl.u32 %v524, 16
      %v821 = vrot.slane %v819, 7
      %v822 = vshll.u32 %v524, 16
      %v824 = vor.u32 %v821, %v822
      %v825 = vsel %vm617, %v817, %v824
      %v827 = vshrl.u32 %v525, 16
      %v829 = vrot.slane %v827, 7
      %v830 = vshll.u32 %v525, 16
      %v832 = vor.u32 %v829, %v830
      %v833 = vrot.slane %v829, 4
      %v835 = vshrl.u32 %v526, 16
      %v837 = vrot.slane %v835, 7
      %v838 = vshll.u32 %v526, 16
      %v840 = vor.u32 %v837, %v838
      %v841 = vsel %vm617, %v833, %v840
      %v843 = vshrl.u32 %v527, 16
      %v845 = vrot.slane %v843, 7
      %v846 = vshll.u32 %v527, 16
      %v848 = vor.u32 %v845, %v846
      %v849 = vrot.slane %v845, 4
      %v851 = vshrl.u32 %v528, 16
      %v853 = vrot.slane %v851, 7
      %v854 = vshll.u32 %v528, 16
      %v856 = vor.u32 %v853, %v854
      %v857 = vsel %vm617, %v849, %v856
      %v859 = vshrl.u32 %v529, 16
      %v861 = vrot.slane %v859, 7
      %v862 = vshll.u32 %v529, 16
      %v864 = vor.u32 %v861, %v862
      %v865 = vrot.slane %v861, 4
      %v867 = vshrl.u32 %v530, 16
      %v869 = vrot.slane %v867, 7
      %v870 = vshll.u32 %v530, 16
      %v872 = vor.u32 %v869, %v870
      %v873 = vsel %vm617, %v865, %v872
      %v875 = vshrl.u32 %v531, 16
      %v877 = vrot.slane %v875, 7
      %v878 = vshll.u32 %v531, 16
      %v880 = vor.u32 %v877, %v878
      %v881 = vrot.slane %v877, 4
      %v883 = vshrl.u32 %v532, 16
      %v885 = vrot.slane %v883, 7
      %v886 = vshll.u32 %v532, 16
      %v888 = vor.u32 %v885, %v886
      %v889 = vsel %vm617, %v881, %v888
      %v891 = vshrl.u32 %v533, 16
      %v893 = vrot.slane %v891, 7
      %v894 = vshll.u32 %v533, 16
      %v896 = vor.u32 %v893, %v894
      %v897 = vrot.slane %v893, 4
      %v899 = vshrl.u32 %v534, 16
      %v901 = vrot.slane %v899, 7
      %v902 = vshll.u32 %v534, 16
      %v904 = vor.u32 %v901, %v902
      %v905 = vsel %vm617, %v897, %v904
      %v907 = vshrl.u32 %v535, 16
      %v909 = vrot.slane %v907, 7
      %v910 = vshll.u32 %v535, 16
      %v912 = vor.u32 %v909, %v910
      %v913 = vrot.slane %v909, 4
      %v915 = vshrl.u32 %v536, 16
      %v917 = vrot.slane %v915, 7
      %v918 = vshll.u32 %v536, 16
      %v920 = vor.u32 %v917, %v918
      %v921 = vsel %vm617, %v913, %v920
      %v923 = vshrl.u32 %v537, 16
      %v925 = vrot.slane %v923, 7
      %v926 = vshll.u32 %v537, 16
      %v928 = vor.u32 %v925, %v926
      %v929 = vrot.slane %v925, 4
      %v931 = vshrl.u32 %v538, 16
      %v933 = vrot.slane %v931, 7
      %v934 = vshll.u32 %v538, 16
      %v936 = vor.u32 %v933, %v934
      %v937 = vsel %vm617, %v929, %v936
      %v939 = vshrl.u32 %v539, 16
      %v941 = vrot.slane %v939, 7
      %v942 = vshll.u32 %v539, 16
      %v944 = vor.u32 %v941, %v942
      %v945 = vrot.slane %v941, 4
      %v947 = vshrl.u32 %v540, 16
      %v949 = vrot.slane %v947, 7
      %v950 = vshll.u32 %v540, 16
      %v952 = vor.u32 %v949, %v950
      %v953 = vsel %vm617, %v945, %v952
      %v955 = vshrl.u32 %v541, 16
      %v957 = vrot.slane %v955, 7
      %v958 = vshll.u32 %v541, 16
      %v960 = vor.u32 %v957, %v958
      %v961 = vrot.slane %v957, 4
      %v963 = vshrl.u32 %v542, 16
      %v965 = vrot.slane %v963, 7
      %v966 = vshll.u32 %v542, 16
      %v968 = vor.u32 %v965, %v966
      %v969 = vsel %vm617, %v961, %v968
      %v971 = vshrl.u32 %v543, 16
      %v973 = vrot.slane %v971, 7
      %v974 = vshll.u32 %v543, 16
      %v976 = vor.u32 %v973, %v974
      %v977 = vrot.slane %v973, 4
      %v979 = vshrl.u32 %v544, 16
      %v981 = vrot.slane %v979, 7
      %v982 = vshll.u32 %v544, 16
      %v984 = vor.u32 %v981, %v982
      %v985 = vsel %vm617, %v977, %v984
      %v987 = vshrl.u32 %v545, 16
      %v989 = vrot.slane %v987, 7
      %v990 = vshll.u32 %v545, 16
      %v992 = vor.u32 %v989, %v990
      %v993 = vrot.slane %v989, 4
      %v995 = vshrl.u32 %v546, 16
      %v997 = vrot.slane %v995, 7
      %v998 = vshll.u32 %v546, 16
      %v1000 = vor.u32 %v997, %v998
      %v1001 = vsel %vm617, %v993, %v1000
      %v1003 = vshrl.u32 %v547, 16
      %v1005 = vrot.slane %v1003, 7
      %v1006 = vshll.u32 %v547, 16
      %v1008 = vor.u32 %v1005, %v1006
      %v1009 = vrot.slane %v1005, 4
      %v1011 = vshrl.u32 %v548, 16
      %v1013 = vrot.slane %v1011, 7
      %v1014 = vshll.u32 %v548, 16
      %v1016 = vor.u32 %v1013, %v1014
      %v1017 = vsel %vm617, %v1009, %v1016
      %v1019 = vshrl.u32 %v549, 16
      %v1021 = vrot.slane %v1019, 7
      %v1022 = vshll.u32 %v549, 16
      %v1024 = vor.u32 %v1021, %v1022
      %v1025 = vrot.slane %v1021, 4
      %v1027 = vshrl.u32 %v550, 16
      %v1029 = vrot.slane %v1027, 7
      %v1030 = vshll.u32 %v550, 16
      %v1032 = vor.u32 %v1029, %v1030
      %v1033 = vsel %vm617, %v1025, %v1032
      %v1035 = vshrl.u32 %v551, 16
      %v1037 = vrot.slane %v1035, 7
      %v1038 = vshll.u32 %v551, 16
      %v1040 = vor.u32 %v1037, %v1038
      %v1041 = vrot.slane %v1037, 4
      %v1043 = vshrl.u32 %v552, 16
      %v1045 = vrot.slane %v1043, 7
      %v1046 = vshll.u32 %v552, 16
      %v1048 = vor.u32 %v1045, %v1046
      %v1049 = vsel %vm617, %v1041, %v1048
      %v1051 = vshrl.u32 %v553, 16
      %v1053 = vrot.slane %v1051, 7
      %v1054 = vshll.u32 %v553, 16
      %v1056 = vor.u32 %v1053, %v1054
      %v1057 = vrot.slane %v1053, 4
      %v1059 = vshrl.u32 %v554, 16
      %v1061 = vrot.slane %v1059, 7
      %v1062 = vshll.u32 %v554, 16
      %v1064 = vor.u32 %v1061, %v1062
      %v1065 = vsel %vm617, %v1057, %v1064
      %v1067 = vshrl.u32 %v555, 16
      %v1069 = vrot.slane %v1067, 7
      %v1070 = vshll.u32 %v555, 16
      %v1072 = vor.u32 %v1069, %v1070
      %v1073 = vrot.slane %v1069, 4
      %v1075 = vshrl.u32 %v556, 16
      %v1077 = vrot.slane %v1075, 7
      %v1078 = vshll.u32 %v556, 16
      %v1080 = vor.u32 %v1077, %v1078
      %v1081 = vsel %vm617, %v1073, %v1080
      %v1083 = vshrl.u32 %v557, 16
      %v1085 = vrot.slane %v1083, 7
      %v1086 = vshll.u32 %v557, 16
      %v1088 = vor.u32 %v1085, %v1086
      %v1089 = vrot.slane %v1085, 4
      %v1091 = vshrl.u32 %v558, 16
      %v1093 = vrot.slane %v1091, 7
      %v1094 = vshll.u32 %v558, 16
      %v1096 = vor.u32 %v1093, %v1094
      %v1097 = vsel %vm617, %v1089, %v1096
      %v1099 = vshrl.u32 %v559, 16
      %v1101 = vrot.slane %v1099, 7
      %v1102 = vshll.u32 %v559, 16
      %v1104 = vor.u32 %v1101, %v1102
      %v1105 = vrot.slane %v1101, 4
      %v1107 = vshrl.u32 %v560, 16
      %v1109 = vrot.slane %v1107, 7
      %v1110 = vshll.u32 %v560, 16
      %v1112 = vor.u32 %v1109, %v1110
      %v1113 = vsel %vm617, %v1105, %v1112
      %v1115 = vshrl.u32 %v561, 16
      %v1117 = vrot.slane %v1115, 7
      %v1118 = vshll.u32 %v561, 16
      %v1120 = vor.u32 %v1117, %v1118
      %v1121 = vrot.slane %v1117, 4
      %v1123 = vshrl.u32 %v562, 16
      %v1125 = vrot.slane %v1123, 7
      %v1126 = vshll.u32 %v562, 16
      %v1128 = vor.u32 %v1125, %v1126
      %v1129 = vsel %vm617, %v1121, %v1128
      %v1131 = vshrl.u32 %v563, 16
      %v1133 = vrot.slane %v1131, 7
      %v1134 = vshll.u32 %v563, 16
      %v1136 = vor.u32 %v1133, %v1134
      %v1137 = vrot.slane %v1133, 4
      %v1139 = vshrl.u32 %v564, 16
      %v1141 = vrot.slane %v1139, 7
      %v1142 = vshll.u32 %v564, 16
      %v1144 = vor.u32 %v1141, %v1142
      %v1145 = vsel %vm617, %v1137, %v1144
      %v1147 = vshrl.u32 %v565, 16
      %v1149 = vrot.slane %v1147, 7
      %v1150 = vshll.u32 %v565, 16
      %v1152 = vor.u32 %v1149, %v1150
      %v1153 = vrot.slane %v1149, 4
      %v1155 = vshrl.u32 %v566, 16
      %v1157 = vrot.slane %v1155, 7
      %v1158 = vshll.u32 %v566, 16
      %v1160 = vor.u32 %v1157, %v1158
      %v1161 = vsel %vm617, %v1153, %v1160
      %v1163 = vshrl.u32 %v567, 16
      %v1165 = vrot.slane %v1163, 7
      %v1166 = vshll.u32 %v567, 16
      %v1168 = vor.u32 %v1165, %v1166
      %v1169 = vrot.slane %v1165, 4
      %v1171 = vshrl.u32 %v568, 16
      %v1173 = vrot.slane %v1171, 7
      %v1174 = vshll.u32 %v568, 16
      %v1176 = vor.u32 %v1173, %v1174
      %v1177 = vsel %vm617, %v1169, %v1176
      %v1179 = vshrl.u32 %v569, 16
      %v1181 = vrot.slane %v1179, 7
      %v1182 = vshll.u32 %v569, 16
      %v1184 = vor.u32 %v1181, %v1182
      %v1185 = vrot.slane %v1181, 4
      %v1187 = vshrl.u32 %v570, 16
      %v1189 = vrot.slane %v1187, 7
      %v1190 = vshll.u32 %v570, 16
      %v1192 = vor.u32 %v1189, %v1190
      %v1193 = vsel %vm617, %v1185, %v1192
      %v1195 = vshrl.u32 %v571, 16
      %v1197 = vrot.slane %v1195, 7
      %v1198 = vshll.u32 %v571, 16
      %v1200 = vor.u32 %v1197, %v1198
      %v1201 = vrot.slane %v1197, 4
      %v1203 = vshrl.u32 %v572, 16
      %v1205 = vrot.slane %v1203, 7
      %v1206 = vshll.u32 %v572, 16
      %v1208 = vor.u32 %v1205, %v1206
      %v1209 = vsel %vm617, %v1201, %v1208
      %v1211 = vshrl.u32 %v573, 16
      %v1213 = vrot.slane %v1211, 7
      %v1214 = vshll.u32 %v573, 16
      %v1216 = vor.u32 %v1213, %v1214
      %v1217 = vrot.slane %v1213, 4
      %v1219 = vshrl.u32 %v574, 16
      %v1221 = vrot.slane %v1219, 7
      %v1222 = vshll.u32 %v574, 16
      %v1224 = vor.u32 %v1221, %v1222
      %v1225 = vsel %vm617, %v1217, %v1224
      %v1227 = vshrl.u32 %v575, 16
      %v1229 = vrot.slane %v1227, 7
      %v1230 = vshll.u32 %v575, 16
      %v1232 = vor.u32 %v1229, %v1230
      %v1233 = vrot.slane %v1229, 4
      %v1235 = vshrl.u32 %v576, 16
      %v1237 = vrot.slane %v1235, 7
      %v1238 = vshll.u32 %v576, 16
      %v1240 = vor.u32 %v1237, %v1238
      %v1241 = vsel %vm617, %v1233, %v1240
      %v1243 = vshrl.u32 %v577, 16
      %v1245 = vrot.slane %v1243, 7
      %v1246 = vshll.u32 %v577, 16
      %v1248 = vor.u32 %v1245, %v1246
      %v1249 = vrot.slane %v1245, 4
      %v1251 = vshrl.u32 %v578, 16
      %v1253 = vrot.slane %v1251, 7
      %v1254 = vshll.u32 %v578, 16
      %v1256 = vor.u32 %v1253, %v1254
      %v1257 = vsel %vm617, %v1249, %v1256
      %v1259 = vshrl.u32 %v579, 16
      %v1261 = vrot.slane %v1259, 7
      %v1262 = vshll.u32 %v579, 16
      %v1264 = vor.u32 %v1261, %v1262
      %v1265 = vrot.slane %v1261, 4
      %v1267 = vshrl.u32 %v580, 16
      %v1269 = vrot.slane %v1267, 7
      %v1270 = vshll.u32 %v580, 16
      %v1272 = vor.u32 %v1269, %v1270
      %v1273 = vsel %vm617, %v1265, %v1272
      %v1275 = vshrl.u32 %v581, 16
      %v1277 = vrot.slane %v1275, 7
      %v1278 = vshll.u32 %v581, 16
      %v1280 = vor.u32 %v1277, %v1278
      %v1281 = vrot.slane %v1277, 4
      %v1283 = vshrl.u32 %v582, 16
      %v1285 = vrot.slane %v1283, 7
      %v1286 = vshll.u32 %v582, 16
      %v1288 = vor.u32 %v1285, %v1286
      %v1289 = vsel %vm617, %v1281, %v1288
      %v1291 = vshrl.u32 %v583, 16
      %v1293 = vrot.slane %v1291, 7
      %v1294 = vshll.u32 %v583, 16
      %v1296 = vor.u32 %v1293, %v1294
      %v1297 = vrot.slane %v1293, 4
      %v1299 = vshrl.u32 %v584, 16
      %v1301 = vrot.slane %v1299, 7
      %v1302 = vshll.u32 %v584, 16
      %v1304 = vor.u32 %v1301, %v1302
      %v1305 = vsel %vm617, %v1297, %v1304
      %v1307 = vshrl.u32 %v585, 16
      %v1309 = vrot.slane %v1307, 7
      %v1310 = vshll.u32 %v585, 16
      %v1312 = vor.u32 %v1309, %v1310
      %v1313 = vrot.slane %v1309, 4
      %v1315 = vshrl.u32 %v586, 16
      %v1317 = vrot.slane %v1315, 7
      %v1318 = vshll.u32 %v586, 16
      %v1320 = vor.u32 %v1317, %v1318
      %v1321 = vsel %vm617, %v1313, %v1320
      %v1323 = vshrl.u32 %v587, 16
      %v1325 = vrot.slane %v1323, 7
      %v1326 = vshll.u32 %v587, 16
      %v1328 = vor.u32 %v1325, %v1326
      %v1329 = vrot.slane %v1325, 4
      %v1331 = vshrl.u32 %v588, 16
      %v1333 = vrot.slane %v1331, 7
      %v1334 = vshll.u32 %v588, 16
      %v1336 = vor.u32 %v1333, %v1334
      %v1337 = vsel %vm617, %v1329, %v1336
      %v1339 = vshrl.u32 %v589, 16
      %v1341 = vrot.slane %v1339, 7
      %v1342 = vshll.u32 %v589, 16
      %v1344 = vor.u32 %v1341, %v1342
      %v1345 = vrot.slane %v1341, 4
      %v1347 = vshrl.u32 %v590, 16
      %v1349 = vrot.slane %v1347, 7
      %v1350 = vshll.u32 %v590, 16
      %v1352 = vor.u32 %v1349, %v1350
      %v1353 = vsel %vm617, %v1345, %v1352
      %v1355 = vshrl.u32 %v591, 16
      %v1357 = vrot.slane %v1355, 7
      %v1358 = vshll.u32 %v591, 16
      %v1360 = vor.u32 %v1357, %v1358
      %v1361 = vrot.slane %v1357, 4
      %v1363 = vshrl.u32 %v592, 16
      %v1365 = vrot.slane %v1363, 7
      %v1366 = vshll.u32 %v592, 16
      %v1368 = vor.u32 %v1365, %v1366
      %v1369 = vsel %vm617, %v1361, %v1368
      %v1371 = vshrl.u32 %v593, 16
      %v1373 = vrot.slane %v1371, 7
      %v1374 = vshll.u32 %v593, 16
      %v1376 = vor.u32 %v1373, %v1374
      %v1377 = vrot.slane %v1373, 4
      %v1379 = vshrl.u32 %v594, 16
      %v1381 = vrot.slane %v1379, 7
      %v1382 = vshll.u32 %v594, 16
      %v1384 = vor.u32 %v1381, %v1382
      %v1385 = vsel %vm617, %v1377, %v1384
      %v1387 = vshrl.u32 %v595, 16
      %v1389 = vrot.slane %v1387, 7
      %v1390 = vshll.u32 %v595, 16
      %v1392 = vor.u32 %v1389, %v1390
      %v1393 = vrot.slane %v1389, 4
      %v1395 = vshrl.u32 %v596, 16
      %v1397 = vrot.slane %v1395, 7
      %v1398 = vshll.u32 %v596, 16
      %v1400 = vor.u32 %v1397, %v1398
      %v1401 = vsel %vm617, %v1393, %v1400
      %v1403 = vshrl.u32 %v597, 16
      %v1405 = vrot.slane %v1403, 7
      %v1406 = vshll.u32 %v597, 16
      %v1408 = vor.u32 %v1405, %v1406
      %v1409 = vrot.slane %v1405, 4
      %v1411 = vshrl.u32 %v598, 16
      %v1413 = vrot.slane %v1411, 7
      %v1414 = vshll.u32 %v598, 16
      %v1416 = vor.u32 %v1413, %v1414
      %v1417 = vsel %vm617, %v1409, %v1416
      %v1419 = vshrl.u32 %v599, 16
      %v1421 = vrot.slane %v1419, 7
      %v1422 = vshll.u32 %v599, 16
      %v1424 = vor.u32 %v1421, %v1422
      %v1425 = vrot.slane %v1421, 4
      %v1427 = vshrl.u32 %v600, 16
      %v1429 = vrot.slane %v1427, 7
      %v1430 = vshll.u32 %v600, 16
      %v1432 = vor.u32 %v1429, %v1430
      %v1433 = vsel %vm617, %v1425, %v1432
      %v1435 = vshrl.u32 %v601, 16
      %v1437 = vrot.slane %v1435, 7
      %v1438 = vshll.u32 %v601, 16
      %v1440 = vor.u32 %v1437, %v1438
      %v1441 = vrot.slane %v1437, 4
      %v1443 = vshrl.u32 %v602, 16
      %v1445 = vrot.slane %v1443, 7
      %v1446 = vshll.u32 %v602, 16
      %v1448 = vor.u32 %v1445, %v1446
      %v1449 = vsel %vm617, %v1441, %v1448
      %v1451 = vshrl.u32 %v603, 16
      %v1453 = vrot.slane %v1451, 7
      %v1454 = vshll.u32 %v603, 16
      %v1456 = vor.u32 %v1453, %v1454
      %v1457 = vrot.slane %v1453, 4
      %v1459 = vshrl.u32 %v604, 16
      %v1461 = vrot.slane %v1459, 7
      %v1462 = vshll.u32 %v604, 16
      %v1464 = vor.u32 %v1461, %v1462
      %v1465 = vsel %vm617, %v1457, %v1464
      %v1467 = vshrl.u32 %v605, 16
      %v1469 = vrot.slane %v1467, 7
      %v1470 = vshll.u32 %v605, 16
      %v1472 = vor.u32 %v1469, %v1470
      %v1473 = vrot.slane %v1469, 4
      %v1475 = vshrl.u32 %v606, 16
      %v1477 = vrot.slane %v1475, 7
      %v1478 = vshll.u32 %v606, 16
      %v1480 = vor.u32 %v1477, %v1478
      %v1481 = vsel %vm617, %v1473, %v1480
      %v1483 = vshrl.u32 %v607, 16
      %v1485 = vrot.slane %v1483, 7
      %v1486 = vshll.u32 %v607, 16
      %v1488 = vor.u32 %v1485, %v1486
      %v1489 = vrot.slane %v1485, 4
      %v1491 = vshrl.u32 %v608, 16
      %v1493 = vrot.slane %v1491, 7
      %v1494 = vshll.u32 %v608, 16
      %v1496 = vor.u32 %v1493, %v1494
      %v1497 = vsel %vm617, %v1489, %v1496
      %v1499 = vshrl.u32 %v609, 16
      %v1501 = vrot.slane %v1499, 7
      %v1502 = vshll.u32 %v609, 16
      %v1504 = vor.u32 %v1501, %v1502
      %v1505 = vrot.slane %v1501, 4
      %v1507 = vshrl.u32 %v610, 16
      %v1509 = vrot.slane %v1507, 7
      %v1510 = vshll.u32 %v610, 16
      %v1512 = vor.u32 %v1509, %v1510
      %v1513 = vsel %vm617, %v1505, %v1512
      %v1515 = vshrl.u32 %v611, 16
      %v1517 = vrot.slane %v1515, 7
      %v1518 = vshll.u32 %v611, 16
      %v1520 = vor.u32 %v1517, %v1518
      %v1521 = vrot.slane %v1517, 4
      %v1523 = vshrl.u32 %v612, 16
      %v1525 = vrot.slane %v1523, 7
      %v1526 = vshll.u32 %v612, 16
      %v1528 = vor.u32 %v1525, %v1526
      %v1529 = vsel %vm617, %v1521, %v1528
      %v1531 = vshrl.u32 %v613, 16
      %v1533 = vrot.slane %v1531, 7
      %v1534 = vshll.u32 %v613, 16
      %v1536 = vor.u32 %v1533, %v1534
      %v1537 = vrot.slane %v1533, 4
      %v1539 = vshrl.u32 %v614, 16
      %v1541 = vrot.slane %v1539, 7
      %v1542 = vshll.u32 %v614, 16
      %v1544 = vor.u32 %v1541, %v1542
      %v1545 = vsel %vm617, %v1537, %v1544
      %1546 = vrot.lane.b32.xlu0 %v624, 112
      %v1547 = vpop.permute.xlu0 %1546
      %1548 = vrot.lane.b32.xlu0 %v633, 112
      %v1549 = vpop.permute.xlu0 %1548
      %1550 = vrot.lane.b32.xlu0 %v640, 112
      %v1551 = vpop.permute.xlu0 %1550
      %1552 = vrot.lane.b32.xlu0 %v649, 112
      %v1553 = vpop.permute.xlu0 %1552
      %1554 = vrot.lane.b32.xlu0 %v656, 112
      %v1555 = vpop.permute.xlu0 %1554
      %1556 = vrot.lane.b32.xlu0 %v665, 112
      %v1557 = vpop.permute.xlu0 %1556
      %1558 = vrot.lane.b32.xlu0 %v672, 112
      %v1559 = vpop.permute.xlu0 %1558
      %1560 = vrot.lane.b32.xlu0 %v681, 112
      %v1561 = vpop.permute.xlu0 %1560
      %1562 = vrot.lane.b32.xlu0 %v688, 112
      %v1563 = vpop.permute.xlu0 %1562
      %1564 = vrot.lane.b32.xlu0 %v697, 112
      %v1565 = vpop.permute.xlu0 %1564
      %1566 = vrot.lane.b32.xlu0 %v704, 112
      %v1567 = vpop.permute.xlu0 %1566
      %1568 = vrot.lane.b32.xlu0 %v713, 112
      %v1569 = vpop.permute.xlu0 %1568
      %1570 = vrot.lane.b32.xlu0 %v720, 112
      %v1571 = vpop.permute.xlu0 %1570
      %1572 = vrot.lane.b32.xlu0 %v729, 112
      %v1573 = vpop.permute.xlu0 %1572
      %1574 = vrot.lane.b32.xlu0 %v736, 112
      %v1575 = vpop.permute.xlu0 %1574
      %1576 = vrot.lane.b32.xlu0 %v745, 112
      %v1577 = vpop.permute.xlu0 %1576
      %1578 = vrot.lane.b32.xlu0 %v752, 112
      %v1579 = vpop.permute.xlu0 %1578
      %1580 = vrot.lane.b32.xlu0 %v761, 112
      %v1581 = vpop.permute.xlu0 %1580
      %1582 = vrot.lane.b32.xlu0 %v768, 112
      %v1583 = vpop.permute.xlu0 %1582
      %1584 = vrot.lane.b32.xlu0 %v777, 112
      %v1585 = vpop.permute.xlu0 %1584
      %1586 = vrot.lane.b32.xlu0 %v784, 112
      %v1587 = vpop.permute.xlu0 %1586
      %1588 = vrot.lane.b32.xlu0 %v793, 112
      %v1589 = vpop.permute.xlu0 %1588
      %1590 = vrot.lane.b32.xlu0 %v800, 112
      %v1591 = vpop.permute.xlu0 %1590
      %1592 = vrot.lane.b32.xlu0 %v809, 112
      %v1593 = vpop.permute.xlu0 %1592
      %1594 = vrot.lane.b32.xlu0 %v816, 112
      %v1595 = vpop.permute.xlu0 %1594
      %1596 = vrot.lane.b32.xlu0 %v825, 112
      %v1597 = vpop.permute.xlu0 %1596
      %1598 = vrot.lane.b32.xlu0 %v832, 112
      %v1599 = vpop.permute.xlu0 %1598
      %1600 = vrot.lane.b32.xlu0 %v841, 112
      %v1601 = vpop.permute.xlu0 %1600
      %1602 = vrot.lane.b32.xlu0 %v848, 112
      %v1603 = vpop.permute.xlu0 %1602
      %1604 = vrot.lane.b32.xlu0 %v857, 112
      %v1605 = vpop.permute.xlu0 %1604
      %1606 = vrot.lane.b32.xlu0 %v864, 112
      %v1607 = vpop.permute.xlu0 %1606
      %1608 = vrot.lane.b32.xlu0 %v873, 112
      %v1609 = vpop.permute.xlu0 %1608
      %1610 = vrot.lane.b32.xlu0 %v880, 112
      %v1611 = vpop.permute.xlu0 %1610
      %1612 = vrot.lane.b32.xlu0 %v889, 112
      %v1613 = vpop.permute.xlu0 %1612
      %1614 = vrot.lane.b32.xlu0 %v896, 112
      %v1615 = vpop.permute.xlu0 %1614
      %1616 = vrot.lane.b32.xlu0 %v905, 112
      %v1617 = vpop.permute.xlu0 %1616
      %1618 = vrot.lane.b32.xlu0 %v912, 112
      %v1619 = vpop.permute.xlu0 %1618
      %1620 = vrot.lane.b32.xlu0 %v921, 112
      %v1621 = vpop.permute.xlu0 %1620
      %1622 = vrot.lane.b32.xlu0 %v928, 112
      %v1623 = vpop.permute.xlu0 %1622
      %1624 = vrot.lane.b32.xlu0 %v937, 112
      %v1625 = vpop.permute.xlu0 %1624
      %1626 = vrot.lane.b32.xlu0 %v944, 112
      %v1627 = vpop.permute.xlu0 %1626
      %1628 = vrot.lane.b32.xlu0 %v953, 112
      %v1629 = vpop.permute.xlu0 %1628
      %1630 = vrot.lane.b32.xlu0 %v960, 112
      %v1631 = vpop.permute.xlu0 %1630
      %1632 = vrot.lane.b32.xlu0 %v969, 112
      %v1633 = vpop.permute.xlu0 %1632
      %1634 = vrot.lane.b32.xlu0 %v976, 112
      %v1635 = vpop.permute.xlu0 %1634
      %1636 = vrot.lane.b32.xlu0 %v985, 112
      %v1637 = vpop.permute.xlu0 %1636
      %1638 = vrot.lane.b32.xlu0 %v992, 112
      %v1639 = vpop.permute.xlu0 %1638
      %1640 = vrot.lane.b32.xlu0 %v1001, 112
      %v1641 = vpop.permute.xlu0 %1640
      %1642 = vrot.lane.b32.xlu0 %v1008, 112
      %v1643 = vpop.permute.xlu0 %1642
      %1644 = vrot.lane.b32.xlu0 %v1017, 112
      %v1645 = vpop.permute.xlu0 %1644
      %1646 = vrot.lane.b32.xlu0 %v1024, 112
      %v1647 = vpop.permute.xlu0 %1646
      %1648 = vrot.lane.b32.xlu0 %v1033, 112
      %v1649 = vpop.permute.xlu0 %1648
      %1650 = vrot.lane.b32.xlu0 %v1040, 112
      %v1651 = vpop.permute.xlu0 %1650
      %1652 = vrot.lane.b32.xlu0 %v1049, 112
      %v1653 = vpop.permute.xlu0 %1652
      %1654 = vrot.lane.b32.xlu0 %v1056, 112
      %v1655 = vpop.permute.xlu0 %1654
      %1656 = vrot.lane.b32.xlu0 %v1065, 112
      %v1657 = vpop.permute.xlu0 %1656
      %1658 = vrot.lane.b32.xlu0 %v1072, 112
      %v1659 = vpop.permute.xlu0 %1658
      %1660 = vrot.lane.b32.xlu0 %v1081, 112
      %v1661 = vpop.permute.xlu0 %1660
      %1662 = vrot.lane.b32.xlu0 %v1088, 112
      %v1663 = vpop.permute.xlu0 %1662
      %1664 = vrot.lane.b32.xlu0 %v1097, 112
      %v1665 = vpop.permute.xlu0 %1664
      %1666 = vrot.lane.b32.xlu0 %v1104, 112
      %v1667 = vpop.permute.xlu0 %1666
      %1668 = vrot.lane.b32.xlu0 %v1113, 112
      %v1669 = vpop.permute.xlu0 %1668
      %1670 = vrot.lane.b32.xlu0 %v1120, 112
      %v1671 = vpop.permute.xlu0 %1670
      %1672 = vrot.lane.b32.xlu0 %v1129, 112
      %v1673 = vpop.permute.xlu0 %1672
      %1674 = vrot.lane.b32.xlu0 %v1136, 112
      %v1675 = vpop.permute.xlu0 %1674
      %1676 = vrot.lane.b32.xlu0 %v1145, 112
      %v1677 = vpop.permute.xlu0 %1676
      %1678 = vrot.lane.b32.xlu0 %v1152, 112
      %v1679 = vpop.permute.xlu0 %1678
      %1680 = vrot.lane.b32.xlu0 %v1161, 112
      %v1681 = vpop.permute.xlu0 %1680
      %1682 = vrot.lane.b32.xlu0 %v1168, 112
      %v1683 = vpop.permute.xlu0 %1682
      %1684 = vrot.lane.b32.xlu0 %v1177, 112
      %v1685 = vpop.permute.xlu0 %1684
      %1686 = vrot.lane.b32.xlu0 %v1184, 112
      %v1687 = vpop.permute.xlu0 %1686
      %1688 = vrot.lane.b32.xlu0 %v1193, 112
      %v1689 = vpop.permute.xlu0 %1688
      %1690 = vrot.lane.b32.xlu0 %v1200, 112
      %v1691 = vpop.permute.xlu0 %1690
      %1692 = vrot.lane.b32.xlu0 %v1209, 112
      %v1693 = vpop.permute.xlu0 %1692
      %1694 = vrot.lane.b32.xlu0 %v1216, 112
      %v1695 = vpop.permute.xlu0 %1694
      %1696 = vrot.lane.b32.xlu0 %v1225, 112
      %v1697 = vpop.permute.xlu0 %1696
      %1698 = vrot.lane.b32.xlu0 %v1232, 112
      %v1699 = vpop.permute.xlu0 %1698
      %1700 = vrot.lane.b32.xlu0 %v1241, 112
      %v1701 = vpop.permute.xlu0 %1700
      %1702 = vrot.lane.b32.xlu0 %v1248, 112
      %v1703 = vpop.permute.xlu0 %1702
      %1704 = vrot.lane.b32.xlu0 %v1257, 112
      %v1705 = vpop.permute.xlu0 %1704
      %1706 = vrot.lane.b32.xlu0 %v1264, 112
      %v1707 = vpop.permute.xlu0 %1706
      %1708 = vrot.lane.b32.xlu0 %v1273, 112
      %v1709 = vpop.permute.xlu0 %1708
      %1710 = vrot.lane.b32.xlu0 %v1280, 112
      %v1711 = vpop.permute.xlu0 %1710
      %1712 = vrot.lane.b32.xlu0 %v1289, 112
      %v1713 = vpop.permute.xlu0 %1712
      %1714 = vrot.lane.b32.xlu0 %v1296, 112
      %v1715 = vpop.permute.xlu0 %1714
      %1716 = vrot.lane.b32.xlu0 %v1305, 112
      %v1717 = vpop.permute.xlu0 %1716
      %1718 = vrot.lane.b32.xlu0 %v1312, 112
      %v1719 = vpop.permute.xlu0 %1718
      %1720 = vrot.lane.b32.xlu0 %v1321, 112
      %v1721 = vpop.permute.xlu0 %1720
      %1722 = vrot.lane.b32.xlu0 %v1328, 112
      %v1723 = vpop.permute.xlu0 %1722
      %1724 = vrot.lane.b32.xlu0 %v1337, 112
      %v1725 = vpop.permute.xlu0 %1724
      %1726 = vrot.lane.b32.xlu0 %v1344, 112
      %v1727 = vpop.permute.xlu0 %1726
      %1728 = vrot.lane.b32.xlu0 %v1353, 112
      %v1729 = vpop.permute.xlu0 %1728
      %1730 = vrot.lane.b32.xlu0 %v1360, 112
      %v1731 = vpop.permute.xlu0 %1730
      %1732 = vrot.lane.b32.xlu0 %v1369, 112
      %v1733 = vpop.permute.xlu0 %1732
      %1734 = vrot.lane.b32.xlu0 %v1376, 112
      %v1735 = vpop.permute.xlu0 %1734
      %1736 = vrot.lane.b32.xlu0 %v1385, 112
      %v1737 = vpop.permute.xlu0 %1736
      %1738 = vrot.lane.b32.xlu0 %v1392, 112
      %v1739 = vpop.permute.xlu0 %1738
      %1740 = vrot.lane.b32.xlu0 %v1401, 112
      %v1741 = vpop.permute.xlu0 %1740
      %1742 = vrot.lane.b32.xlu0 %v1408, 112
      %v1743 = vpop.permute.xlu0 %1742
      %1744 = vrot.lane.b32.xlu0 %v1417, 112
      %v1745 = vpop.permute.xlu0 %1744
      %1746 = vrot.lane.b32.xlu0 %v1424, 112
      %v1747 = vpop.permute.xlu0 %1746
      %1748 = vrot.lane.b32.xlu0 %v1433, 112
      %v1749 = vpop.permute.xlu0 %1748
      %1750 = vrot.lane.b32.xlu0 %v1440, 112
      %v1751 = vpop.permute.xlu0 %1750
      %1752 = vrot.lane.b32.xlu0 %v1449, 112
      %v1753 = vpop.permute.xlu0 %1752
      %1754 = vrot.lane.b32.xlu0 %v1456, 112
      %v1755 = vpop.permute.xlu0 %1754
      %1756 = vrot.lane.b32.xlu0 %v1465, 112
      %v1757 = vpop.permute.xlu0 %1756
      %1758 = vrot.lane.b32.xlu0 %v1472, 112
      %v1759 = vpop.permute.xlu0 %1758
      %1760 = vrot.lane.b32.xlu0 %v1481, 112
      %v1761 = vpop.permute.xlu0 %1760
      %1762 = vrot.lane.b32.xlu0 %v1488, 112
      %v1763 = vpop.permute.xlu0 %1762
      %1764 = vrot.lane.b32.xlu0 %v1497, 112
      %v1765 = vpop.permute.xlu0 %1764
      %1766 = vrot.lane.b32.xlu0 %v1504, 112
      %v1767 = vpop.permute.xlu0 %1766
      %1768 = vrot.lane.b32.xlu0 %v1513, 112
      %v1769 = vpop.permute.xlu0 %1768
      %1770 = vrot.lane.b32.xlu0 %v1520, 112
      %v1771 = vpop.permute.xlu0 %1770
      %1772 = vrot.lane.b32.xlu0 %v1529, 112
      %v1773 = vpop.permute.xlu0 %1772
      %1774 = vrot.lane.b32.xlu0 %v1536, 112
      %v1775 = vpop.permute.xlu0 %1774
      %1776 = vrot.lane.b32.xlu0 %v1545, 112
      %v1777 = vpop.permute.xlu0 %1776
      %vm1894 = vcmask 125952
      %vm1895 = vsmask.f32 7938
      %vm1896 = vmand %vm1894, %vm1895
      %v1897 = vsel %vm1896, %v1547, %v499
      %1898 = vst [vmem:[#allocation2] sm:$0xf] %v1897
      %vm1899 = vcmask 125952
      %1900 = vst.msk [vmem:[#allocation2 + $0x4] sm:$0xf] %vm1899, %v1549
      %v1901 = vld [vmem:[#allocation2 + $0x8] sm:$0xf]
      %v1902 = vsel %vm1896, %v1551, %v1901
      %1903 = vst [vmem:[#allocation2 + $0x8] sm:$0xf] %v1902
      %1904 = vst.msk [vmem:[#allocation2 + $0xc] sm:$0xf] %vm1899, %v1553
      %v1905 = vld [vmem:[#allocation2 + $0x10] sm:$0xf]
      %v1906 = vsel %vm1896, %v1555, %v1905
      %1907 = vst [vmem:[#allocation2 + $0x10] sm:$0xf] %v1906
      %1908 = vst.msk [vmem:[#allocation2 + $0x14] sm:$0xf] %vm1899, %v1557
      %v1909 = vld [vmem:[#allocation2 + $0x18] sm:$0xf]
      %v1910 = vsel %vm1896, %v1559, %v1909
      %1911 = vst [vmem:[#allocation2 + $0x18] sm:$0xf] %v1910
      %1912 = vst.msk [vmem:[#allocation2 + $0x1c] sm:$0xf] %vm1899, %v1561
      %v1913 = vld [vmem:[#allocation2 + $0x20] sm:$0xf]
      %v1914 = vsel %vm1896, %v1563, %v1913
      %1915 = vst [vmem:[#allocation2 + $0x20] sm:$0xf] %v1914
      %1916 = vst.msk [vmem:[#allocation2 + $0x24] sm:$0xf] %vm1899, %v1565
      %v1917 = vld [vmem:[#allocation2 + $0x28] sm:$0xf]
      %v1918 = vsel %vm1896, %v1567, %v1917
      %1919 = vst [vmem:[#allocation2 + $0x28] sm:$0xf] %v1918
      %1920 = vst.msk [vmem:[#allocation2 + $0x2c] sm:$0xf] %vm1899, %v1569
      %v1921 = vld [vmem:[#allocation2 + $0x30] sm:$0xf]
      %v1922 = vsel %vm1896, %v1571, %v1921
      %1923 = vst [vmem:[#allocation2 + $0x30] sm:$0xf] %v1922
      %1924 = vst.msk [vmem:[#allocation2 + $0x34] sm:$0xf] %vm1899, %v1573
      %v1925 = vld [vmem:[#allocation2 + $0x38] sm:$0xf]
      %v1926 = vsel %vm1896, %v1575, %v1925
      %1927 = vst [vmem:[#allocation2 + $0x38] sm:$0xf] %v1926
      %1928 = vst.msk [vmem:[#allocation2 + $0x3c] sm:$0xf] %vm1899, %v1577
      %v1929 = vld [vmem:[#allocation2 + $0x40] sm:$0xf]
      %v1930 = vsel %vm1896, %v1579, %v1929
      %1931 = vst [vmem:[#allocation2 + $0x40] sm:$0xf] %v1930
      %1932 = vst.msk [vmem:[#allocation2 + $0x44] sm:$0xf] %vm1899, %v1581
      %v1933 = vld [vmem:[#allocation2 + $0x48] sm:$0xf]
      %v1934 = vsel %vm1896, %v1583, %v1933
      %1935 = vst [vmem:[#allocation2 + $0x48] sm:$0xf] %v1934
      %1936 = vst.msk [vmem:[#allocation2 + $0x4c] sm:$0xf] %vm1899, %v1585
      %v1937 = vld [vmem:[#allocation2 + $0x50] sm:$0xf]
      %v1938 = vsel %vm1896, %v1587, %v1937
      %1939 = vst [vmem:[#allocation2 + $0x50] sm:$0xf] %v1938
      %1940 = vst.msk [vmem:[#allocation2 + $0x54] sm:$0xf] %vm1899, %v1589
      %v1941 = vld [vmem:[#allocation2 + $0x58] sm:$0xf]
      %v1942 = vsel %vm1896, %v1591, %v1941
      %1943 = vst [vmem:[#allocation2 + $0x58] sm:$0xf] %v1942
      %1944 = vst.msk [vmem:[#allocation2 + $0x5c] sm:$0xf] %vm1899, %v1593
      %v1945 = vld [vmem:[#allocation2 + $0x60] sm:$0xf]
      %v1946 = vsel %vm1896, %v1595, %v1945
      %1947 = vst [vmem:[#allocation2 + $0x60] sm:$0xf] %v1946
      %1948 = vst.msk [vmem:[#allocation2 + $0x64] sm:$0xf] %vm1899, %v1597
      %v1949 = vld [vmem:[#allocation2 + $0x68] sm:$0xf]
      %v1950 = vsel %vm1896, %v1599, %v1949
      %1951 = vst [vmem:[#allocation2 + $0x68] sm:$0xf] %v1950
      %1952 = vst.msk [vmem:[#allocation2 + $0x6c] sm:$0xf] %vm1899, %v1601
      %v1953 = vld [vmem:[#allocation2 + $0x70] sm:$0xf]
      %v1954 = vsel %vm1896, %v1603, %v1953
      %1955 = vst [vmem:[#allocation2 + $0x70] sm:$0xf] %v1954
      %1956 = vst.msk [vmem:[#allocation2 + $0x74] sm:$0xf] %vm1899, %v1605
      %v1957 = vld [vmem:[#allocation2 + $0x78] sm:$0xf]
      %v1958 = vsel %vm1896, %v1607, %v1957
      %1959 = vst [vmem:[#allocation2 + $0x78] sm:$0xf] %v1958
      %1960 = vst.msk [vmem:[#allocation2 + $0x7c] sm:$0xf] %vm1899, %v1609
      %v1961 = vld [vmem:[#allocation2 + $0x80] sm:$0xf]
      %v1962 = vsel %vm1896, %v1611, %v1961
      %1963 = vst [vmem:[#allocation2 + $0x80] sm:$0xf] %v1962
      %1964 = vst.msk [vmem:[#allocation2 + $0x84] sm:$0xf] %vm1899, %v1613
      %v1965 = vld [vmem:[#allocation2 + $0x88] sm:$0xf]
      %v1966 = vsel %vm1896, %v1615, %v1965
      %1967 = vst [vmem:[#allocation2 + $0x88] sm:$0xf] %v1966
      %1968 = vst.msk [vmem:[#allocation2 + $0x8c] sm:$0xf] %vm1899, %v1617
      %v1969 = vld [vmem:[#allocation2 + $0x90] sm:$0xf]
      %v1970 = vsel %vm1896, %v1619, %v1969
      %1971 = vst [vmem:[#allocation2 + $0x90] sm:$0xf] %v1970
      %1972 = vst.msk [vmem:[#allocation2 + $0x94] sm:$0xf] %vm1899, %v1621
      %v1973 = vld [vmem:[#allocation2 + $0x98] sm:$0xf]
      %v1974 = vsel %vm1896, %v1623, %v1973
      %1975 = vst [vmem:[#allocation2 + $0x98] sm:$0xf] %v1974
      %1976 = vst.msk [vmem:[#allocation2 + $0x9c] sm:$0xf] %vm1899, %v1625
      %v1977 = vld [vmem:[#allocation2 + $0xa0] sm:$0xf]
      %v1978 = vsel %vm1896, %v1627, %v1977
      %1979 = vst [vmem:[#allocation2 + $0xa0] sm:$0xf] %v1978
      %1980 = vst.msk [vmem:[#allocation2 + $0xa4] sm:$0xf] %vm1899, %v1629
      %v1981 = vld [vmem:[#allocation2 + $0xa8] sm:$0xf]
      %v1982 = vsel %vm1896, %v1631, %v1981
      %1983 = vst [vmem:[#allocation2 + $0xa8] sm:$0xf] %v1982
      %1984 = vst.msk [vmem:[#allocation2 + $0xac] sm:$0xf] %vm1899, %v1633
      %v1985 = vld [vmem:[#allocation2 + $0xb0] sm:$0xf]
      %v1986 = vsel %vm1896, %v1635, %v1985
      %1987 = vst [vmem:[#allocation2 + $0xb0] sm:$0xf] %v1986
      %1988 = vst.msk [vmem:[#allocation2 + $0xb4] sm:$0xf] %vm1899, %v1637
      %v1989 = vld [vmem:[#allocation2 + $0xb8] sm:$0xf]
      %v1990 = vsel %vm1896, %v1639, %v1989
      %1991 = vst [vmem:[#allocation2 + $0xb8] sm:$0xf] %v1990
      %1992 = vst.msk [vmem:[#allocation2 + $0xbc] sm:$0xf] %vm1899, %v1641
      %v1993 = vld [vmem:[#allocation2 + $0xc0] sm:$0xf]
      %v1994 = vsel %vm1896, %v1643, %v1993
      %1995 = vst [vmem:[#allocation2 + $0xc0] sm:$0xf] %v1994
      %1996 = vst.msk [vmem:[#allocation2 + $0xc4] sm:$0xf] %vm1899, %v1645
      %v1997 = vld [vmem:[#allocation2 + $0xc8] sm:$0xf]
      %v1998 = vsel %vm1896, %v1647, %v1997
      %1999 = vst [vmem:[#allocation2 + $0xc8] sm:$0xf] %v1998
      %2000 = vst.msk [vmem:[#allocation2 + $0xcc] sm:$0xf] %vm1899, %v1649
      %v2001 = vld [vmem:[#allocation2 + $0xd0] sm:$0xf]
      %v2002 = vsel %vm1896, %v1651, %v2001
      %2003 = vst [vmem:[#allocation2 + $0xd0] sm:$0xf] %v2002
      %2004 = vst.msk [vmem:[#allocation2 + $0xd4] sm:$0xf] %vm1899, %v1653
      %v2005 = vld [vmem:[#allocation2 + $0xd8] sm:$0xf]
      %v2006 = vsel %vm1896, %v1655, %v2005
      %2007 = vst [vmem:[#allocation2 + $0xd8] sm:$0xf] %v2006
      %2008 = vst.msk [vmem:[#allocation2 + $0xdc] sm:$0xf] %vm1899, %v1657
      %v2009 = vld [vmem:[#allocation2 + $0xe0] sm:$0xf]
      %v2010 = vsel %vm1896, %v1659, %v2009
      %2011 = vst [vmem:[#allocation2 + $0xe0] sm:$0xf] %v2010
      %2012 = vst.msk [vmem:[#allocation2 + $0xe4] sm:$0xf] %vm1899, %v1661
      %v2013 = vld [vmem:[#allocation2 + $0xe8] sm:$0xf]
      %v2014 = vsel %vm1896, %v1663, %v2013
      %2015 = vst [vmem:[#allocation2 + $0xe8] sm:$0xf] %v2014
      %2016 = vst.msk [vmem:[#allocation2 + $0xec] sm:$0xf] %vm1899, %v1665
      %v2017 = vld [vmem:[#allocation2 + $0xf0] sm:$0xf]
      %v2018 = vsel %vm1896, %v1667, %v2017
      %2019 = vst [vmem:[#allocation2 + $0xf0] sm:$0xf] %v2018
      %2020 = vst.msk [vmem:[#allocation2 + $0xf4] sm:$0xf] %vm1899, %v1669
      %v2021 = vld [vmem:[#allocation2 + $0xf8] sm:$0xf]
      %v2022 = vsel %vm1896, %v1671, %v2021
      %2023 = vst [vmem:[#allocation2 + $0xf8] sm:$0xf] %v2022
      %2024 = vst.msk [vmem:[#allocation2 + $0xfc] sm:$0xf] %vm1899, %v1673
      %v2025 = vld [vmem:[#allocation2 + $0x100] sm:$0xf]
      %v2026 = vsel %vm1896, %v1675, %v2025
      %2027 = vst [vmem:[#allocation2 + $0x100] sm:$0xf] %v2026
      %2028 = vst.msk [vmem:[#allocation2 + $0x104] sm:$0xf] %vm1899, %v1677
      %v2029 = vld [vmem:[#allocation2 + $0x108] sm:$0xf]
      %v2030 = vsel %vm1896, %v1679, %v2029
      %2031 = vst [vmem:[#allocation2 + $0x108] sm:$0xf] %v2030
      %2032 = vst.msk [vmem:[#allocation2 + $0x10c] sm:$0xf] %vm1899, %v1681
      %v2033 = vld [vmem:[#allocation2 + $0x110] sm:$0xf]
      %v2034 = vsel %vm1896, %v1683, %v2033
      %2035 = vst [vmem:[#allocation2 + $0x110] sm:$0xf] %v2034
      %2036 = vst.msk [vmem:[#allocation2 + $0x114] sm:$0xf] %vm1899, %v1685
      %v2037 = vld [vmem:[#allocation2 + $0x118] sm:$0xf]
      %v2038 = vsel %vm1896, %v1687, %v2037
      %2039 = vst [vmem:[#allocation2 + $0x118] sm:$0xf] %v2038
      %2040 = vst.msk [vmem:[#allocation2 + $0x11c] sm:$0xf] %vm1899, %v1689
      %v2041 = vld [vmem:[#allocation2 + $0x120] sm:$0xf]
      %v2042 = vsel %vm1896, %v1691, %v2041
      %2043 = vst [vmem:[#allocation2 + $0x120] sm:$0xf] %v2042
      %2044 = vst.msk [vmem:[#allocation2 + $0x124] sm:$0xf] %vm1899, %v1693
      %v2045 = vld [vmem:[#allocation2 + $0x128] sm:$0xf]
      %v2046 = vsel %vm1896, %v1695, %v2045
      %2047 = vst [vmem:[#allocation2 + $0x128] sm:$0xf] %v2046
      %2048 = vst.msk [vmem:[#allocation2 + $0x12c] sm:$0xf] %vm1899, %v1697
      %v2049 = vld [vmem:[#allocation2 + $0x130] sm:$0xf]
      %v2050 = vsel %vm1896, %v1699, %v2049
      %2051 = vst [vmem:[#allocation2 + $0x130] sm:$0xf] %v2050
      %2052 = vst.msk [vmem:[#allocation2 + $0x134] sm:$0xf] %vm1899, %v1701
      %v2053 = vld [vmem:[#allocation2 + $0x138] sm:$0xf]
      %v2054 = vsel %vm1896, %v1703, %v2053
      %2055 = vst [vmem:[#allocation2 + $0x138] sm:$0xf] %v2054
      %2056 = vst.msk [vmem:[#allocation2 + $0x13c] sm:$0xf] %vm1899, %v1705
      %v2057 = vld [vmem:[#allocation2 + $0x140] sm:$0xf]
      %v2058 = vsel %vm1896, %v1707, %v2057
      %2059 = vst [vmem:[#allocation2 + $0x140] sm:$0xf] %v2058
      %2060 = vst.msk [vmem:[#allocation2 + $0x144] sm:$0xf] %vm1899, %v1709
      %v2061 = vld [vmem:[#allocation2 + $0x148] sm:$0xf]
      %v2062 = vsel %vm1896, %v1711, %v2061
      %2063 = vst [vmem:[#allocation2 + $0x148] sm:$0xf] %v2062
      %2064 = vst.msk [vmem:[#allocation2 + $0x14c] sm:$0xf] %vm1899, %v1713
      %v2065 = vld [vmem:[#allocation2 + $0x150] sm:$0xf]
      %v2066 = vsel %vm1896, %v1715, %v2065
      %2067 = vst [vmem:[#allocation2 + $0x150] sm:$0xf] %v2066
      %2068 = vst.msk [vmem:[#allocation2 + $0x154] sm:$0xf] %vm1899, %v1717
      %v2069 = vld [vmem:[#allocation2 + $0x158] sm:$0xf]
      %v2070 = vsel %vm1896, %v1719, %v2069
      %2071 = vst [vmem:[#allocation2 + $0x158] sm:$0xf] %v2070
      %2072 = vst.msk [vmem:[#allocation2 + $0x15c] sm:$0xf] %vm1899, %v1721
      %v2073 = vld [vmem:[#allocation2 + $0x160] sm:$0xf]
      %v2074 = vsel %vm1896, %v1723, %v2073
      %2075 = vst [vmem:[#allocation2 + $0x160] sm:$0xf] %v2074
      %2076 = vst.msk [vmem:[#allocation2 + $0x164] sm:$0xf] %vm1899, %v1725
      %v2077 = vld [vmem:[#allocation2 + $0x168] sm:$0xf]
      %v2078 = vsel %vm1896, %v1727, %v2077
      %2079 = vst [vmem:[#allocation2 + $0x168] sm:$0xf] %v2078
      %2080 = vst.msk [vmem:[#allocation2 + $0x16c] sm:$0xf] %vm1899, %v1729
      %v2081 = vld [vmem:[#allocation2 + $0x170] sm:$0xf]
      %v2082 = vsel %vm1896, %v1731, %v2081
      %2083 = vst [vmem:[#allocation2 + $0x170] sm:$0xf] %v2082
      %2084 = vst.msk [vmem:[#allocation2 + $0x174] sm:$0xf] %vm1899, %v1733
      %v2085 = vld [vmem:[#allocation2 + $0x178] sm:$0xf]
      %v2086 = vsel %vm1896, %v1735, %v2085
      %2087 = vst [vmem:[#allocation2 + $0x178] sm:$0xf] %v2086
      %2088 = vst.msk [vmem:[#allocation2 + $0x17c] sm:$0xf] %vm1899, %v1737
      %v2089 = vld [vmem:[#allocation2 + $0x180] sm:$0xf]
      %v2090 = vsel %vm1896, %v1739, %v2089
      %2091 = vst [vmem:[#allocation2 + $0x180] sm:$0xf] %v2090
      %2092 = vst.msk [vmem:[#allocation2 + $0x184] sm:$0xf] %vm1899, %v1741
      %v2093 = vld [vmem:[#allocation2 + $0x188] sm:$0xf]
      %v2094 = vsel %vm1896, %v1743, %v2093
      %2095 = vst [vmem:[#allocation2 + $0x188] sm:$0xf] %v2094
      %2096 = vst.msk [vmem:[#allocation2 + $0x18c] sm:$0xf] %vm1899, %v1745
      %v2097 = vld [vmem:[#allocation2 + $0x190] sm:$0xf]
      %v2098 = vsel %vm1896, %v1747, %v2097
      %2099 = vst [vmem:[#allocation2 + $0x190] sm:$0xf] %v2098
      %2100 = vst.msk [vmem:[#allocation2 + $0x194] sm:$0xf] %vm1899, %v1749
      %v2101 = vld [vmem:[#allocation2 + $0x198] sm:$0xf]
      %v2102 = vsel %vm1896, %v1751, %v2101
      %2103 = vst [vmem:[#allocation2 + $0x198] sm:$0xf] %v2102
      %2104 = vst.msk [vmem:[#allocation2 + $0x19c] sm:$0xf] %vm1899, %v1753
      %v2105 = vld [vmem:[#allocation2 + $0x1a0] sm:$0xf]
      %v2106 = vsel %vm1896, %v1755, %v2105
      %2107 = vst [vmem:[#allocation2 + $0x1a0] sm:$0xf] %v2106
      %2108 = vst.msk [vmem:[#allocation2 + $0x1a4] sm:$0xf] %vm1899, %v1757
      %v2109 = vld [vmem:[#allocation2 + $0x1a8] sm:$0xf]
      %v2110 = vsel %vm1896, %v1759, %v2109
      %2111 = vst [vmem:[#allocation2 + $0x1a8] sm:$0xf] %v2110
      %2112 = vst.msk [vmem:[#allocation2 + $0x1ac] sm:$0xf] %vm1899, %v1761
      %v2113 = vld [vmem:[#allocation2 + $0x1b0] sm:$0xf]
      %v2114 = vsel %vm1896, %v1763, %v2113
      %2115 = vst [vmem:[#allocation2 + $0x1b0] sm:$0xf] %v2114
      %2116 = vst.msk [vmem:[#allocation2 + $0x1b4] sm:$0xf] %vm1899, %v1765
      %v2117 = vld [vmem:[#allocation2 + $0x1b8] sm:$0xf]
      %v2118 = vsel %vm1896, %v1767, %v2117
      %2119 = vst [vmem:[#allocation2 + $0x1b8] sm:$0xf] %v2118
      %2120 = vst.msk [vmem:[#allocation2 + $0x1bc] sm:$0xf] %vm1899, %v1769
      %v2121 = vld [vmem:[#allocation2 + $0x1c0] sm:$0xf]
      %v2122 = vsel %vm1896, %v1771, %v2121
      %2123 = vst [vmem:[#allocation2 + $0x1c0] sm:$0xf] %v2122
      %2124 = vst.msk [vmem:[#allocation2 + $0x1c4] sm:$0xf] %vm1899, %v1773
      %v2125 = vld [vmem:[#allocation2 + $0x1c8] sm:$0xf]
      %v2126 = vsel %vm1896, %v1775, %v2125
      %2127 = vst [vmem:[#allocation2 + $0x1c8] sm:$0xf] %v2126
      %2128 = vst.msk [vmem:[#allocation2 + $0x1cc] sm:$0xf] %vm1899, %v1777
      %vm2129 = vcmask 122880
      %vm2130 = vmand %vm2129, %vm615
      %v2131 = vld [vmem:[#allocation2] sm:$0x1]
      %v2132 = vsel %vm2130, 0, %v2131
      %2133 = vst [vmem:[#allocation2] sm:$0x1] %v2132
      %v2134 = vld [vmem:[#allocation2 + $0x8] sm:$0x1]
      %v2135 = vsel %vm2130, 0, %v2134
      %2136 = vst [vmem:[#allocation2 + $0x8] sm:$0x1] %v2135
      %v2137 = vld [vmem:[#allocation2 + $0x10] sm:$0x1]
      %v2138 = vsel %vm2130, 0, %v2137
      %2139 = vst [vmem:[#allocation2 + $0x10] sm:$0x1] %v2138
      %v2140 = vld [vmem:[#allocation2 + $0x18] sm:$0x1]
      %v2141 = vsel %vm2130, 0, %v2140
      %2142 = vst [vmem:[#allocation2 + $0x18] sm:$0x1] %v2141
      %v2143 = vld [vmem:[#allocation2 + $0x20] sm:$0x1]
      %v2144 = vsel %vm2130, 0, %v2143
      %2145 = vst [vmem:[#allocation2 + $0x20] sm:$0x1] %v2144
      %v2146 = vld [vmem:[#allocation2 + $0x28] sm:$0x1]
      %v2147 = vsel %vm2130, 0, %v2146
      %2148 = vst [vmem:[#allocation2 + $0x28] sm:$0x1] %v2147
      %v2149 = vld [vmem:[#allocation2 + $0x30] sm:$0x1]
      %v2150 = vsel %vm2130, 0, %v2149
      %2151 = vst [vmem:[#allocation2 + $0x30] sm:$0x1] %v2150
      %v2152 = vld [vmem:[#allocation2 + $0x38] sm:$0x1]
      %v2153 = vsel %vm2130, 0, %v2152
      %2154 = vst [vmem:[#allocation2 + $0x38] sm:$0x1] %v2153
      %v2155 = vld [vmem:[#allocation2 + $0x40] sm:$0x1]
      %v2156 = vsel %vm2130, 0, %v2155
      %2157 = vst [vmem:[#allocation2 + $0x40] sm:$0x1] %v2156
      %v2158 = vld [vmem:[#allocation2 + $0x48] sm:$0x1]
      %v2159 = vsel %vm2130, 0, %v2158
      %2160 = vst [vmem:[#allocation2 + $0x48] sm:$0x1] %v2159
      %v2161 = vld [vmem:[#allocation2 + $0x50] sm:$0x1]
      %v2162 = vsel %vm2130, 0, %v2161
      %2163 = vst [vmem:[#allocation2 + $0x50] sm:$0x1] %v2162
      %v2164 = vld [vmem:[#allocation2 + $0x58] sm:$0x1]
      %v2165 = vsel %vm2130, 0, %v2164
      %2166 = vst [vmem:[#allocation2 + $0x58] sm:$0x1] %v2165
      %v2167 = vld [vmem:[#allocation2 + $0x60] sm:$0x1]
      %v2168 = vsel %vm2130, 0, %v2167
      %2169 = vst [vmem:[#allocation2 + $0x60] sm:$0x1] %v2168
      %v2170 = vld [vmem:[#allocation2 + $0x68] sm:$0x1]
      %v2171 = vsel %vm2130, 0, %v2170
      %2172 = vst [vmem:[#allocation2 + $0x68] sm:$0x1] %v2171
      %v2173 = vld [vmem:[#allocation2 + $0x70] sm:$0x1]
      %v2174 = vsel %vm2130, 0, %v2173
      %2175 = vst [vmem:[#allocation2 + $0x70] sm:$0x1] %v2174
      %v2176 = vld [vmem:[#allocation2 + $0x78] sm:$0x1]
      %v2177 = vsel %vm2130, 0, %v2176
      %2178 = vst [vmem:[#allocation2 + $0x78] sm:$0x1] %v2177
      %v2179 = vld [vmem:[#allocation2 + $0x80] sm:$0x1]
      %v2180 = vsel %vm2130, 0, %v2179
      %2181 = vst [vmem:[#allocation2 + $0x80] sm:$0x1] %v2180
      %v2182 = vld [vmem:[#allocation2 + $0x88] sm:$0x1]
      %v2183 = vsel %vm2130, 0, %v2182
      %2184 = vst [vmem:[#allocation2 + $0x88] sm:$0x1] %v2183
      %v2185 = vld [vmem:[#allocation2 + $0x90] sm:$0x1]
      %v2186 = vsel %vm2130, 0, %v2185
      %2187 = vst [vmem:[#allocation2 + $0x90] sm:$0x1] %v2186
      %v2188 = vld [vmem:[#allocation2 + $0x98] sm:$0x1]
      %v2189 = vsel %vm2130, 0, %v2188
      %2190 = vst [vmem:[#allocation2 + $0x98] sm:$0x1] %v2189
      %v2191 = vld [vmem:[#allocation2 + $0xa0] sm:$0x1]
      %v2192 = vsel %vm2130, 0, %v2191
      %2193 = vst [vmem:[#allocation2 + $0xa0] sm:$0x1] %v2192
      %v2194 = vld [vmem:[#allocation2 + $0xa8] sm:$0x1]
      %v2195 = vsel %vm2130, 0, %v2194
      %2196 = vst [vmem:[#allocation2 + $0xa8] sm:$0x1] %v2195
      %v2197 = vld [vmem:[#allocation2 + $0xb0] sm:$0x1]
      %v2198 = vsel %vm2130, 0, %v2197
      %2199 = vst [vmem:[#allocation2 + $0xb0] sm:$0x1] %v2198
      %v2200 = vld [vmem:[#allocation2 + $0xb8] sm:$0x1]
      %v2201 = vsel %vm2130, 0, %v2200
      %2202 = vst [vmem:[#allocation2 + $0xb8] sm:$0x1] %v2201
      %v2203 = vld [vmem:[#allocation2 + $0xc0] sm:$0x1]
      %v2204 = vsel %vm2130, 0, %v2203
      %2205 = vst [vmem:[#allocation2 + $0xc0] sm:$0x1] %v2204
      %v2206 = vld [vmem:[#allocation2 + $0xc8] sm:$0x1]
      %v2207 = vsel %vm2130, 0, %v2206
      %2208 = vst [vmem:[#allocation2 + $0xc8] sm:$0x1] %v2207
      %v2209 = vld [vmem:[#allocation2 + $0xd0] sm:$0x1]
      %v2210 = vsel %vm2130, 0, %v2209
      %2211 = vst [vmem:[#allocation2 + $0xd0] sm:$0x1] %v2210
      %v2212 = vld [vmem:[#allocation2 + $0xd8] sm:$0x1]
      %v2213 = vsel %vm2130, 0, %v2212
      %2214 = vst [vmem:[#allocation2 + $0xd8] sm:$0x1] %v2213
      %v2215 = vld [vmem:[#allocation2 + $0xe0] sm:$0x1]
      %v2216 = vsel %vm2130, 0, %v2215
      %2217 = vst [vmem:[#allocation2 + $0xe0] sm:$0x1] %v2216
      %v2218 = vld [vmem:[#allocation2 + $0xe8] sm:$0x1]
      %v2219 = vsel %vm2130, 0, %v2218
      %2220 = vst [vmem:[#allocation2 + $0xe8] sm:$0x1] %v2219
      %v2221 = vld [vmem:[#allocation2 + $0xf0] sm:$0x1]
      %v2222 = vsel %vm2130, 0, %v2221
      %2223 = vst [vmem:[#allocation2 + $0xf0] sm:$0x1] %v2222
      %v2224 = vld [vmem:[#allocation2 + $0xf8] sm:$0x1]
      %v2225 = vsel %vm2130, 0, %v2224
      %2226 = vst [vmem:[#allocation2 + $0xf8] sm:$0x1] %v2225
      %v2227 = vld [vmem:[#allocation2 + $0x100] sm:$0x1]
      %v2228 = vsel %vm2130, 0, %v2227
      %2229 = vst [vmem:[#allocation2 + $0x100] sm:$0x1] %v2228
      %v2230 = vld [vmem:[#allocation2 + $0x108] sm:$0x1]
      %v2231 = vsel %vm2130, 0, %v2230
      %2232 = vst [vmem:[#allocation2 + $0x108] sm:$0x1] %v2231
      %v2233 = vld [vmem:[#allocation2 + $0x110] sm:$0x1]
      %v2234 = vsel %vm2130, 0, %v2233
      %2235 = vst [vmem:[#allocation2 + $0x110] sm:$0x1] %v2234
      %v2236 = vld [vmem:[#allocation2 + $0x118] sm:$0x1]
      %v2237 = vsel %vm2130, 0, %v2236
      %2238 = vst [vmem:[#allocation2 + $0x118] sm:$0x1] %v2237
      %v2239 = vld [vmem:[#allocation2 + $0x120] sm:$0x1]
      %v2240 = vsel %vm2130, 0, %v2239
      %2241 = vst [vmem:[#allocation2 + $0x120] sm:$0x1] %v2240
      %v2242 = vld [vmem:[#allocation2 + $0x128] sm:$0x1]
      %v2243 = vsel %vm2130, 0, %v2242
      %2244 = vst [vmem:[#allocation2 + $0x128] sm:$0x1] %v2243
      %v2245 = vld [vmem:[#allocation2 + $0x130] sm:$0x1]
      %v2246 = vsel %vm2130, 0, %v2245
      %2247 = vst [vmem:[#allocation2 + $0x130] sm:$0x1] %v2246
      %v2248 = vld [vmem:[#allocation2 + $0x138] sm:$0x1]
      %v2249 = vsel %vm2130, 0, %v2248
      %2250 = vst [vmem:[#allocation2 + $0x138] sm:$0x1] %v2249
      %v2251 = vld [vmem:[#allocation2 + $0x140] sm:$0x1]
      %v2252 = vsel %vm2130, 0, %v2251
      %2253 = vst [vmem:[#allocation2 + $0x140] sm:$0x1] %v2252
      %v2254 = vld [vmem:[#allocation2 + $0x148] sm:$0x1]
      %v2255 = vsel %vm2130, 0, %v2254
      %2256 = vst [vmem:[#allocation2 + $0x148] sm:$0x1] %v2255
      %v2257 = vld [vmem:[#allocation2 + $0x150] sm:$0x1]
      %v2258 = vsel %vm2130, 0, %v2257
      %2259 = vst [vmem:[#allocation2 + $0x150] sm:$0x1] %v2258
      %v2260 = vld [vmem:[#allocation2 + $0x158] sm:$0x1]
      %v2261 = vsel %vm2130, 0, %v2260
      %2262 = vst [vmem:[#allocation2 + $0x158] sm:$0x1] %v2261
      %v2263 = vld [vmem:[#allocation2 + $0x160] sm:$0x1]
      %v2264 = vsel %vm2130, 0, %v2263
      %2265 = vst [vmem:[#allocation2 + $0x160] sm:$0x1] %v2264
      %v2266 = vld [vmem:[#allocation2 + $0x168] sm:$0x1]
      %v2267 = vsel %vm2130, 0, %v2266
      %2268 = vst [vmem:[#allocation2 + $0x168] sm:$0x1] %v2267
      %v2269 = vld [vmem:[#allocation2 + $0x170] sm:$0x1]
      %v2270 = vsel %vm2130, 0, %v2269
      %2271 = vst [vmem:[#allocation2 + $0x170] sm:$0x1] %v2270
      %v2272 = vld [vmem:[#allocation2 + $0x178] sm:$0x1]
      %v2273 = vsel %vm2130, 0, %v2272
      %2274 = vst [vmem:[#allocation2 + $0x178] sm:$0x1] %v2273
      %v2275 = vld [vmem:[#allocation2 + $0x180] sm:$0x1]
      %v2276 = vsel %vm2130, 0, %v2275
      %2277 = vst [vmem:[#allocation2 + $0x180] sm:$0x1] %v2276
      %v2278 = vld [vmem:[#allocation2 + $0x188] sm:$0x1]
      %v2279 = vsel %vm2130, 0, %v2278
      %2280 = vst [vmem:[#allocation2 + $0x188] sm:$0x1] %v2279
      %v2281 = vld [vmem:[#allocation2 + $0x190] sm:$0x1]
      %v2282 = vsel %vm2130, 0, %v2281
      %2283 = vst [vmem:[#allocation2 + $0x190] sm:$0x1] %v2282
      %v2284 = vld [vmem:[#allocation2 + $0x198] sm:$0x1]
      %v2285 = vsel %vm2130, 0, %v2284
      %2286 = vst [vmem:[#allocation2 + $0x198] sm:$0x1] %v2285
      %v2287 = vld [vmem:[#allocation2 + $0x1a0] sm:$0x1]
      %v2288 = vsel %vm2130, 0, %v2287
      %2289 = vst [vmem:[#allocation2 + $0x1a0] sm:$0x1] %v2288
      %v2290 = vld [vmem:[#allocation2 + $0x1a8] sm:$0x1]
      %v2291 = vsel %vm2130, 0, %v2290
      %2292 = vst [vmem:[#allocation2 + $0x1a8] sm:$0x1] %v2291
      %v2293 = vld [vmem:[#allocation2 + $0x1b0] sm:$0x1]
      %v2294 = vsel %vm2130, 0, %v2293
      %2295 = vst [vmem:[#allocation2 + $0x1b0] sm:$0x1] %v2294
      %v2296 = vld [vmem:[#allocation2 + $0x1b8] sm:$0x1]
      %v2297 = vsel %vm2130, 0, %v2296
      %2298 = vst [vmem:[#allocation2 + $0x1b8] sm:$0x1] %v2297
      %v2299 = vld [vmem:[#allocation2 + $0x1c0] sm:$0x1]
      %v2300 = vsel %vm2130, 0, %v2299
      %2301 = vst [vmem:[#allocation2 + $0x1c0] sm:$0x1] %v2300
      %v2302 = vld [vmem:[#allocation2 + $0x1c8] sm:$0x1]
      %v2303 = vsel %vm2130, 0, %v2302
      %2304 = vst [vmem:[#allocation2 + $0x1c8] sm:$0x1] %v2303
      %v2305 = vld [vmem:[#allocation2] sm:$0xf]
      %v2306 = vld [vmem:[#allocation2 + $0x4] sm:$0xf]
      %v2307 = vld [vmem:[#allocation2 + $0x8] sm:$0xf]
      %v2308 = vld [vmem:[#allocation2 + $0xc] sm:$0xf]
      %v2309 = vld [vmem:[#allocation2 + $0x10] sm:$0xf]
      %v2310 = vld [vmem:[#allocation2 + $0x14] sm:$0xf]
      %v2311 = vld [vmem:[#allocation2 + $0x18] sm:$0xf]
      %v2312 = vld [vmem:[#allocation2 + $0x1c] sm:$0xf]
      %v2313 = vld [vmem:[#allocation2 + $0x20] sm:$0xf]
      %v2314 = vld [vmem:[#allocation2 + $0x24] sm:$0xf]
      %v2315 = vld [vmem:[#allocation2 + $0x28] sm:$0xf]
      %v2316 = vld [vmem:[#allocation2 + $0x2c] sm:$0xf]
      %v2317 = vld [vmem:[#allocation2 + $0x30] sm:$0xf]
      %v2318 = vld [vmem:[#allocation2 + $0x34] sm:$0xf]
      %v2319 = vld [vmem:[#allocation2 + $0x38] sm:$0xf]
      %v2320 = vld [vmem:[#allocation2 + $0x3c] sm:$0xf]
      %v2321 = vld [vmem:[#allocation2 + $0x40] sm:$0xf]
      %v2322 = vld [vmem:[#allocation2 + $0x44] sm:$0xf]
      %v2323 = vld [vmem:[#allocation2 + $0x48] sm:$0xf]
      %v2324 = vld [vmem:[#allocation2 + $0x4c] sm:$0xf]
      %v2325 = vld [vmem:[#allocation2 + $0x50] sm:$0xf]
      %v2326 = vld [vmem:[#allocation2 + $0x54] sm:$0xf]
      %v2327 = vld [vmem:[#allocation2 + $0x58] sm:$0xf]
      %v2328 = vld [vmem:[#allocation2 + $0x5c] sm:$0xf]
      %v2329 = vld [vmem:[#allocation2 + $0x60] sm:$0xf]
      %v2330 = vld [vmem:[#allocation2 + $0x64] sm:$0xf]
      %v2331 = vld [vmem:[#allocation2 + $0x68] sm:$0xf]
      %v2332 = vld [vmem:[#allocation2 + $0x6c] sm:$0xf]
      %v2333 = vld [vmem:[#allocation2 + $0x70] sm:$0xf]
      %v2334 = vld [vmem:[#allocation2 + $0x74] sm:$0xf]
      %v2335 = vld [vmem:[#allocation2 + $0x78] sm:$0xf]
      %v2336 = vld [vmem:[#allocation2 + $0x7c] sm:$0xf]
      %v2337 = vld [vmem:[#allocation2 + $0x80] sm:$0xf]
      %v2338 = vld [vmem:[#allocation2 + $0x84] sm:$0xf]
      %v2339 = vld [vmem:[#allocation2 + $0x88] sm:$0xf]
      %v2340 = vld [vmem:[#allocation2 + $0x8c] sm:$0xf]
      %v2341 = vld [vmem:[#allocation2 + $0x90] sm:$0xf]
      %v2342 = vld [vmem:[#allocation2 + $0x94] sm:$0xf]
      %v2343 = vld [vmem:[#allocation2 + $0x98] sm:$0xf]
      %v2344 = vld [vmem:[#allocation2 + $0x9c] sm:$0xf]
      %v2345 = vld [vmem:[#allocation2 + $0xa0] sm:$0xf]
      %v2346 = vld [vmem:[#allocation2 + $0xa4] sm:$0xf]
      %v2347 = vld [vmem:[#allocation2 + $0xa8] sm:$0xf]
      %v2348 = vld [vmem:[#allocation2 + $0xac] sm:$0xf]
      %v2349 = vld [vmem:[#allocation2 + $0xb0] sm:$0xf]
      %v2350 = vld [vmem:[#allocation2 + $0xb4] sm:$0xf]
      %v2351 = vld [vmem:[#allocation2 + $0xb8] sm:$0xf]
      %v2352 = vld [vmem:[#allocation2 + $0xbc] sm:$0xf]
      %v2353 = vld [vmem:[#allocation2 + $0xc0] sm:$0xf]
      %v2354 = vld [vmem:[#allocation2 + $0xc4] sm:$0xf]
      %v2355 = vld [vmem:[#allocation2 + $0xc8] sm:$0xf]
      %v2356 = vld [vmem:[#allocation2 + $0xcc] sm:$0xf]
      %v2357 = vld [vmem:[#allocation2 + $0xd0] sm:$0xf]
      %v2358 = vld [vmem:[#allocation2 + $0xd4] sm:$0xf]
      %v2359 = vld [vmem:[#allocation2 + $0xd8] sm:$0xf]
      %v2360 = vld [vmem:[#allocation2 + $0xdc] sm:$0xf]
      %v2361 = vld [vmem:[#allocation2 + $0xe0] sm:$0xf]
      %v2362 = vld [vmem:[#allocation2 + $0xe4] sm:$0xf]
      %v2363 = vld [vmem:[#allocation2 + $0xe8] sm:$0xf]
      %v2364 = vld [vmem:[#allocation2 + $0xec] sm:$0xf]
      %v2365 = vld [vmem:[#allocation2 + $0xf0] sm:$0xf]
      %v2366 = vld [vmem:[#allocation2 + $0xf4] sm:$0xf]
      %v2367 = vld [vmem:[#allocation2 + $0xf8] sm:$0xf]
      %v2368 = vld [vmem:[#allocation2 + $0xfc] sm:$0xf]
      %v2369 = vld [vmem:[#allocation2 + $0x100] sm:$0xf]
      %v2370 = vld [vmem:[#allocation2 + $0x104] sm:$0xf]
      %v2371 = vld [vmem:[#allocation2 + $0x108] sm:$0xf]
      %v2372 = vld [vmem:[#allocation2 + $0x10c] sm:$0xf]
      %v2373 = vld [vmem:[#allocation2 + $0x110] sm:$0xf]
      %v2374 = vld [vmem:[#allocation2 + $0x114] sm:$0xf]
      %v2375 = vld [vmem:[#allocation2 + $0x118] sm:$0xf]
      %v2376 = vld [vmem:[#allocation2 + $0x11c] sm:$0xf]
      %v2377 = vld [vmem:[#allocation2 + $0x120] sm:$0xf]
      %v2378 = vld [vmem:[#allocation2 + $0x124] sm:$0xf]
      %v2379 = vld [vmem:[#allocation2 + $0x128] sm:$0xf]
      %v2380 = vld [vmem:[#allocation2 + $0x12c] sm:$0xf]
      %v2381 = vld [vmem:[#allocation2 + $0x130] sm:$0xf]
      %v2382 = vld [vmem:[#allocation2 + $0x134] sm:$0xf]
      %v2383 = vld [vmem:[#allocation2 + $0x138] sm:$0xf]
      %v2384 = vld [vmem:[#allocation2 + $0x13c] sm:$0xf]
      %v2385 = vld [vmem:[#allocation2 + $0x140] sm:$0xf]
      %v2386 = vld [vmem:[#allocation2 + $0x144] sm:$0xf]
      %v2387 = vld [vmem:[#allocation2 + $0x148] sm:$0xf]
      %v2388 = vld [vmem:[#allocation2 + $0x14c] sm:$0xf]
      %v2389 = vld [vmem:[#allocation2 + $0x150] sm:$0xf]
      %v2390 = vld [vmem:[#allocation2 + $0x154] sm:$0xf]
      %v2391 = vld [vmem:[#allocation2 + $0x158] sm:$0xf]
      %v2392 = vld [vmem:[#allocation2 + $0x15c] sm:$0xf]
      %v2393 = vld [vmem:[#allocation2 + $0x160] sm:$0xf]
      %v2394 = vld [vmem:[#allocation2 + $0x164] sm:$0xf]
      %v2395 = vld [vmem:[#allocation2 + $0x168] sm:$0xf]
      %v2396 = vld [vmem:[#allocation2 + $0x16c] sm:$0xf]
      %v2397 = vld [vmem:[#allocation2 + $0x170] sm:$0xf]
      %v2398 = vld [vmem:[#allocation2 + $0x174] sm:$0xf]
      %v2399 = vld [vmem:[#allocation2 + $0x178] sm:$0xf]
      %v2400 = vld [vmem:[#allocation2 + $0x17c] sm:$0xf]
      %v2401 = vld [vmem:[#allocation2 + $0x180] sm:$0xf]
      %v2402 = vld [vmem:[#allocation2 + $0x184] sm:$0xf]
      %v2403 = vld [vmem:[#allocation2 + $0x188] sm:$0xf]
      %v2404 = vld [vmem:[#allocation2 + $0x18c] sm:$0xf]
      %v2405 = vld [vmem:[#allocation2 + $0x190] sm:$0xf]
      %v2406 = vld [vmem:[#allocation2 + $0x194] sm:$0xf]
      %v2407 = vld [vmem:[#allocation2 + $0x198] sm:$0xf]
      %v2408 = vld [vmem:[#allocation2 + $0x19c] sm:$0xf]
      %v2409 = vld [vmem:[#allocation2 + $0x1a0] sm:$0xf]
      %v2410 = vld [vmem:[#allocation2 + $0x1a4] sm:$0xf]
      %v2411 = vld [vmem:[#allocation2 + $0x1a8] sm:$0xf]
      %v2412 = vld [vmem:[#allocation2 + $0x1ac] sm:$0xf]
      %v2413 = vld [vmem:[#allocation2 + $0x1b0] sm:$0xf]
      %v2414 = vld [vmem:[#allocation2 + $0x1b4] sm:$0xf]
      %v2415 = vld [vmem:[#allocation2 + $0x1b8] sm:$0xf]
      %v2416 = vld [vmem:[#allocation2 + $0x1bc] sm:$0xf]
      %v2417 = vld [vmem:[#allocation2 + $0x1c0] sm:$0xf]
      %v2418 = vld [vmem:[#allocation2 + $0x1c4] sm:$0xf]
      %v2419 = vld [vmem:[#allocation2 + $0x1c8] sm:$0xf]
      %v2420 = vld [vmem:[#allocation2 + $0x1cc] sm:$0xf]
      %vm2421 = vsmask.f32 3328
      %vm2422 = vsmask.f32 7440
      %vm2423 = vmor %vm2421, %vm2422
      %v2425 = vshrl.u32 %v2305, 16
      %v2427 = vrot.slane %v2425, 4
      %v2428 = vshll.u32 %v2305, 16
      %v2430 = vrot.slane %v2428, 5
      %v2431 = vor.u32 %v2427, %v2430
      %v2432 = vrot.slane %v2431, 4
      %v2434 = vshll.u32 %v2306, 16
      %v2436 = vrot.slane %v2434, 5
      %v2437 = vsel %vm2423, %v2432, %v2436
      %v2438 = vshrl.u32 %v2306, 16
      %v2440 = vrot.slane %v2438, 4
      %v2441 = vor.u32 %v2440, %v2436
      %v2442 = vrot.slane %v2441, 4
      %v2444 = vshrl.u32 %v2307, 16
      %v2446 = vrot.slane %v2444, 4
      %v2447 = vshll.u32 %v2307, 16
      %v2449 = vrot.slane %v2447, 5
      %v2450 = vor.u32 %v2446, %v2449
      %v2451 = vrot.slane %v2450, 4
      %v2453 = vshll.u32 %v2308, 16
      %v2455 = vrot.slane %v2453, 5
      %v2456 = vsel %vm2423, %v2451, %v2455
      %v2457 = vshrl.u32 %v2308, 16
      %v2459 = vrot.slane %v2457, 4
      %v2460 = vor.u32 %v2459, %v2455
      %v2461 = vrot.slane %v2460, 4
      %v2463 = vshrl.u32 %v2309, 16
      %v2465 = vrot.slane %v2463, 4
      %v2466 = vshll.u32 %v2309, 16
      %v2468 = vrot.slane %v2466, 5
      %v2469 = vor.u32 %v2465, %v2468
      %v2470 = vrot.slane %v2469, 4
      %v2472 = vshll.u32 %v2310, 16
      %v2474 = vrot.slane %v2472, 5
      %v2475 = vsel %vm2423, %v2470, %v2474
      %v2476 = vshrl.u32 %v2310, 16
      %v2478 = vrot.slane %v2476, 4
      %v2479 = vor.u32 %v2478, %v2474
      %v2480 = vrot.slane %v2479, 4
      %v2482 = vshrl.u32 %v2311, 16
      %v2484 = vrot.slane %v2482, 4
      %v2485 = vshll.u32 %v2311, 16
      %v2487 = vrot.slane %v2485, 5
      %v2488 = vor.u32 %v2484, %v2487
      %v2489 = vrot.slane %v2488, 4
      %v2491 = vshll.u32 %v2312, 16
      %v2493 = vrot.slane %v2491, 5
      %v2494 = vsel %vm2423, %v2489, %v2493
      %v2495 = vshrl.u32 %v2312, 16
      %v2497 = vrot.slane %v2495, 4
      %v2498 = vor.u32 %v2497, %v2493
      %v2499 = vrot.slane %v2498, 4
      %v2501 = vshrl.u32 %v2313, 16
      %v2503 = vrot.slane %v2501, 4
      %v2504 = vshll.u32 %v2313, 16
      %v2506 = vrot.slane %v2504, 5
      %v2507 = vor.u32 %v2503, %v2506
      %v2508 = vrot.slane %v2507, 4
      %v2510 = vshll.u32 %v2314, 16
      %v2512 = vrot.slane %v2510, 5
      %v2513 = vsel %vm2423, %v2508, %v2512
      %v2514 = vshrl.u32 %v2314, 16
      %v2516 = vrot.slane %v2514, 4
      %v2517 = vor.u32 %v2516, %v2512
      %v2518 = vrot.slane %v2517, 4
      %v2520 = vshrl.u32 %v2315, 16
      %v2522 = vrot.slane %v2520, 4
      %v2523 = vshll.u32 %v2315, 16
      %v2525 = vrot.slane %v2523, 5
      %v2526 = vor.u32 %v2522, %v2525
      %v2527 = vrot.slane %v2526, 4
      %v2529 = vshll.u32 %v2316, 16
      %v2531 = vrot.slane %v2529, 5
      %v2532 = vsel %vm2423, %v2527, %v2531
      %v2533 = vshrl.u32 %v2316, 16
      %v2535 = vrot.slane %v2533, 4
      %v2536 = vor.u32 %v2535, %v2531
      %v2537 = vrot.slane %v2536, 4
      %v2539 = vshrl.u32 %v2317, 16
      %v2541 = vrot.slane %v2539, 4
      %v2542 = vshll.u32 %v2317, 16
      %v2544 = vrot.slane %v2542, 5
      %v2545 = vor.u32 %v2541, %v2544
      %v2546 = vrot.slane %v2545, 4
      %v2548 = vshll.u32 %v2318, 16
      %v2550 = vrot.slane %v2548, 5
      %v2551 = vsel %vm2423, %v2546, %v2550
      %v2552 = vshrl.u32 %v2318, 16
      %v2554 = vrot.slane %v2552, 4
      %v2555 = vor.u32 %v2554, %v2550
      %v2556 = vrot.slane %v2555, 4
      %v2558 = vshrl.u32 %v2319, 16
      %v2560 = vrot.slane %v2558, 4
      %v2561 = vshll.u32 %v2319, 16
      %v2563 = vrot.slane %v2561, 5
      %v2564 = vor.u32 %v2560, %v2563
      %v2565 = vrot.slane %v2564, 4
      %v2567 = vshll.u32 %v2320, 16
      %v2569 = vrot.slane %v2567, 5
      %v2570 = vsel %vm2423, %v2565, %v2569
      %v2571 = vshrl.u32 %v2320, 16
      %v2573 = vrot.slane %v2571, 4
      %v2574 = vor.u32 %v2573, %v2569
      %v2575 = vrot.slane %v2574, 4
      %v2577 = vshrl.u32 %v2321, 16
      %v2579 = vrot.slane %v2577, 4
      %v2580 = vshll.u32 %v2321, 16
      %v2582 = vrot.slane %v2580, 5
      %v2583 = vor.u32 %v2579, %v2582
      %v2584 = vrot.slane %v2583, 4
      %v2586 = vshll.u32 %v2322, 16
      %v2588 = vrot.slane %v2586, 5
      %v2589 = vsel %vm2423, %v2584, %v2588
      %v2590 = vshrl.u32 %v2322, 16
      %v2592 = vrot.slane %v2590, 4
      %v2593 = vor.u32 %v2592, %v2588
      %v2594 = vrot.slane %v2593, 4
      %v2596 = vshrl.u32 %v2323, 16
      %v2598 = vrot.slane %v2596, 4
      %v2599 = vshll.u32 %v2323, 16
      %v2601 = vrot.slane %v2599, 5
      %v2602 = vor.u32 %v2598, %v2601
      %v2603 = vrot.slane %v2602, 4
      %v2605 = vshll.u32 %v2324, 16
      %v2607 = vrot.slane %v2605, 5
      %v2608 = vsel %vm2423, %v2603, %v2607
      %v2609 = vshrl.u32 %v2324, 16
      %v2611 = vrot.slane %v2609, 4
      %v2612 = vor.u32 %v2611, %v2607
      %v2613 = vrot.slane %v2612, 4
      %v2615 = vshrl.u32 %v2325, 16
      %v2617 = vrot.slane %v2615, 4
      %v2618 = vshll.u32 %v2325, 16
      %v2620 = vrot.slane %v2618, 5
      %v2621 = vor.u32 %v2617, %v2620
      %v2622 = vrot.slane %v2621, 4
      %v2624 = vshll.u32 %v2326, 16
      %v2626 = vrot.slane %v2624, 5
      %v2627 = vsel %vm2423, %v2622, %v2626
      %v2628 = vshrl.u32 %v2326, 16
      %v2630 = vrot.slane %v2628, 4
      %v2631 = vor.u32 %v2630, %v2626
      %v2632 = vrot.slane %v2631, 4
      %v2634 = vshrl.u32 %v2327, 16
      %v2636 = vrot.slane %v2634, 4
      %v2637 = vshll.u32 %v2327, 16
      %v2639 = vrot.slane %v2637, 5
      %v2640 = vor.u32 %v2636, %v2639
      %v2641 = vrot.slane %v2640, 4
      %v2643 = vshll.u32 %v2328, 16
      %v2645 = vrot.slane %v2643, 5
      %v2646 = vsel %vm2423, %v2641, %v2645
      %v2647 = vshrl.u32 %v2328, 16
      %v2649 = vrot.slane %v2647, 4
      %v2650 = vor.u32 %v2649, %v2645
      %v2651 = vrot.slane %v2650, 4
      %v2653 = vshrl.u32 %v2329, 16
      %v2655 = vrot.slane %v2653, 4
      %v2656 = vshll.u32 %v2329, 16
      %v2658 = vrot.slane %v2656, 5
      %v2659 = vor.u32 %v2655, %v2658
      %v2660 = vrot.slane %v2659, 4
      %v2662 = vshll.u32 %v2330, 16
      %v2664 = vrot.slane %v2662, 5
      %v2665 = vsel %vm2423, %v2660, %v2664
      %v2666 = vshrl.u32 %v2330, 16
      %v2668 = vrot.slane %v2666, 4
      %v2669 = vor.u32 %v2668, %v2664
      %v2670 = vrot.slane %v2669, 4
      %v2672 = vshrl.u32 %v2331, 16
      %v2674 = vrot.slane %v2672, 4
      %v2675 = vshll.u32 %v2331, 16
      %v2677 = vrot.slane %v2675, 5
      %v2678 = vor.u32 %v2674, %v2677
      %v2679 = vrot.slane %v2678, 4
      %v2681 = vshll.u32 %v2332, 16
      %v2683 = vrot.slane %v2681, 5
      %v2684 = vsel %vm2423, %v2679, %v2683
      %v2685 = vshrl.u32 %v2332, 16
      %v2687 = vrot.slane %v2685, 4
      %v2688 = vor.u32 %v2687, %v2683
      %v2689 = vrot.slane %v2688, 4
      %v2691 = vshrl.u32 %v2333, 16
      %v2693 = vrot.slane %v2691, 4
      %v2694 = vshll.u32 %v2333, 16
      %v2696 = vrot.slane %v2694, 5
      %v2697 = vor.u32 %v2693, %v2696
      %v2698 = vrot.slane %v2697, 4
      %v2700 = vshll.u32 %v2334, 16
      %v2702 = vrot.slane %v2700, 5
      %v2703 = vsel %vm2423, %v2698, %v2702
      %v2704 = vshrl.u32 %v2334, 16
      %v2706 = vrot.slane %v2704, 4
      %v2707 = vor.u32 %v2706, %v2702
      %v2708 = vrot.slane %v2707, 4
      %v2710 = vshrl.u32 %v2335, 16
      %v2712 = vrot.slane %v2710, 4
      %v2713 = vshll.u32 %v2335, 16
      %v2715 = vrot.slane %v2713, 5
      %v2716 = vor.u32 %v2712, %v2715
      %v2717 = vrot.slane %v2716, 4
      %v2719 = vshll.u32 %v2336, 16
      %v2721 = vrot.slane %v2719, 5
      %v2722 = vsel %vm2423, %v2717, %v2721
      %v2723 = vshrl.u32 %v2336, 16
      %v2725 = vrot.slane %v2723, 4
      %v2726 = vor.u32 %v2725, %v2721
      %v2727 = vrot.slane %v2726, 4
      %v2729 = vshrl.u32 %v2337, 16
      %v2731 = vrot.slane %v2729, 4
      %v2732 = vshll.u32 %v2337, 16
      %v2734 = vrot.slane %v2732, 5
      %v2735 = vor.u32 %v2731, %v2734
      %v2736 = vrot.slane %v2735, 4
      %v2738 = vshll.u32 %v2338, 16
      %v2740 = vrot.slane %v2738, 5
      %v2741 = vsel %vm2423, %v2736, %v2740
      %v2742 = vshrl.u32 %v2338, 16
      %v2744 = vrot.slane %v2742, 4
      %v2745 = vor.u32 %v2744, %v2740
      %v2746 = vrot.slane %v2745, 4
      %v2748 = vshrl.u32 %v2339, 16
      %v2750 = vrot.slane %v2748, 4
      %v2751 = vshll.u32 %v2339, 16
      %v2753 = vrot.slane %v2751, 5
      %v2754 = vor.u32 %v2750, %v2753
      %v2755 = vrot.slane %v2754, 4
      %v2757 = vshll.u32 %v2340, 16
      %v2759 = vrot.slane %v2757, 5
      %v2760 = vsel %vm2423, %v2755, %v2759
      %v2761 = vshrl.u32 %v2340, 16
      %v2763 = vrot.slane %v2761, 4
      %v2764 = vor.u32 %v2763, %v2759
      %v2765 = vrot.slane %v2764, 4
      %v2767 = vshrl.u32 %v2341, 16
      %v2769 = vrot.slane %v2767, 4
      %v2770 = vshll.u32 %v2341, 16
      %v2772 = vrot.slane %v2770, 5
      %v2773 = vor.u32 %v2769, %v2772
      %v2774 = vrot.slane %v2773, 4
      %v2776 = vshll.u32 %v2342, 16
      %v2778 = vrot.slane %v2776, 5
      %v2779 = vsel %vm2423, %v2774, %v2778
      %v2780 = vshrl.u32 %v2342, 16
      %v2782 = vrot.slane %v2780, 4
      %v2783 = vor.u32 %v2782, %v2778
      %v2784 = vrot.slane %v2783, 4
      %v2786 = vshrl.u32 %v2343, 16
      %v2788 = vrot.slane %v2786, 4
      %v2789 = vshll.u32 %v2343, 16
      %v2791 = vrot.slane %v2789, 5
      %v2792 = vor.u32 %v2788, %v2791
      %v2793 = vrot.slane %v2792, 4
      %v2795 = vshll.u32 %v2344, 16
      %v2797 = vrot.slane %v2795, 5
      %v2798 = vsel %vm2423, %v2793, %v2797
      %v2799 = vshrl.u32 %v2344, 16
      %v2801 = vrot.slane %v2799, 4
      %v2802 = vor.u32 %v2801, %v2797
      %v2803 = vrot.slane %v2802, 4
      %v2805 = vshrl.u32 %v2345, 16
      %v2807 = vrot.slane %v2805, 4
      %v2808 = vshll.u32 %v2345, 16
      %v2810 = vrot.slane %v2808, 5
      %v2811 = vor.u32 %v2807, %v2810
      %v2812 = vrot.slane %v2811, 4
      %v2814 = vshll.u32 %v2346, 16
      %v2816 = vrot.slane %v2814, 5
      %v2817 = vsel %vm2423, %v2812, %v2816
      %v2818 = vshrl.u32 %v2346, 16
      %v2820 = vrot.slane %v2818, 4
      %v2821 = vor.u32 %v2820, %v2816
      %v2822 = vrot.slane %v2821, 4
      %v2824 = vshrl.u32 %v2347, 16
      %v2826 = vrot.slane %v2824, 4
      %v2827 = vshll.u32 %v2347, 16
      %v2829 = vrot.slane %v2827, 5
      %v2830 = vor.u32 %v2826, %v2829
      %v2831 = vrot.slane %v2830, 4
      %v2833 = vshll.u32 %v2348, 16
      %v2835 = vrot.slane %v2833, 5
      %v2836 = vsel %vm2423, %v2831, %v2835
      %v2837 = vshrl.u32 %v2348, 16
      %v2839 = vrot.slane %v2837, 4
      %v2840 = vor.u32 %v2839, %v2835
      %v2841 = vrot.slane %v2840, 4
      %v2843 = vshrl.u32 %v2349, 16
      %v2845 = vrot.slane %v2843, 4
      %v2846 = vshll.u32 %v2349, 16
      %v2848 = vrot.slane %v2846, 5
      %v2849 = vor.u32 %v2845, %v2848
      %v2850 = vrot.slane %v2849, 4
      %v2852 = vshll.u32 %v2350, 16
      %v2854 = vrot.slane %v2852, 5
      %v2855 = vsel %vm2423, %v2850, %v2854
      %v2856 = vshrl.u32 %v2350, 16
      %v2858 = vrot.slane %v2856, 4
      %v2859 = vor.u32 %v2858, %v2854
      %v2860 = vrot.slane %v2859, 4
      %v2862 = vshrl.u32 %v2351, 16
      %v2864 = vrot.slane %v2862, 4
      %v2865 = vshll.u32 %v2351, 16
      %v2867 = vrot.slane %v2865, 5
      %v2868 = vor.u32 %v2864, %v2867
      %v2869 = vrot.slane %v2868, 4
      %v2871 = vshll.u32 %v2352, 16
      %v2873 = vrot.slane %v2871, 5
      %v2874 = vsel %vm2423, %v2869, %v2873
      %v2875 = vshrl.u32 %v2352, 16
      %v2877 = vrot.slane %v2875, 4
      %v2878 = vor.u32 %v2877, %v2873
      %v2879 = vrot.slane %v2878, 4
      %v2881 = vshrl.u32 %v2353, 16
      %v2883 = vrot.slane %v2881, 4
      %v2884 = vshll.u32 %v2353, 16
      %v2886 = vrot.slane %v2884, 5
      %v2887 = vor.u32 %v2883, %v2886
      %v2888 = vrot.slane %v2887, 4
      %v2890 = vshll.u32 %v2354, 16
      %v2892 = vrot.slane %v2890, 5
      %v2893 = vsel %vm2423, %v2888, %v2892
      %v2894 = vshrl.u32 %v2354, 16
      %v2896 = vrot.slane %v2894, 4
      %v2897 = vor.u32 %v2896, %v2892
      %v2898 = vrot.slane %v2897, 4
      %v2900 = vshrl.u32 %v2355, 16
      %v2902 = vrot.slane %v2900, 4
      %v2903 = vshll.u32 %v2355, 16
      %v2905 = vrot.slane %v2903, 5
      %v2906 = vor.u32 %v2902, %v2905
      %v2907 = vrot.slane %v2906, 4
      %v2909 = vshll.u32 %v2356, 16
      %v2911 = vrot.slane %v2909, 5
      %v2912 = vsel %vm2423, %v2907, %v2911
      %v2913 = vshrl.u32 %v2356, 16
      %v2915 = vrot.slane %v2913, 4
      %v2916 = vor.u32 %v2915, %v2911
      %v2917 = vrot.slane %v2916, 4
      %v2919 = vshrl.u32 %v2357, 16
      %v2921 = vrot.slane %v2919, 4
      %v2922 = vshll.u32 %v2357, 16
      %v2924 = vrot.slane %v2922, 5
      %v2925 = vor.u32 %v2921, %v2924
      %v2926 = vrot.slane %v2925, 4
      %v2928 = vshll.u32 %v2358, 16
      %v2930 = vrot.slane %v2928, 5
      %v2931 = vsel %vm2423, %v2926, %v2930
      %v2932 = vshrl.u32 %v2358, 16
      %v2934 = vrot.slane %v2932, 4
      %v2935 = vor.u32 %v2934, %v2930
      %v2936 = vrot.slane %v2935, 4
      %v2938 = vshrl.u32 %v2359, 16
      %v2940 = vrot.slane %v2938, 4
      %v2941 = vshll.u32 %v2359, 16
      %v2943 = vrot.slane %v2941, 5
      %v2944 = vor.u32 %v2940, %v2943
      %v2945 = vrot.slane %v2944, 4
      %v2947 = vshll.u32 %v2360, 16
      %v2949 = vrot.slane %v2947, 5
      %v2950 = vsel %vm2423, %v2945, %v2949
      %v2951 = vshrl.u32 %v2360, 16
      %v2953 = vrot.slane %v2951, 4
      %v2954 = vor.u32 %v2953, %v2949
      %v2955 = vrot.slane %v2954, 4
      %v2957 = vshrl.u32 %v2361, 16
      %v2959 = vrot.slane %v2957, 4
      %v2960 = vshll.u32 %v2361, 16
      %v2962 = vrot.slane %v2960, 5
      %v2963 = vor.u32 %v2959, %v2962
      %v2964 = vrot.slane %v2963, 4
      %v2966 = vshll.u32 %v2362, 16
      %v2968 = vrot.slane %v2966, 5
      %v2969 = vsel %vm2423, %v2964, %v2968
      %v2970 = vshrl.u32 %v2362, 16
      %v2972 = vrot.slane %v2970, 4
      %v2973 = vor.u32 %v2972, %v2968
      %v2974 = vrot.slane %v2973, 4
      %v2976 = vshrl.u32 %v2363, 16
      %v2978 = vrot.slane %v2976, 4
      %v2979 = vshll.u32 %v2363, 16
      %v2981 = vrot.slane %v2979, 5
      %v2982 = vor.u32 %v2978, %v2981
      %v2983 = vrot.slane %v2982, 4
      %v2985 = vshll.u32 %v2364, 16
      %v2987 = vrot.slane %v2985, 5
      %v2988 = vsel %vm2423, %v2983, %v2987
      %v2989 = vshrl.u32 %v2364, 16
      %v2991 = vrot.slane %v2989, 4
      %v2992 = vor.u32 %v2991, %v2987
      %v2993 = vrot.slane %v2992, 4
      %v2995 = vshrl.u32 %v2365, 16
      %v2997 = vrot.slane %v2995, 4
      %v2998 = vshll.u32 %v2365, 16
      %v3000 = vrot.slane %v2998, 5
      %v3001 = vor.u32 %v2997, %v3000
      %v3002 = vrot.slane %v3001, 4
      %v3004 = vshll.u32 %v2366, 16
      %v3006 = vrot.slane %v3004, 5
      %v3007 = vsel %vm2423, %v3002, %v3006
      %v3008 = vshrl.u32 %v2366, 16
      %v3010 = vrot.slane %v3008, 4
      %v3011 = vor.u32 %v3010, %v3006
      %v3012 = vrot.slane %v3011, 4
      %v3014 = vshrl.u32 %v2367, 16
      %v3016 = vrot.slane %v3014, 4
      %v3017 = vshll.u32 %v2367, 16
      %v3019 = vrot.slane %v3017, 5
      %v3020 = vor.u32 %v3016, %v3019
      %v3021 = vrot.slane %v3020, 4
      %v3023 = vshll.u32 %v2368, 16
      %v3025 = vrot.slane %v3023, 5
      %v3026 = vsel %vm2423, %v3021, %v3025
      %v3027 = vshrl.u32 %v2368, 16
      %v3029 = vrot.slane %v3027, 4
      %v3030 = vor.u32 %v3029, %v3025
      %v3031 = vrot.slane %v3030, 4
      %v3033 = vshrl.u32 %v2369, 16
      %v3035 = vrot.slane %v3033, 4
      %v3036 = vshll.u32 %v2369, 16
      %v3038 = vrot.slane %v3036, 5
      %v3039 = vor.u32 %v3035, %v3038
      %v3040 = vrot.slane %v3039, 4
      %v3042 = vshll.u32 %v2370, 16
      %v3044 = vrot.slane %v3042, 5
      %v3045 = vsel %vm2423, %v3040, %v3044
      %v3046 = vshrl.u32 %v2370, 16
      %v3048 = vrot.slane %v3046, 4
      %v3049 = vor.u32 %v3048, %v3044
      %v3050 = vrot.slane %v3049, 4
      %v3052 = vshrl.u32 %v2371, 16
      %v3054 = vrot.slane %v3052, 4
      %v3055 = vshll.u32 %v2371, 16
      %v3057 = vrot.slane %v3055, 5
      %v3058 = vor.u32 %v3054, %v3057
      %v3059 = vrot.slane %v3058, 4
      %v3061 = vshll.u32 %v2372, 16
      %v3063 = vrot.slane %v3061, 5
      %v3064 = vsel %vm2423, %v3059, %v3063
      %v3065 = vshrl.u32 %v2372, 16
      %v3067 = vrot.slane %v3065, 4
      %v3068 = vor.u32 %v3067, %v3063
      %v3069 = vrot.slane %v3068, 4
      %v3071 = vshrl.u32 %v2373, 16
      %v3073 = vrot.slane %v3071, 4
      %v3074 = vshll.u32 %v2373, 16
      %v3076 = vrot.slane %v3074, 5
      %v3077 = vor.u32 %v3073, %v3076
      %v3078 = vrot.slane %v3077, 4
      %v3080 = vshll.u32 %v2374, 16
      %v3082 = vrot.slane %v3080, 5
      %v3083 = vsel %vm2423, %v3078, %v3082
      %v3084 = vshrl.u32 %v2374, 16
      %v3086 = vrot.slane %v3084, 4
      %v3087 = vor.u32 %v3086, %v3082
      %v3088 = vrot.slane %v3087, 4
      %v3090 = vshrl.u32 %v2375, 16
      %v3092 = vrot.slane %v3090, 4
      %v3093 = vshll.u32 %v2375, 16
      %v3095 = vrot.slane %v3093, 5
      %v3096 = vor.u32 %v3092, %v3095
      %v3097 = vrot.slane %v3096, 4
      %v3099 = vshll.u32 %v2376, 16
      %v3101 = vrot.slane %v3099, 5
      %v3102 = vsel %vm2423, %v3097, %v3101
      %v3103 = vshrl.u32 %v2376, 16
      %v3105 = vrot.slane %v3103, 4
      %v3106 = vor.u32 %v3105, %v3101
      %v3107 = vrot.slane %v3106, 4
      %v3109 = vshrl.u32 %v2377, 16
      %v3111 = vrot.slane %v3109, 4
      %v3112 = vshll.u32 %v2377, 16
      %v3114 = vrot.slane %v3112, 5
      %v3115 = vor.u32 %v3111, %v3114
      %v3116 = vrot.slane %v3115, 4
      %v3118 = vshll.u32 %v2378, 16
      %v3120 = vrot.slane %v3118, 5
      %v3121 = vsel %vm2423, %v3116, %v3120
      %v3122 = vshrl.u32 %v2378, 16
      %v3124 = vrot.slane %v3122, 4
      %v3125 = vor.u32 %v3124, %v3120
      %v3126 = vrot.slane %v3125, 4
      %v3128 = vshrl.u32 %v2379, 16
      %v3130 = vrot.slane %v3128, 4
      %v3131 = vshll.u32 %v2379, 16
      %v3133 = vrot.slane %v3131, 5
      %v3134 = vor.u32 %v3130, %v3133
      %v3135 = vrot.slane %v3134, 4
      %v3137 = vshll.u32 %v2380, 16
      %v3139 = vrot.slane %v3137, 5
      %v3140 = vsel %vm2423, %v3135, %v3139
      %v3141 = vshrl.u32 %v2380, 16
      %v3143 = vrot.slane %v3141, 4
      %v3144 = vor.u32 %v3143, %v3139
      %v3145 = vrot.slane %v3144, 4
      %v3147 = vshrl.u32 %v2381, 16
      %v3149 = vrot.slane %v3147, 4
      %v3150 = vshll.u32 %v2381, 16
      %v3152 = vrot.slane %v3150, 5
      %v3153 = vor.u32 %v3149, %v3152
      %v3154 = vrot.slane %v3153, 4
      %v3156 = vshll.u32 %v2382, 16
      %v3158 = vrot.slane %v3156, 5
      %v3159 = vsel %vm2423, %v3154, %v3158
      %v3160 = vshrl.u32 %v2382, 16
      %v3162 = vrot.slane %v3160, 4
      %v3163 = vor.u32 %v3162, %v3158
      %v3164 = vrot.slane %v3163, 4
      %v3166 = vshrl.u32 %v2383, 16
      %v3168 = vrot.slane %v3166, 4
      %v3169 = vshll.u32 %v2383, 16
      %v3171 = vrot.slane %v3169, 5
      %v3172 = vor.u32 %v3168, %v3171
      %v3173 = vrot.slane %v3172, 4
      %v3175 = vshll.u32 %v2384, 16
      %v3177 = vrot.slane %v3175, 5
      %v3178 = vsel %vm2423, %v3173, %v3177
      %v3179 = vshrl.u32 %v2384, 16
      %v3181 = vrot.slane %v3179, 4
      %v3182 = vor.u32 %v3181, %v3177
      %v3183 = vrot.slane %v3182, 4
      %v3185 = vshrl.u32 %v2385, 16
      %v3187 = vrot.slane %v3185, 4
      %v3188 = vshll.u32 %v2385, 16
      %v3190 = vrot.slane %v3188, 5
      %v3191 = vor.u32 %v3187, %v3190
      %v3192 = vrot.slane %v3191, 4
      %v3194 = vshll.u32 %v2386, 16
      %v3196 = vrot.slane %v3194, 5
      %v3197 = vsel %vm2423, %v3192, %v3196
      %v3198 = vshrl.u32 %v2386, 16
      %v3200 = vrot.slane %v3198, 4
      %v3201 = vor.u32 %v3200, %v3196
      %v3202 = vrot.slane %v3201, 4
      %v3204 = vshrl.u32 %v2387, 16
      %v3206 = vrot.slane %v3204, 4
      %v3207 = vshll.u32 %v2387, 16
      %v3209 = vrot.slane %v3207, 5
      %v3210 = vor.u32 %v3206, %v3209
      %v3211 = vrot.slane %v3210, 4
      %v3213 = vshll.u32 %v2388, 16
      %v3215 = vrot.slane %v3213, 5
      %v3216 = vsel %vm2423, %v3211, %v3215
      %v3217 = vshrl.u32 %v2388, 16
      %v3219 = vrot.slane %v3217, 4
      %v3220 = vor.u32 %v3219, %v3215
      %v3221 = vrot.slane %v3220, 4
      %v3223 = vshrl.u32 %v2389, 16
      %v3225 = vrot.slane %v3223, 4
      %v3226 = vshll.u32 %v2389, 16
      %v3228 = vrot.slane %v3226, 5
      %v3229 = vor.u32 %v3225, %v3228
      %v3230 = vrot.slane %v3229, 4
      %v3232 = vshll.u32 %v2390, 16
      %v3234 = vrot.slane %v3232, 5
      %v3235 = vsel %vm2423, %v3230, %v3234
      %v3236 = vshrl.u32 %v2390, 16
      %v3238 = vrot.slane %v3236, 4
      %v3239 = vor.u32 %v3238, %v3234
      %v3240 = vrot.slane %v3239, 4
      %v3242 = vshrl.u32 %v2391, 16
      %v3244 = vrot.slane %v3242, 4
      %v3245 = vshll.u32 %v2391, 16
      %v3247 = vrot.slane %v3245, 5
      %v3248 = vor.u32 %v3244, %v3247
      %v3249 = vrot.slane %v3248, 4
      %v3251 = vshll.u32 %v2392, 16
      %v3253 = vrot.slane %v3251, 5
      %v3254 = vsel %vm2423, %v3249, %v3253
      %v3255 = vshrl.u32 %v2392, 16
      %v3257 = vrot.slane %v3255, 4
      %v3258 = vor.u32 %v3257, %v3253
      %v3259 = vrot.slane %v3258, 4
      %v3261 = vshrl.u32 %v2393, 16
      %v3263 = vrot.slane %v3261, 4
      %v3264 = vshll.u32 %v2393, 16
      %v3266 = vrot.slane %v3264, 5
      %v3267 = vor.u32 %v3263, %v3266
      %v3268 = vrot.slane %v3267, 4
      %v3270 = vshll.u32 %v2394, 16
      %v3272 = vrot.slane %v3270, 5
      %v3273 = vsel %vm2423, %v3268, %v3272
      %v3274 = vshrl.u32 %v2394, 16
      %v3276 = vrot.slane %v3274, 4
      %v3277 = vor.u32 %v3276, %v3272
      %v3278 = vrot.slane %v3277, 4
      %v3280 = vshrl.u32 %v2395, 16
      %v3282 = vrot.slane %v3280, 4
      %v3283 = vshll.u32 %v2395, 16
      %v3285 = vrot.slane %v3283, 5
      %v3286 = vor.u32 %v3282, %v3285
      %v3287 = vrot.slane %v3286, 4
      %v3289 = vshll.u32 %v2396, 16
      %v3291 = vrot.slane %v3289, 5
      %v3292 = vsel %vm2423, %v3287, %v3291
      %v3293 = vshrl.u32 %v2396, 16
      %v3295 = vrot.slane %v3293, 4
      %v3296 = vor.u32 %v3295, %v3291
      %v3297 = vrot.slane %v3296, 4
      %v3299 = vshrl.u32 %v2397, 16
      %v3301 = vrot.slane %v3299, 4
      %v3302 = vshll.u32 %v2397, 16
      %v3304 = vrot.slane %v3302, 5
      %v3305 = vor.u32 %v3301, %v3304
      %v3306 = vrot.slane %v3305, 4
      %v3308 = vshll.u32 %v2398, 16
      %v3310 = vrot.slane %v3308, 5
      %v3311 = vsel %vm2423, %v3306, %v3310
      %v3312 = vshrl.u32 %v2398, 16
      %v3314 = vrot.slane %v3312, 4
      %v3315 = vor.u32 %v3314, %v3310
      %v3316 = vrot.slane %v3315, 4
      %v3318 = vshrl.u32 %v2399, 16
      %v3320 = vrot.slane %v3318, 4
      %v3321 = vshll.u32 %v2399, 16
      %v3323 = vrot.slane %v3321, 5
      %v3324 = vor.u32 %v3320, %v3323
      %v3325 = vrot.slane %v3324, 4
      %v3327 = vshll.u32 %v2400, 16
      %v3329 = vrot.slane %v3327, 5
      %v3330 = vsel %vm2423, %v3325, %v3329
      %v3331 = vshrl.u32 %v2400, 16
      %v3333 = vrot.slane %v3331, 4
      %v3334 = vor.u32 %v3333, %v3329
      %v3335 = vrot.slane %v3334, 4
      %v3337 = vshrl.u32 %v2401, 16
      %v3339 = vrot.slane %v3337, 4
      %v3340 = vshll.u32 %v2401, 16
      %v3342 = vrot.slane %v3340, 5
      %v3343 = vor.u32 %v3339, %v3342
      %v3344 = vrot.slane %v3343, 4
      %v3346 = vshll.u32 %v2402, 16
      %v3348 = vrot.slane %v3346, 5
      %v3349 = vsel %vm2423, %v3344, %v3348
      %v3350 = vshrl.u32 %v2402, 16
      %v3352 = vrot.slane %v3350, 4
      %v3353 = vor.u32 %v3352, %v3348
      %v3354 = vrot.slane %v3353, 4
      %v3356 = vshrl.u32 %v2403, 16
      %v3358 = vrot.slane %v3356, 4
      %v3359 = vshll.u32 %v2403, 16
      %v3361 = vrot.slane %v3359, 5
      %v3362 = vor.u32 %v3358, %v3361
      %v3363 = vrot.slane %v3362, 4
      %v3365 = vshll.u32 %v2404, 16
      %v3367 = vrot.slane %v3365, 5
      %v3368 = vsel %vm2423, %v3363, %v3367
      %v3369 = vshrl.u32 %v2404, 16
      %v3371 = vrot.slane %v3369, 4
      %v3372 = vor.u32 %v3371, %v3367
      %v3373 = vrot.slane %v3372, 4
      %v3375 = vshrl.u32 %v2405, 16
      %v3377 = vrot.slane %v3375, 4
      %v3378 = vshll.u32 %v2405, 16
      %v3380 = vrot.slane %v3378, 5
      %v3381 = vor.u32 %v3377, %v3380
      %v3382 = vrot.slane %v3381, 4
      %v3384 = vshll.u32 %v2406, 16
      %v3386 = vrot.slane %v3384, 5
      %v3387 = vsel %vm2423, %v3382, %v3386
      %v3388 = vshrl.u32 %v2406, 16
      %v3390 = vrot.slane %v3388, 4
      %v3391 = vor.u32 %v3390, %v3386
      %v3392 = vrot.slane %v3391, 4
      %v3394 = vshrl.u32 %v2407, 16
      %v3396 = vrot.slane %v3394, 4
      %v3397 = vshll.u32 %v2407, 16
      %v3399 = vrot.slane %v3397, 5
      %v3400 = vor.u32 %v3396, %v3399
      %v3401 = vrot.slane %v3400, 4
      %v3403 = vshll.u32 %v2408, 16
      %v3405 = vrot.slane %v3403, 5
      %v3406 = vsel %vm2423, %v3401, %v3405
      %v3407 = vshrl.u32 %v2408, 16
      %v3409 = vrot.slane %v3407, 4
      %v3410 = vor.u32 %v3409, %v3405
      %v3411 = vrot.slane %v3410, 4
      %v3413 = vshrl.u32 %v2409, 16
      %v3415 = vrot.slane %v3413, 4
      %v3416 = vshll.u32 %v2409, 16
      %v3418 = vrot.slane %v3416, 5
      %v3419 = vor.u32 %v3415, %v3418
      %v3420 = vrot.slane %v3419, 4
      %v3422 = vshll.u32 %v2410, 16
      %v3424 = vrot.slane %v3422, 5
      %v3425 = vsel %vm2423, %v3420, %v3424
      %v3426 = vshrl.u32 %v2410, 16
      %v3428 = vrot.slane %v3426, 4
      %v3429 = vor.u32 %v3428, %v3424
      %v3430 = vrot.slane %v3429, 4
      %v3432 = vshrl.u32 %v2411, 16
      %v3434 = vrot.slane %v3432, 4
      %v3435 = vshll.u32 %v2411, 16
      %v3437 = vrot.slane %v3435, 5
      %v3438 = vor.u32 %v3434, %v3437
      %v3439 = vrot.slane %v3438, 4
      %v3441 = vshll.u32 %v2412, 16
      %v3443 = vrot.slane %v3441, 5
      %v3444 = vsel %vm2423, %v3439, %v3443
      %v3445 = vshrl.u32 %v2412, 16
      %v3447 = vrot.slane %v3445, 4
      %v3448 = vor.u32 %v3447, %v3443
      %v3449 = vrot.slane %v3448, 4
      %v3451 = vshrl.u32 %v2413, 16
      %v3453 = vrot.slane %v3451, 4
      %v3454 = vshll.u32 %v2413, 16
      %v3456 = vrot.slane %v3454, 5
      %v3457 = vor.u32 %v3453, %v3456
      %v3458 = vrot.slane %v3457, 4
      %v3460 = vshll.u32 %v2414, 16
      %v3462 = vrot.slane %v3460, 5
      %v3463 = vsel %vm2423, %v3458, %v3462
      %v3464 = vshrl.u32 %v2414, 16
      %v3466 = vrot.slane %v3464, 4
      %v3467 = vor.u32 %v3466, %v3462
      %v3468 = vrot.slane %v3467, 4
      %v3470 = vshrl.u32 %v2415, 16
      %v3472 = vrot.slane %v3470, 4
      %v3473 = vshll.u32 %v2415, 16
      %v3475 = vrot.slane %v3473, 5
      %v3476 = vor.u32 %v3472, %v3475
      %v3477 = vrot.slane %v3476, 4
      %v3479 = vshll.u32 %v2416, 16
      %v3481 = vrot.slane %v3479, 5
      %v3482 = vsel %vm2423, %v3477, %v3481
      %v3483 = vshrl.u32 %v2416, 16
      %v3485 = vrot.slane %v3483, 4
      %v3486 = vor.u32 %v3485, %v3481
      %v3487 = vrot.slane %v3486, 4
      %v3489 = vshrl.u32 %v2417, 16
      %v3491 = vrot.slane %v3489, 4
      %v3492 = vshll.u32 %v2417, 16
      %v3494 = vrot.slane %v3492, 5
      %v3495 = vor.u32 %v3491, %v3494
      %v3496 = vrot.slane %v3495, 4
      %v3498 = vshll.u32 %v2418, 16
      %v3500 = vrot.slane %v3498, 5
      %v3501 = vsel %vm2423, %v3496, %v3500
      %v3502 = vshrl.u32 %v2418, 16
      %v3504 = vrot.slane %v3502, 4
      %v3505 = vor.u32 %v3504, %v3500
      %v3506 = vrot.slane %v3505, 4
      %v3508 = vshrl.u32 %v2419, 16
      %v3510 = vrot.slane %v3508, 4
      %v3511 = vshll.u32 %v2419, 16
      %v3513 = vrot.slane %v3511, 5
      %v3514 = vor.u32 %v3510, %v3513
      %v3515 = vrot.slane %v3514, 4
      %v3517 = vshll.u32 %v2420, 16
      %v3519 = vrot.slane %v3517, 5
      %v3520 = vsel %vm2423, %v3515, %v3519
      %v3521 = vshrl.u32 %v2420, 16
      %v3523 = vrot.slane %v3521, 4
      %v3524 = vor.u32 %v3523, %v3519
      %v3525 = vrot.slane %v3524, 4
      %3526 = vrot.lane.b32.xlu0 %v2437, 16
      %v3527 = vpop.permute.xlu0 %3526
      %3528 = vrot.lane.b32.xlu0 %v2442, 16
      %v3529 = vpop.permute.xlu0 %3528
      %3530 = vrot.lane.b32.xlu0 %v2456, 16
      %v3531 = vpop.permute.xlu0 %3530
      %3532 = vrot.lane.b32.xlu0 %v2461, 16
      %v3533 = vpop.permute.xlu0 %3532
      %3534 = vrot.lane.b32.xlu0 %v2475, 16
      %v3535 = vpop.permute.xlu0 %3534
      %3536 = vrot.lane.b32.xlu0 %v2480, 16
      %v3537 = vpop.permute.xlu0 %3536
      %3538 = vrot.lane.b32.xlu0 %v2494, 16
      %v3539 = vpop.permute.xlu0 %3538
      %3540 = vrot.lane.b32.xlu0 %v2499, 16
      %v3541 = vpop.permute.xlu0 %3540
      %3542 = vrot.lane.b32.xlu0 %v2513, 16
      %v3543 = vpop.permute.xlu0 %3542
      %3544 = vrot.lane.b32.xlu0 %v2518, 16
      %v3545 = vpop.permute.xlu0 %3544
      %3546 = vrot.lane.b32.xlu0 %v2532, 16
      %v3547 = vpop.permute.xlu0 %3546
      %3548 = vrot.lane.b32.xlu0 %v2537, 16
      %v3549 = vpop.permute.xlu0 %3548
      %3550 = vrot.lane.b32.xlu0 %v2551, 16
      %v3551 = vpop.permute.xlu0 %3550
      %3552 = vrot.lane.b32.xlu0 %v2556, 16
      %v3553 = vpop.permute.xlu0 %3552
      %3554 = vrot.lane.b32.xlu0 %v2570, 16
      %v3555 = vpop.permute.xlu0 %3554
      %3556 = vrot.lane.b32.xlu0 %v2575, 16
      %v3557 = vpop.permute.xlu0 %3556
      %3558 = vrot.lane.b32.xlu0 %v2589, 16
      %v3559 = vpop.permute.xlu0 %3558
      %3560 = vrot.lane.b32.xlu0 %v2594, 16
      %v3561 = vpop.permute.xlu0 %3560
      %3562 = vrot.lane.b32.xlu0 %v2608, 16
      %v3563 = vpop.permute.xlu0 %3562
      %3564 = vrot.lane.b32.xlu0 %v2613, 16
      %v3565 = vpop.permute.xlu0 %3564
      %3566 = vrot.lane.b32.xlu0 %v2627, 16
      %v3567 = vpop.permute.xlu0 %3566
      %3568 = vrot.lane.b32.xlu0 %v2632, 16
      %v3569 = vpop.permute.xlu0 %3568
      %3570 = vrot.lane.b32.xlu0 %v2646, 16
      %v3571 = vpop.permute.xlu0 %3570
      %3572 = vrot.lane.b32.xlu0 %v2651, 16
      %v3573 = vpop.permute.xlu0 %3572
      %3574 = vrot.lane.b32.xlu0 %v2665, 16
      %v3575 = vpop.permute.xlu0 %3574
      %3576 = vrot.lane.b32.xlu0 %v2670, 16
      %v3577 = vpop.permute.xlu0 %3576
      %3578 = vrot.lane.b32.xlu0 %v2684, 16
      %v3579 = vpop.permute.xlu0 %3578
      %3580 = vrot.lane.b32.xlu0 %v2689, 16
      %v3581 = vpop.permute.xlu0 %3580
      %3582 = vrot.lane.b32.xlu0 %v2703, 16
      %v3583 = vpop.permute.xlu0 %3582
      %3584 = vrot.lane.b32.xlu0 %v2708, 16
      %v3585 = vpop.permute.xlu0 %3584
      %3586 = vrot.lane.b32.xlu0 %v2722, 16
      %v3587 = vpop.permute.xlu0 %3586
      %3588 = vrot.lane.b32.xlu0 %v2727, 16
      %v3589 = vpop.permute.xlu0 %3588
      %3590 = vrot.lane.b32.xlu0 %v2741, 16
      %v3591 = vpop.permute.xlu0 %3590
      %3592 = vrot.lane.b32.xlu0 %v2746, 16
      %v3593 = vpop.permute.xlu0 %3592
      %3594 = vrot.lane.b32.xlu0 %v2760, 16
      %v3595 = vpop.permute.xlu0 %3594
      %3596 = vrot.lane.b32.xlu0 %v2765, 16
      %v3597 = vpop.permute.xlu0 %3596
      %3598 = vrot.lane.b32.xlu0 %v2779, 16
      %v3599 = vpop.permute.xlu0 %3598
      %3600 = vrot.lane.b32.xlu0 %v2784, 16
      %v3601 = vpop.permute.xlu0 %3600
      %3602 = vrot.lane.b32.xlu0 %v2798, 16
      %v3603 = vpop.permute.xlu0 %3602
      %3604 = vrot.lane.b32.xlu0 %v2803, 16
      %v3605 = vpop.permute.xlu0 %3604
      %3606 = vrot.lane.b32.xlu0 %v2817, 16
      %v3607 = vpop.permute.xlu0 %3606
      %3608 = vrot.lane.b32.xlu0 %v2822, 16
      %v3609 = vpop.permute.xlu0 %3608
      %3610 = vrot.lane.b32.xlu0 %v2836, 16
      %v3611 = vpop.permute.xlu0 %3610
      %3612 = vrot.lane.b32.xlu0 %v2841, 16
      %v3613 = vpop.permute.xlu0 %3612
      %3614 = vrot.lane.b32.xlu0 %v2855, 16
      %v3615 = vpop.permute.xlu0 %3614
      %3616 = vrot.lane.b32.xlu0 %v2860, 16
      %v3617 = vpop.permute.xlu0 %3616
      %3618 = vrot.lane.b32.xlu0 %v2874, 16
      %v3619 = vpop.permute.xlu0 %3618
      %3620 = vrot.lane.b32.xlu0 %v2879, 16
      %v3621 = vpop.permute.xlu0 %3620
      %3622 = vrot.lane.b32.xlu0 %v2893, 16
      %v3623 = vpop.permute.xlu0 %3622
      %3624 = vrot.lane.b32.xlu0 %v2898, 16
      %v3625 = vpop.permute.xlu0 %3624
      %3626 = vrot.lane.b32.xlu0 %v2912, 16
      %v3627 = vpop.permute.xlu0 %3626
      %3628 = vrot.lane.b32.xlu0 %v2917, 16
      %v3629 = vpop.permute.xlu0 %3628
      %3630 = vrot.lane.b32.xlu0 %v2931, 16
      %v3631 = vpop.permute.xlu0 %3630
      %3632 = vrot.lane.b32.xlu0 %v2936, 16
      %v3633 = vpop.permute.xlu0 %3632
      %3634 = vrot.lane.b32.xlu0 %v2950, 16
      %v3635 = vpop.permute.xlu0 %3634
      %3636 = vrot.lane.b32.xlu0 %v2955, 16
      %v3637 = vpop.permute.xlu0 %3636
      %3638 = vrot.lane.b32.xlu0 %v2969, 16
      %v3639 = vpop.permute.xlu0 %3638
      %3640 = vrot.lane.b32.xlu0 %v2974, 16
      %v3641 = vpop.permute.xlu0 %3640
      %3642 = vrot.lane.b32.xlu0 %v2988, 16
      %v3643 = vpop.permute.xlu0 %3642
      %3644 = vrot.lane.b32.xlu0 %v2993, 16
      %v3645 = vpop.permute.xlu0 %3644
      %3646 = vrot.lane.b32.xlu0 %v3007, 16
      %v3647 = vpop.permute.xlu0 %3646
      %3648 = vrot.lane.b32.xlu0 %v3012, 16
      %v3649 = vpop.permute.xlu0 %3648
      %3650 = vrot.lane.b32.xlu0 %v3026, 16
      %v3651 = vpop.permute.xlu0 %3650
      %3652 = vrot.lane.b32.xlu0 %v3031, 16
      %v3653 = vpop.permute.xlu0 %3652
      %3654 = vrot.lane.b32.xlu0 %v3045, 16
      %v3655 = vpop.permute.xlu0 %3654
      %3656 = vrot.lane.b32.xlu0 %v3050, 16
      %v3657 = vpop.permute.xlu0 %3656
      %3658 = vrot.lane.b32.xlu0 %v3064, 16
      %v3659 = vpop.permute.xlu0 %3658
      %3660 = vrot.lane.b32.xlu0 %v3069, 16
      %v3661 = vpop.permute.xlu0 %3660
      %3662 = vrot.lane.b32.xlu0 %v3083, 16
      %v3663 = vpop.permute.xlu0 %3662
      %3664 = vrot.lane.b32.xlu0 %v3088, 16
      %v3665 = vpop.permute.xlu0 %3664
      %3666 = vrot.lane.b32.xlu0 %v3102, 16
      %v3667 = vpop.permute.xlu0 %3666
      %3668 = vrot.lane.b32.xlu0 %v3107, 16
      %v3669 = vpop.permute.xlu0 %3668
      %3670 = vrot.lane.b32.xlu0 %v3121, 16
      %v3671 = vpop.permute.xlu0 %3670
      %3672 = vrot.lane.b32.xlu0 %v3126, 16
      %v3673 = vpop.permute.xlu0 %3672
      %3674 = vrot.lane.b32.xlu0 %v3140, 16
      %v3675 = vpop.permute.xlu0 %3674
      %3676 = vrot.lane.b32.xlu0 %v3145, 16
      %v3677 = vpop.permute.xlu0 %3676
      %3678 = vrot.lane.b32.xlu0 %v3159, 16
      %v3679 = vpop.permute.xlu0 %3678
      %3680 = vrot.lane.b32.xlu0 %v3164, 16
      %v3681 = vpop.permute.xlu0 %3680
      %3682 = vrot.lane.b32.xlu0 %v3178, 16
      %v3683 = vpop.permute.xlu0 %3682
      %3684 = vrot.lane.b32.xlu0 %v3183, 16
      %v3685 = vpop.permute.xlu0 %3684
      %3686 = vrot.lane.b32.xlu0 %v3197, 16
      %v3687 = vpop.permute.xlu0 %3686
      %3688 = vrot.lane.b32.xlu0 %v3202, 16
      %v3689 = vpop.permute.xlu0 %3688
      %3690 = vrot.lane.b32.xlu0 %v3216, 16
      %v3691 = vpop.permute.xlu0 %3690
      %3692 = vrot.lane.b32.xlu0 %v3221, 16
      %v3693 = vpop.permute.xlu0 %3692
      %3694 = vrot.lane.b32.xlu0 %v3235, 16
      %v3695 = vpop.permute.xlu0 %3694
      %3696 = vrot.lane.b32.xlu0 %v3240, 16
      %v3697 = vpop.permute.xlu0 %3696
      %3698 = vrot.lane.b32.xlu0 %v3254, 16
      %v3699 = vpop.permute.xlu0 %3698
      %3700 = vrot.lane.b32.xlu0 %v3259, 16
      %v3701 = vpop.permute.xlu0 %3700
      %3702 = vrot.lane.b32.xlu0 %v3273, 16
      %v3703 = vpop.permute.xlu0 %3702
      %3704 = vrot.lane.b32.xlu0 %v3278, 16
      %v3705 = vpop.permute.xlu0 %3704
      %3706 = vrot.lane.b32.xlu0 %v3292, 16
      %v3707 = vpop.permute.xlu0 %3706
      %3708 = vrot.lane.b32.xlu0 %v3297, 16
      %v3709 = vpop.permute.xlu0 %3708
      %3710 = vrot.lane.b32.xlu0 %v3311, 16
      %v3711 = vpop.permute.xlu0 %3710
      %3712 = vrot.lane.b32.xlu0 %v3316, 16
      %v3713 = vpop.permute.xlu0 %3712
      %3714 = vrot.lane.b32.xlu0 %v3330, 16
      %v3715 = vpop.permute.xlu0 %3714
      %3716 = vrot.lane.b32.xlu0 %v3335, 16
      %v3717 = vpop.permute.xlu0 %3716
      %3718 = vrot.lane.b32.xlu0 %v3349, 16
      %v3719 = vpop.permute.xlu0 %3718
      %3720 = vrot.lane.b32.xlu0 %v3354, 16
      %v3721 = vpop.permute.xlu0 %3720
      %3722 = vrot.lane.b32.xlu0 %v3368, 16
      %v3723 = vpop.permute.xlu0 %3722
      %3724 = vrot.lane.b32.xlu0 %v3373, 16
      %v3725 = vpop.permute.xlu0 %3724
      %3726 = vrot.lane.b32.xlu0 %v3387, 16
      %v3727 = vpop.permute.xlu0 %3726
      %3728 = vrot.lane.b32.xlu0 %v3392, 16
      %v3729 = vpop.permute.xlu0 %3728
      %3730 = vrot.lane.b32.xlu0 %v3406, 16
      %v3731 = vpop.permute.xlu0 %3730
      %3732 = vrot.lane.b32.xlu0 %v3411, 16
      %v3733 = vpop.permute.xlu0 %3732
      %3734 = vrot.lane.b32.xlu0 %v3425, 16
      %v3735 = vpop.permute.xlu0 %3734
      %3736 = vrot.lane.b32.xlu0 %v3430, 16
      %v3737 = vpop.permute.xlu0 %3736
      %3738 = vrot.lane.b32.xlu0 %v3444, 16
      %v3739 = vpop.permute.xlu0 %3738
      %3740 = vrot.lane.b32.xlu0 %v3449, 16
      %v3741 = vpop.permute.xlu0 %3740
      %3742 = vrot.lane.b32.xlu0 %v3463, 16
      %v3743 = vpop.permute.xlu0 %3742
      %3744 = vrot.lane.b32.xlu0 %v3468, 16
      %v3745 = vpop.permute.xlu0 %3744
      %3746 = vrot.lane.b32.xlu0 %v3482, 16
      %v3747 = vpop.permute.xlu0 %3746
      %3748 = vrot.lane.b32.xlu0 %v3487, 16
      %v3749 = vpop.permute.xlu0 %3748
      %3750 = vrot.lane.b32.xlu0 %v3501, 16
      %v3751 = vpop.permute.xlu0 %3750
      %3752 = vrot.lane.b32.xlu0 %v3506, 16
      %v3753 = vpop.permute.xlu0 %3752
      %3754 = vrot.lane.b32.xlu0 %v3520, 16
      %v3755 = vpop.permute.xlu0 %3754
      %3756 = vrot.lane.b32.xlu0 %v3525, 16
      %v3757 = vpop.permute.xlu0 %3756
      %vm3874 = vcmask 388352
      %3875 = vst.msk [vmem:[#allocation2] sm:$0xf] %vm3874, %v3527
      %vm3876 = vcmask 388352
      %vm3877 = vmand %vm3876, %vm2421
      %v3878 = vld [vmem:[#allocation2 + $0x4] sm:$0xf]
      %v3879 = vsel %vm3877, %v3529, %v3878
      %3880 = vst [vmem:[#allocation2 + $0x4] sm:$0xf] %v3879
      %3881 = vst.msk [vmem:[#allocation2 + $0x8] sm:$0xf] %vm3874, %v3531
      %v3882 = vld [vmem:[#allocation2 + $0xc] sm:$0xf]
      %v3883 = vsel %vm3877, %v3533, %v3882
      %3884 = vst [vmem:[#allocation2 + $0xc] sm:$0xf] %v3883
      %3885 = vst.msk [vmem:[#allocation2 + $0x10] sm:$0xf] %vm3874, %v3535
      %v3886 = vld [vmem:[#allocation2 + $0x14] sm:$0xf]
      %v3887 = vsel %vm3877, %v3537, %v3886
      %3888 = vst [vmem:[#allocation2 + $0x14] sm:$0xf] %v3887
      %3889 = vst.msk [vmem:[#allocation2 + $0x18] sm:$0xf] %vm3874, %v3539
      %v3890 = vld [vmem:[#allocation2 + $0x1c] sm:$0xf]
      %v3891 = vsel %vm3877, %v3541, %v3890
      %3892 = vst [vmem:[#allocation2 + $0x1c] sm:$0xf] %v3891
      %3893 = vst.msk [vmem:[#allocation2 + $0x20] sm:$0xf] %vm3874, %v3543
      %v3894 = vld [vmem:[#allocation2 + $0x24] sm:$0xf]
      %v3895 = vsel %vm3877, %v3545, %v3894
      %3896 = vst [vmem:[#allocation2 + $0x24] sm:$0xf] %v3895
      %3897 = vst.msk [vmem:[#allocation2 + $0x28] sm:$0xf] %vm3874, %v3547
      %v3898 = vld [vmem:[#allocation2 + $0x2c] sm:$0xf]
      %v3899 = vsel %vm3877, %v3549, %v3898
      %3900 = vst [vmem:[#allocation2 + $0x2c] sm:$0xf] %v3899
      %3901 = vst.msk [vmem:[#allocation2 + $0x30] sm:$0xf] %vm3874, %v3551
      %v3902 = vld [vmem:[#allocation2 + $0x34] sm:$0xf]
      %v3903 = vsel %vm3877, %v3553, %v3902
      %3904 = vst [vmem:[#allocation2 + $0x34] sm:$0xf] %v3903
      %3905 = vst.msk [vmem:[#allocation2 + $0x38] sm:$0xf] %vm3874, %v3555
      %v3906 = vld [vmem:[#allocation2 + $0x3c] sm:$0xf]
      %v3907 = vsel %vm3877, %v3557, %v3906
      %3908 = vst [vmem:[#allocation2 + $0x3c] sm:$0xf] %v3907
      %3909 = vst.msk [vmem:[#allocation2 + $0x40] sm:$0xf] %vm3874, %v3559
      %v3910 = vld [vmem:[#allocation2 + $0x44] sm:$0xf]
      %v3911 = vsel %vm3877, %v3561, %v3910
      %3912 = vst [vmem:[#allocation2 + $0x44] sm:$0xf] %v3911
      %3913 = vst.msk [vmem:[#allocation2 + $0x48] sm:$0xf] %vm3874, %v3563
      %v3914 = vld [vmem:[#allocation2 + $0x4c] sm:$0xf]
      %v3915 = vsel %vm3877, %v3565, %v3914
      %3916 = vst [vmem:[#allocation2 + $0x4c] sm:$0xf] %v3915
      %3917 = vst.msk [vmem:[#allocation2 + $0x50] sm:$0xf] %vm3874, %v3567
      %v3918 = vld [vmem:[#allocation2 + $0x54] sm:$0xf]
      %v3919 = vsel %vm3877, %v3569, %v3918
      %3920 = vst [vmem:[#allocation2 + $0x54] sm:$0xf] %v3919
      %3921 = vst.msk [vmem:[#allocation2 + $0x58] sm:$0xf] %vm3874, %v3571
      %v3922 = vld [vmem:[#allocation2 + $0x5c] sm:$0xf]
      %v3923 = vsel %vm3877, %v3573, %v3922
      %3924 = vst [vmem:[#allocation2 + $0x5c] sm:$0xf] %v3923
      %3925 = vst.msk [vmem:[#allocation2 + $0x60] sm:$0xf] %vm3874, %v3575
      %v3926 = vld [vmem:[#allocation2 + $0x64] sm:$0xf]
      %v3927 = vsel %vm3877, %v3577, %v3926
      %3928 = vst [vmem:[#allocation2 + $0x64] sm:$0xf] %v3927
      %3929 = vst.msk [vmem:[#allocation2 + $0x68] sm:$0xf] %vm3874, %v3579
      %v3930 = vld [vmem:[#allocation2 + $0x6c] sm:$0xf]
      %v3931 = vsel %vm3877, %v3581, %v3930
      %3932 = vst [vmem:[#allocation2 + $0x6c] sm:$0xf] %v3931
      %3933 = vst.msk [vmem:[#allocation2 + $0x70] sm:$0xf] %vm3874, %v3583
      %v3934 = vld [vmem:[#allocation2 + $0x74] sm:$0xf]
      %v3935 = vsel %vm3877, %v3585, %v3934
      %3936 = vst [vmem:[#allocation2 + $0x74] sm:$0xf] %v3935
      %3937 = vst.msk [vmem:[#allocation2 + $0x78] sm:$0xf] %vm3874, %v3587
      %v3938 = vld [vmem:[#allocation2 + $0x7c] sm:$0xf]
      %v3939 = vsel %vm3877, %v3589, %v3938
      %3940 = vst [vmem:[#allocation2 + $0x7c] sm:$0xf] %v3939
      %3941 = vst.msk [vmem:[#allocation2 + $0x80] sm:$0xf] %vm3874, %v3591
      %v3942 = vld [vmem:[#allocation2 + $0x84] sm:$0xf]
      %v3943 = vsel %vm3877, %v3593, %v3942
      %3944 = vst [vmem:[#allocation2 + $0x84] sm:$0xf] %v3943
      %3945 = vst.msk [vmem:[#allocation2 + $0x88] sm:$0xf] %vm3874, %v3595
      %v3946 = vld [vmem:[#allocation2 + $0x8c] sm:$0xf]
      %v3947 = vsel %vm3877, %v3597, %v3946
      %3948 = vst [vmem:[#allocation2 + $0x8c] sm:$0xf] %v3947
      %3949 = vst.msk [vmem:[#allocation2 + $0x90] sm:$0xf] %vm3874, %v3599
      %v3950 = vld [vmem:[#allocation2 + $0x94] sm:$0xf]
      %v3951 = vsel %vm3877, %v3601, %v3950
      %3952 = vst [vmem:[#allocation2 + $0x94] sm:$0xf] %v3951
      %3953 = vst.msk [vmem:[#allocation2 + $0x98] sm:$0xf] %vm3874, %v3603
      %v3954 = vld [vmem:[#allocation2 + $0x9c] sm:$0xf]
      %v3955 = vsel %vm3877, %v3605, %v3954
      %3956 = vst [vmem:[#allocation2 + $0x9c] sm:$0xf] %v3955
      %3957 = vst.msk [vmem:[#allocation2 + $0xa0] sm:$0xf] %vm3874, %v3607
      %v3958 = vld [vmem:[#allocation2 + $0xa4] sm:$0xf]
      %v3959 = vsel %vm3877, %v3609, %v3958
      %3960 = vst [vmem:[#allocation2 + $0xa4] sm:$0xf] %v3959
      %3961 = vst.msk [vmem:[#allocation2 + $0xa8] sm:$0xf] %vm3874, %v3611
      %v3962 = vld [vmem:[#allocation2 + $0xac] sm:$0xf]
      %v3963 = vsel %vm3877, %v3613, %v3962
      %3964 = vst [vmem:[#allocation2 + $0xac] sm:$0xf] %v3963
      %3965 = vst.msk [vmem:[#allocation2 + $0xb0] sm:$0xf] %vm3874, %v3615
      %v3966 = vld [vmem:[#allocation2 + $0xb4] sm:$0xf]
      %v3967 = vsel %vm3877, %v3617, %v3966
      %3968 = vst [vmem:[#allocation2 + $0xb4] sm:$0xf] %v3967
      %3969 = vst.msk [vmem:[#allocation2 + $0xb8] sm:$0xf] %vm3874, %v3619
      %v3970 = vld [vmem:[#allocation2 + $0xbc] sm:$0xf]
      %v3971 = vsel %vm3877, %v3621, %v3970
      %3972 = vst [vmem:[#allocation2 + $0xbc] sm:$0xf] %v3971
      %3973 = vst.msk [vmem:[#allocation2 + $0xc0] sm:$0xf] %vm3874, %v3623
      %v3974 = vld [vmem:[#allocation2 + $0xc4] sm:$0xf]
      %v3975 = vsel %vm3877, %v3625, %v3974
      %3976 = vst [vmem:[#allocation2 + $0xc4] sm:$0xf] %v3975
      %3977 = vst.msk [vmem:[#allocation2 + $0xc8] sm:$0xf] %vm3874, %v3627
      %v3978 = vld [vmem:[#allocation2 + $0xcc] sm:$0xf]
      %v3979 = vsel %vm3877, %v3629, %v3978
      %3980 = vst [vmem:[#allocation2 + $0xcc] sm:$0xf] %v3979
      %3981 = vst.msk [vmem:[#allocation2 + $0xd0] sm:$0xf] %vm3874, %v3631
      %v3982 = vld [vmem:[#allocation2 + $0xd4] sm:$0xf]
      %v3983 = vsel %vm3877, %v3633, %v3982
      %3984 = vst [vmem:[#allocation2 + $0xd4] sm:$0xf] %v3983
      %3985 = vst.msk [vmem:[#allocation2 + $0xd8] sm:$0xf] %vm3874, %v3635
      %v3986 = vld [vmem:[#allocation2 + $0xdc] sm:$0xf]
      %v3987 = vsel %vm3877, %v3637, %v3986
      %3988 = vst [vmem:[#allocation2 + $0xdc] sm:$0xf] %v3987
      %3989 = vst.msk [vmem:[#allocation2 + $0xe0] sm:$0xf] %vm3874, %v3639
      %v3990 = vld [vmem:[#allocation2 + $0xe4] sm:$0xf]
      %v3991 = vsel %vm3877, %v3641, %v3990
      %3992 = vst [vmem:[#allocation2 + $0xe4] sm:$0xf] %v3991
      %3993 = vst.msk [vmem:[#allocation2 + $0xe8] sm:$0xf] %vm3874, %v3643
      %v3994 = vld [vmem:[#allocation2 + $0xec] sm:$0xf]
      %v3995 = vsel %vm3877, %v3645, %v3994
      %3996 = vst [vmem:[#allocation2 + $0xec] sm:$0xf] %v3995
      %3997 = vst.msk [vmem:[#allocation2 + $0xf0] sm:$0xf] %vm3874, %v3647
      %v3998 = vld [vmem:[#allocation2 + $0xf4] sm:$0xf]
      %v3999 = vsel %vm3877, %v3649, %v3998
      %4000 = vst [vmem:[#allocation2 + $0xf4] sm:$0xf] %v3999
      %4001 = vst.msk [vmem:[#allocation2 + $0xf8] sm:$0xf] %vm3874, %v3651
      %v4002 = vld [vmem:[#allocation2 + $0xfc] sm:$0xf]
      %v4003 = vsel %vm3877, %v3653, %v4002
      %4004 = vst [vmem:[#allocation2 + $0xfc] sm:$0xf] %v4003
      %4005 = vst.msk [vmem:[#allocation2 + $0x100] sm:$0xf] %vm3874, %v3655
      %v4006 = vld [vmem:[#allocation2 + $0x104] sm:$0xf]
      %v4007 = vsel %vm3877, %v3657, %v4006
      %4008 = vst [vmem:[#allocation2 + $0x104] sm:$0xf] %v4007
      %4009 = vst.msk [vmem:[#allocation2 + $0x108] sm:$0xf] %vm3874, %v3659
      %v4010 = vld [vmem:[#allocation2 + $0x10c] sm:$0xf]
      %v4011 = vsel %vm3877, %v3661, %v4010
      %4012 = vst [vmem:[#allocation2 + $0x10c] sm:$0xf] %v4011
      %4013 = vst.msk [vmem:[#allocation2 + $0x110] sm:$0xf] %vm3874, %v3663
      %v4014 = vld [vmem:[#allocation2 + $0x114] sm:$0xf]
      %v4015 = vsel %vm3877, %v3665, %v4014
      %4016 = vst [vmem:[#allocation2 + $0x114] sm:$0xf] %v4015
      %4017 = vst.msk [vmem:[#allocation2 + $0x118] sm:$0xf] %vm3874, %v3667
      %v4018 = vld [vmem:[#allocation2 + $0x11c] sm:$0xf]
      %v4019 = vsel %vm3877, %v3669, %v4018
      %4020 = vst [vmem:[#allocation2 + $0x11c] sm:$0xf] %v4019
      %4021 = vst.msk [vmem:[#allocation2 + $0x120] sm:$0xf] %vm3874, %v3671
      %v4022 = vld [vmem:[#allocation2 + $0x124] sm:$0xf]
      %v4023 = vsel %vm3877, %v3673, %v4022
      %4024 = vst [vmem:[#allocation2 + $0x124] sm:$0xf] %v4023
      %4025 = vst.msk [vmem:[#allocation2 + $0x128] sm:$0xf] %vm3874, %v3675
      %v4026 = vld [vmem:[#allocation2 + $0x12c] sm:$0xf]
      %v4027 = vsel %vm3877, %v3677, %v4026
      %4028 = vst [vmem:[#allocation2 + $0x12c] sm:$0xf] %v4027
      %4029 = vst.msk [vmem:[#allocation2 + $0x130] sm:$0xf] %vm3874, %v3679
      %v4030 = vld [vmem:[#allocation2 + $0x134] sm:$0xf]
      %v4031 = vsel %vm3877, %v3681, %v4030
      %4032 = vst [vmem:[#allocation2 + $0x134] sm:$0xf] %v4031
      %4033 = vst.msk [vmem:[#allocation2 + $0x138] sm:$0xf] %vm3874, %v3683
      %v4034 = vld [vmem:[#allocation2 + $0x13c] sm:$0xf]
      %v4035 = vsel %vm3877, %v3685, %v4034
      %4036 = vst [vmem:[#allocation2 + $0x13c] sm:$0xf] %v4035
      %4037 = vst.msk [vmem:[#allocation2 + $0x140] sm:$0xf] %vm3874, %v3687
      %v4038 = vld [vmem:[#allocation2 + $0x144] sm:$0xf]
      %v4039 = vsel %vm3877, %v3689, %v4038
      %4040 = vst [vmem:[#allocation2 + $0x144] sm:$0xf] %v4039
      %4041 = vst.msk [vmem:[#allocation2 + $0x148] sm:$0xf] %vm3874, %v3691
      %v4042 = vld [vmem:[#allocation2 + $0x14c] sm:$0xf]
      %v4043 = vsel %vm3877, %v3693, %v4042
      %4044 = vst [vmem:[#allocation2 + $0x14c] sm:$0xf] %v4043
      %4045 = vst.msk [vmem:[#allocation2 + $0x150] sm:$0xf] %vm3874, %v3695
      %v4046 = vld [vmem:[#allocation2 + $0x154] sm:$0xf]
      %v4047 = vsel %vm3877, %v3697, %v4046
      %4048 = vst [vmem:[#allocation2 + $0x154] sm:$0xf] %v4047
      %4049 = vst.msk [vmem:[#allocation2 + $0x158] sm:$0xf] %vm3874, %v3699
      %v4050 = vld [vmem:[#allocation2 + $0x15c] sm:$0xf]
      %v4051 = vsel %vm3877, %v3701, %v4050
      %4052 = vst [vmem:[#allocation2 + $0x15c] sm:$0xf] %v4051
      %4053 = vst.msk [vmem:[#allocation2 + $0x160] sm:$0xf] %vm3874, %v3703
      %v4054 = vld [vmem:[#allocation2 + $0x164] sm:$0xf]
      %v4055 = vsel %vm3877, %v3705, %v4054
      %4056 = vst [vmem:[#allocation2 + $0x164] sm:$0xf] %v4055
      %4057 = vst.msk [vmem:[#allocation2 + $0x168] sm:$0xf] %vm3874, %v3707
      %v4058 = vld [vmem:[#allocation2 + $0x16c] sm:$0xf]
      %v4059 = vsel %vm3877, %v3709, %v4058
      %4060 = vst [vmem:[#allocation2 + $0x16c] sm:$0xf] %v4059
      %4061 = vst.msk [vmem:[#allocation2 + $0x170] sm:$0xf] %vm3874, %v3711
      %v4062 = vld [vmem:[#allocation2 + $0x174] sm:$0xf]
      %v4063 = vsel %vm3877, %v3713, %v4062
      %4064 = vst [vmem:[#allocation2 + $0x174] sm:$0xf] %v4063
      %4065 = vst.msk [vmem:[#allocation2 + $0x178] sm:$0xf] %vm3874, %v3715
      %v4066 = vld [vmem:[#allocation2 + $0x17c] sm:$0xf]
      %v4067 = vsel %vm3877, %v3717, %v4066
      %4068 = vst [vmem:[#allocation2 + $0x17c] sm:$0xf] %v4067
      %4069 = vst.msk [vmem:[#allocation2 + $0x180] sm:$0xf] %vm3874, %v3719
      %v4070 = vld [vmem:[#allocation2 + $0x184] sm:$0xf]
      %v4071 = vsel %vm3877, %v3721, %v4070
      %4072 = vst [vmem:[#allocation2 + $0x184] sm:$0xf] %v4071
      %4073 = vst.msk [vmem:[#allocation2 + $0x188] sm:$0xf] %vm3874, %v3723
      %v4074 = vld [vmem:[#allocation2 + $0x18c] sm:$0xf]
      %v4075 = vsel %vm3877, %v3725, %v4074
      %4076 = vst [vmem:[#allocation2 + $0x18c] sm:$0xf] %v4075
      %4077 = vst.msk [vmem:[#allocation2 + $0x190] sm:$0xf] %vm3874, %v3727
      %v4078 = vld [vmem:[#allocation2 + $0x194] sm:$0xf]
      %v4079 = vsel %vm3877, %v3729, %v4078
      %4080 = vst [vmem:[#allocation2 + $0x194] sm:$0xf] %v4079
      %4081 = vst.msk [vmem:[#allocation2 + $0x198] sm:$0xf] %vm3874, %v3731
      %v4082 = vld [vmem:[#allocation2 + $0x19c] sm:$0xf]
      %v4083 = vsel %vm3877, %v3733, %v4082
      %4084 = vst [vmem:[#allocation2 + $0x19c] sm:$0xf] %v4083
      %4085 = vst.msk [vmem:[#allocation2 + $0x1a0] sm:$0xf] %vm3874, %v3735
      %v4086 = vld [vmem:[#allocation2 + $0x1a4] sm:$0xf]
      %v4087 = vsel %vm3877, %v3737, %v4086
      %4088 = vst [vmem:[#allocation2 + $0x1a4] sm:$0xf] %v4087
      %4089 = vst.msk [vmem:[#allocation2 + $0x1a8] sm:$0xf] %vm3874, %v3739
      %v4090 = vld [vmem:[#allocation2 + $0x1ac] sm:$0xf]
      %v4091 = vsel %vm3877, %v3741, %v4090
      %4092 = vst [vmem:[#allocation2 + $0x1ac] sm:$0xf] %v4091
      %4093 = vst.msk [vmem:[#allocation2 + $0x1b0] sm:$0xf] %vm3874, %v3743
      %v4094 = vld [vmem:[#allocation2 + $0x1b4] sm:$0xf]
      %v4095 = vsel %vm3877, %v3745, %v4094
      %4096 = vst [vmem:[#allocation2 + $0x1b4] sm:$0xf] %v4095
      %4097 = vst.msk [vmem:[#allocation2 + $0x1b8] sm:$0xf] %vm3874, %v3747
      %v4098 = vld [vmem:[#allocation2 + $0x1bc] sm:$0xf]
      %v4099 = vsel %vm3877, %v3749, %v4098
      %4100 = vst [vmem:[#allocation2 + $0x1bc] sm:$0xf] %v4099
      %4101 = vst.msk [vmem:[#allocation2 + $0x1c0] sm:$0xf] %vm3874, %v3751
      %v4102 = vld [vmem:[#allocation2 + $0x1c4] sm:$0xf]
      %v4103 = vsel %vm3877, %v3753, %v4102
      %4104 = vst [vmem:[#allocation2 + $0x1c4] sm:$0xf] %v4103
      %4105 = vst.msk [vmem:[#allocation2 + $0x1c8] sm:$0xf] %vm3874, %v3755
      %v4106 = vld [vmem:[#allocation2 + $0x1cc] sm:$0xf]
      %v4107 = vsel %vm3877, %v3757, %v4106
      %4108 = vst [vmem:[#allocation2 + $0x1cc] sm:$0xf] %v4107
      %vm4109 = vcmask 388355
      %vm4110 = vsmask.f32 7950
      %vm4111 = vmand %vm4109, %vm4110
      %v4112 = vld [vmem:[#allocation2 + $0x4] sm:$0x8]
      %v4113 = vsel %vm4111, 0, %v4112
      %4114 = vst [vmem:[#allocation2 + $0x4] sm:$0x8] %v4113
      %v4115 = vld [vmem:[#allocation2 + $0xc] sm:$0x8]
      %v4116 = vsel %vm4111, 0, %v4115
      %4117 = vst [vmem:[#allocation2 + $0xc] sm:$0x8] %v4116
      %v4118 = vld [vmem:[#allocation2 + $0x14] sm:$0x8]
      %v4119 = vsel %vm4111, 0, %v4118
      %4120 = vst [vmem:[#allocation2 + $0x14] sm:$0x8] %v4119
      %v4121 = vld [vmem:[#allocation2 + $0x1c] sm:$0x8]
      %v4122 = vsel %vm4111, 0, %v4121
      %4123 = vst [vmem:[#allocation2 + $0x1c] sm:$0x8] %v4122
      %v4124 = vld [vmem:[#allocation2 + $0x24] sm:$0x8]
      %v4125 = vsel %vm4111, 0, %v4124
      %4126 = vst [vmem:[#allocation2 + $0x24] sm:$0x8] %v4125
      %v4127 = vld [vmem:[#allocation2 + $0x2c] sm:$0x8]
      %v4128 = vsel %vm4111, 0, %v4127
      %4129 = vst [vmem:[#allocation2 + $0x2c] sm:$0x8] %v4128
      %v4130 = vld [vmem:[#allocation2 + $0x34] sm:$0x8]
      %v4131 = vsel %vm4111, 0, %v4130
      %4132 = vst [vmem:[#allocation2 + $0x34] sm:$0x8] %v4131
      %v4133 = vld [vmem:[#allocation2 + $0x3c] sm:$0x8]
      %v4134 = vsel %vm4111, 0, %v4133
      %4135 = vst [vmem:[#allocation2 + $0x3c] sm:$0x8] %v4134
      %v4136 = vld [vmem:[#allocation2 + $0x44] sm:$0x8]
      %v4137 = vsel %vm4111, 0, %v4136
      %4138 = vst [vmem:[#allocation2 + $0x44] sm:$0x8] %v4137
      %v4139 = vld [vmem:[#allocation2 + $0x4c] sm:$0x8]
      %v4140 = vsel %vm4111, 0, %v4139
      %4141 = vst [vmem:[#allocation2 + $0x4c] sm:$0x8] %v4140
      %v4142 = vld [vmem:[#allocation2 + $0x54] sm:$0x8]
      %v4143 = vsel %vm4111, 0, %v4142
      %4144 = vst [vmem:[#allocation2 + $0x54] sm:$0x8] %v4143
      %v4145 = vld [vmem:[#allocation2 + $0x5c] sm:$0x8]
      %v4146 = vsel %vm4111, 0, %v4145
      %4147 = vst [vmem:[#allocation2 + $0x5c] sm:$0x8] %v4146
      %v4148 = vld [vmem:[#allocation2 + $0x64] sm:$0x8]
      %v4149 = vsel %vm4111, 0, %v4148
      %4150 = vst [vmem:[#allocation2 + $0x64] sm:$0x8] %v4149
      %v4151 = vld [vmem:[#allocation2 + $0x6c] sm:$0x8]
      %v4152 = vsel %vm4111, 0, %v4151
      %4153 = vst [vmem:[#allocation2 + $0x6c] sm:$0x8] %v4152
      %v4154 = vld [vmem:[#allocation2 + $0x74] sm:$0x8]
      %v4155 = vsel %vm4111, 0, %v4154
      %4156 = vst [vmem:[#allocation2 + $0x74] sm:$0x8] %v4155
      %v4157 = vld [vmem:[#allocation2 + $0x7c] sm:$0x8]
      %v4158 = vsel %vm4111, 0, %v4157
      %4159 = vst [vmem:[#allocation2 + $0x7c] sm:$0x8] %v4158
      %v4160 = vld [vmem:[#allocation2 + $0x84] sm:$0x8]
      %v4161 = vsel %vm4111, 0, %v4160
      %4162 = vst [vmem:[#allocation2 + $0x84] sm:$0x8] %v4161
      %v4163 = vld [vmem:[#allocation2 + $0x8c] sm:$0x8]
      %v4164 = vsel %vm4111, 0, %v4163
      %4165 = vst [vmem:[#allocation2 + $0x8c] sm:$0x8] %v4164
      %v4166 = vld [vmem:[#allocation2 + $0x94] sm:$0x8]
      %v4167 = vsel %vm4111, 0, %v4166
      %4168 = vst [vmem:[#allocation2 + $0x94] sm:$0x8] %v4167
      %v4169 = vld [vmem:[#allocation2 + $0x9c] sm:$0x8]
      %v4170 = vsel %vm4111, 0, %v4169
      %4171 = vst [vmem:[#allocation2 + $0x9c] sm:$0x8] %v4170
      %v4172 = vld [vmem:[#allocation2 + $0xa4] sm:$0x8]
      %v4173 = vsel %vm4111, 0, %v4172
      %4174 = vst [vmem:[#allocation2 + $0xa4] sm:$0x8] %v4173
      %v4175 = vld [vmem:[#allocation2 + $0xac] sm:$0x8]
      %v4176 = vsel %vm4111, 0, %v4175
      %4177 = vst [vmem:[#allocation2 + $0xac] sm:$0x8] %v4176
      %v4178 = vld [vmem:[#allocation2 + $0xb4] sm:$0x8]
      %v4179 = vsel %vm4111, 0, %v4178
      %4180 = vst [vmem:[#allocation2 + $0xb4] sm:$0x8] %v4179
      %v4181 = vld [vmem:[#allocation2 + $0xbc] sm:$0x8]
      %v4182 = vsel %vm4111, 0, %v4181
      %4183 = vst [vmem:[#allocation2 + $0xbc] sm:$0x8] %v4182
      %v4184 = vld [vmem:[#allocation2 + $0xc4] sm:$0x8]
      %v4185 = vsel %vm4111, 0, %v4184
      %4186 = vst [vmem:[#allocation2 + $0xc4] sm:$0x8] %v4185
      %v4187 = vld [vmem:[#allocation2 + $0xcc] sm:$0x8]
      %v4188 = vsel %vm4111, 0, %v4187
      %4189 = vst [vmem:[#allocation2 + $0xcc] sm:$0x8] %v4188
      %v4190 = vld [vmem:[#allocation2 + $0xd4] sm:$0x8]
      %v4191 = vsel %vm4111, 0, %v4190
      %4192 = vst [vmem:[#allocation2 + $0xd4] sm:$0x8] %v4191
      %v4193 = vld [vmem:[#allocation2 + $0xdc] sm:$0x8]
      %v4194 = vsel %vm4111, 0, %v4193
      %4195 = vst [vmem:[#allocation2 + $0xdc] sm:$0x8] %v4194
      %v4196 = vld [vmem:[#allocation2 + $0xe4] sm:$0x8]
      %v4197 = vsel %vm4111, 0, %v4196
      %4198 = vst [vmem:[#allocation2 + $0xe4] sm:$0x8] %v4197
      %v4199 = vld [vmem:[#allocation2 + $0xec] sm:$0x8]
      %v4200 = vsel %vm4111, 0, %v4199
      %4201 = vst [vmem:[#allocation2 + $0xec] sm:$0x8] %v4200
      %v4202 = vld [vmem:[#allocation2 + $0xf4] sm:$0x8]
      %v4203 = vsel %vm4111, 0, %v4202
      %4204 = vst [vmem:[#allocation2 + $0xf4] sm:$0x8] %v4203
      %v4205 = vld [vmem:[#allocation2 + $0xfc] sm:$0x8]
      %v4206 = vsel %vm4111, 0, %v4205
      %4207 = vst [vmem:[#allocation2 + $0xfc] sm:$0x8] %v4206
      %v4208 = vld [vmem:[#allocation2 + $0x104] sm:$0x8]
      %v4209 = vsel %vm4111, 0, %v4208
      %4210 = vst [vmem:[#allocation2 + $0x104] sm:$0x8] %v4209
      %v4211 = vld [vmem:[#allocation2 + $0x10c] sm:$0x8]
      %v4212 = vsel %vm4111, 0, %v4211
      %4213 = vst [vmem:[#allocation2 + $0x10c] sm:$0x8] %v4212
      %v4214 = vld [vmem:[#allocation2 + $0x114] sm:$0x8]
      %v4215 = vsel %vm4111, 0, %v4214
      %4216 = vst [vmem:[#allocation2 + $0x114] sm:$0x8] %v4215
      %v4217 = vld [vmem:[#allocation2 + $0x11c] sm:$0x8]
      %v4218 = vsel %vm4111, 0, %v4217
      %4219 = vst [vmem:[#allocation2 + $0x11c] sm:$0x8] %v4218
      %v4220 = vld [vmem:[#allocation2 + $0x124] sm:$0x8]
      %v4221 = vsel %vm4111, 0, %v4220
      %4222 = vst [vmem:[#allocation2 + $0x124] sm:$0x8] %v4221
      %v4223 = vld [vmem:[#allocation2 + $0x12c] sm:$0x8]
      %v4224 = vsel %vm4111, 0, %v4223
      %4225 = vst [vmem:[#allocation2 + $0x12c] sm:$0x8] %v4224
      %v4226 = vld [vmem:[#allocation2 + $0x134] sm:$0x8]
      %v4227 = vsel %vm4111, 0, %v4226
      %4228 = vst [vmem:[#allocation2 + $0x134] sm:$0x8] %v4227
      %v4229 = vld [vmem:[#allocation2 + $0x13c] sm:$0x8]
      %v4230 = vsel %vm4111, 0, %v4229
      %4231 = vst [vmem:[#allocation2 + $0x13c] sm:$0x8] %v4230
      %v4232 = vld [vmem:[#allocation2 + $0x144] sm:$0x8]
      %v4233 = vsel %vm4111, 0, %v4232
      %4234 = vst [vmem:[#allocation2 + $0x144] sm:$0x8] %v4233
      %v4235 = vld [vmem:[#allocation2 + $0x14c] sm:$0x8]
      %v4236 = vsel %vm4111, 0, %v4235
      %4237 = vst [vmem:[#allocation2 + $0x14c] sm:$0x8] %v4236
      %v4238 = vld [vmem:[#allocation2 + $0x154] sm:$0x8]
      %v4239 = vsel %vm4111, 0, %v4238
      %4240 = vst [vmem:[#allocation2 + $0x154] sm:$0x8] %v4239
      %v4241 = vld [vmem:[#allocation2 + $0x15c] sm:$0x8]
      %v4242 = vsel %vm4111, 0, %v4241
      %4243 = vst [vmem:[#allocation2 + $0x15c] sm:$0x8] %v4242
      %v4244 = vld [vmem:[#allocation2 + $0x164] sm:$0x8]
      %v4245 = vsel %vm4111, 0, %v4244
      %4246 = vst [vmem:[#allocation2 + $0x164] sm:$0x8] %v4245
      %v4247 = vld [vmem:[#allocation2 + $0x16c] sm:$0x8]
      %v4248 = vsel %vm4111, 0, %v4247
      %4249 = vst [vmem:[#allocation2 + $0x16c] sm:$0x8] %v4248
      %v4250 = vld [vmem:[#allocation2 + $0x174] sm:$0x8]
      %v4251 = vsel %vm4111, 0, %v4250
      %4252 = vst [vmem:[#allocation2 + $0x174] sm:$0x8] %v4251
      %v4253 = vld [vmem:[#allocation2 + $0x17c] sm:$0x8]
      %v4254 = vsel %vm4111, 0, %v4253
      %4255 = vst [vmem:[#allocation2 + $0x17c] sm:$0x8] %v4254
      %v4256 = vld [vmem:[#allocation2 + $0x184] sm:$0x8]
      %v4257 = vsel %vm4111, 0, %v4256
      %4258 = vst [vmem:[#allocation2 + $0x184] sm:$0x8] %v4257
      %v4259 = vld [vmem:[#allocation2 + $0x18c] sm:$0x8]
      %v4260 = vsel %vm4111, 0, %v4259
      %4261 = vst [vmem:[#allocation2 + $0x18c] sm:$0x8] %v4260
      %v4262 = vld [vmem:[#allocation2 + $0x194] sm:$0x8]
      %v4263 = vsel %vm4111, 0, %v4262
      %4264 = vst [vmem:[#allocation2 + $0x194] sm:$0x8] %v4263
      %v4265 = vld [vmem:[#allocation2 + $0x19c] sm:$0x8]
      %v4266 = vsel %vm4111, 0, %v4265
      %4267 = vst [vmem:[#allocation2 + $0x19c] sm:$0x8] %v4266
      %v4268 = vld [vmem:[#allocation2 + $0x1a4] sm:$0x8]
      %v4269 = vsel %vm4111, 0, %v4268
      %4270 = vst [vmem:[#allocation2 + $0x1a4] sm:$0x8] %v4269
      %v4271 = vld [vmem:[#allocation2 + $0x1ac] sm:$0x8]
      %v4272 = vsel %vm4111, 0, %v4271
      %4273 = vst [vmem:[#allocation2 + $0x1ac] sm:$0x8] %v4272
      %v4274 = vld [vmem:[#allocation2 + $0x1b4] sm:$0x8]
      %v4275 = vsel %vm4111, 0, %v4274
      %4276 = vst [vmem:[#allocation2 + $0x1b4] sm:$0x8] %v4275
      %v4277 = vld [vmem:[#allocation2 + $0x1bc] sm:$0x8]
      %v4278 = vsel %vm4111, 0, %v4277
      %4279 = vst [vmem:[#allocation2 + $0x1bc] sm:$0x8] %v4278
      %v4280 = vld [vmem:[#allocation2 + $0x1c4] sm:$0x8]
      %v4281 = vsel %vm4111, 0, %v4280
      %4282 = vst [vmem:[#allocation2 + $0x1c4] sm:$0x8] %v4281
      %v4283 = vld [vmem:[#allocation2 + $0x1cc] sm:$0x8]
      %v4284 = vsel %vm4111, 0, %v4283
      %4285 = vst [vmem:[#allocation2 + $0x1cc] sm:$0x8] %v4284
      %v4286 = vld [vmem:[%s4] sm:$0x1]
      loop: start=0, step=1, limit=4
      $region68: #{conv_bn.1} parent=39 // loop_pre_header
        _
      $region69: #{conv_bn.1} parent=39 // loop_header
        %s4288 = sphi 0, %s4292
        %p4289 = scmp.ge.s32.totalorder %s4288, 4
        %v4293 = vphi 0.0, %v5504
        %v4294 = vphi 0.0, %v5594
      $region70: #{conv_bn.1} parent=39 // loop_header_branch
        %4291 = sbr.rel (%p4289) target = $region74
      $region71: #{conv_bn.1} parent=39 // loop_body
        %s4295 = smul.u32 %s4288, 14
        %s4296 = smul.u32 %s4295, 2
        %s4297 = smul.addr %s4296, 4
        %s4298 = scalar_lea.vmem [#allocation2], %s4297
        %v4299 = vld [vmem:[%s4298] sm:$0xf]
        %v4300 = vld [vmem:[%s4298 + $0x4] sm:$0xf]
        %v4301 = vld [vmem:[%s4298 + $0x8] sm:$0xf]
        %v4302 = vld [vmem:[%s4298 + $0xc] sm:$0xf]
        %v4303 = vld [vmem:[%s4298 + $0x10] sm:$0xf]
        %v4304 = vld [vmem:[%s4298 + $0x14] sm:$0xf]
        %v4305 = vld [vmem:[%s4298 + $0x18] sm:$0xf]
        %v4306 = vld [vmem:[%s4298 + $0x1c] sm:$0xf]
        %v4307 = vld [vmem:[%s4298 + $0x20] sm:$0xf]
        %v4308 = vld [vmem:[%s4298 + $0x24] sm:$0xf]
        %v4309 = vld [vmem:[%s4298 + $0x28] sm:$0xf]
        %v4310 = vld [vmem:[%s4298 + $0x2c] sm:$0xf]
        %v4311 = vld [vmem:[%s4298 + $0x30] sm:$0xf]
        %v4312 = vld [vmem:[%s4298 + $0x34] sm:$0xf]
        %v4313 = vld [vmem:[%s4298 + $0x38] sm:$0xf]
        %v4314 = vld [vmem:[%s4298 + $0x3c] sm:$0xf]
        %v4315 = vld [vmem:[%s4298 + $0x40] sm:$0xf]
        %v4316 = vld [vmem:[%s4298 + $0x44] sm:$0xf]
        %v4317 = vld [vmem:[%s4298 + $0x48] sm:$0xf]
        %v4318 = vld [vmem:[%s4298 + $0x4c] sm:$0xf]
        %v4319 = vld [vmem:[%s4298 + $0x50] sm:$0xf]
        %v4320 = vld [vmem:[%s4298 + $0x54] sm:$0xf]
        %v4321 = vld [vmem:[%s4298 + $0x58] sm:$0xf]
        %v4322 = vld [vmem:[%s4298 + $0x5c] sm:$0xf]
        %v4323 = vld [vmem:[%s4298 + $0x60] sm:$0xf]
        %v4324 = vld [vmem:[%s4298 + $0x64] sm:$0xf]
        %v4325 = vld [vmem:[%s4298 + $0x68] sm:$0xf]
        %v4326 = vld [vmem:[%s4298 + $0x6c] sm:$0xf]
        %v4327 = vld [vmem:[%s1] sm:$0xf]
        %v4328 = vld [vmem:[%s1 + $0x4] sm:$0xf]
        %v4329 = vld [vmem:[%s1 + $0x8] sm:$0xf]
        %v4330 = vld [vmem:[%s1 + $0xc] sm:$0xf]
        %v4331 = vld [vmem:[%s1 + $0x10] sm:$0xf]
        %v4332 = vld [vmem:[%s1 + $0x14] sm:$0xf]
        %s4333 = sadd.s32 %s4295, 1
        %s4334 = smul.u32 %s4333, 2
        %s4335 = smul.addr %s4334, 4
        %s4336 = scalar_lea.vmem [#allocation2], %s4335
        %v4337 = vld [vmem:[%s4336] sm:$0xf]
        %v4338 = vld [vmem:[%s4336 + $0x4] sm:$0xf]
        %v4339 = vld [vmem:[%s4336 + $0x8] sm:$0xf]
        %v4340 = vld [vmem:[%s4336 + $0xc] sm:$0xf]
        %v4341 = vld [vmem:[%s4336 + $0x10] sm:$0xf]
        %v4342 = vld [vmem:[%s4336 + $0x14] sm:$0xf]
        %v4343 = vld [vmem:[%s4336 + $0x18] sm:$0xf]
        %v4344 = vld [vmem:[%s4336 + $0x1c] sm:$0xf]
        %v4345 = vld [vmem:[%s4336 + $0x20] sm:$0xf]
        %v4346 = vld [vmem:[%s4336 + $0x24] sm:$0xf]
        %v4347 = vld [vmem:[%s4336 + $0x28] sm:$0xf]
        %v4348 = vld [vmem:[%s4336 + $0x2c] sm:$0xf]
        %v4349 = vld [vmem:[%s4336 + $0x30] sm:$0xf]
        %v4350 = vld [vmem:[%s4336 + $0x34] sm:$0xf]
        %v4351 = vld [vmem:[%s4336 + $0x38] sm:$0xf]
        %v4352 = vld [vmem:[%s4336 + $0x3c] sm:$0xf]
        %v4353 = vld [vmem:[%s4336 + $0x40] sm:$0xf]
        %v4354 = vld [vmem:[%s4336 + $0x44] sm:$0xf]
        %v4355 = vld [vmem:[%s4336 + $0x48] sm:$0xf]
        %v4356 = vld [vmem:[%s4336 + $0x4c] sm:$0xf]
        %v4357 = vld [vmem:[%s4336 + $0x50] sm:$0xf]
        %v4358 = vld [vmem:[%s4336 + $0x54] sm:$0xf]
        %v4359 = vld [vmem:[%s4336 + $0x58] sm:$0xf]
        %v4360 = vld [vmem:[%s4336 + $0x5c] sm:$0xf]
        %v4361 = vld [vmem:[%s4336 + $0x60] sm:$0xf]
        %v4362 = vld [vmem:[%s4336 + $0x64] sm:$0xf]
        %v4363 = vld [vmem:[%s4336 + $0x68] sm:$0xf]
        %v4364 = vld [vmem:[%s4336 + $0x6c] sm:$0xf]
        %s4365 = scalar_lea.vmem %s1, 24
        %v4366 = vld [vmem:[%s4365] sm:$0xf]
        %v4367 = vld [vmem:[%s4365 + $0x4] sm:$0xf]
        %v4368 = vld [vmem:[%s4365 + $0x8] sm:$0xf]
        %v4369 = vld [vmem:[%s4365 + $0xc] sm:$0xf]
        %v4370 = vld [vmem:[%s4365 + $0x10] sm:$0xf]
        %v4371 = vld [vmem:[%s4365 + $0x14] sm:$0xf]
        %v4400 = vunpack.c.l.b16 %v4337
        %v4401 = vunpack.c.l.b16 %v4338
        %v4402 = vunpack.c.l.b16 %v4339
        %v4403 = vunpack.c.l.b16 %v4340
        %v4404 = vunpack.c.l.b16 %v4341
        %v4405 = vunpack.c.l.b16 %v4342
        %v4406 = vunpack.c.l.b16 %v4343
        %v4407 = vunpack.c.l.b16 %v4344
        %v4408 = vunpack.c.l.b16 %v4345
        %v4409 = vunpack.c.l.b16 %v4346
        %v4410 = vunpack.c.l.b16 %v4347
        %v4411 = vunpack.c.l.b16 %v4348
        %v4412 = vunpack.c.l.b16 %v4349
        %v4413 = vunpack.c.l.b16 %v4350
        %v4414 = vunpack.c.l.b16 %v4351
        %v4415 = vunpack.c.l.b16 %v4352
        %v4416 = vunpack.c.l.b16 %v4353
        %v4417 = vunpack.c.l.b16 %v4354
        %v4418 = vunpack.c.l.b16 %v4355
        %v4419 = vunpack.c.l.b16 %v4356
        %v4420 = vunpack.c.l.b16 %v4357
        %v4421 = vunpack.c.l.b16 %v4358
        %v4422 = vunpack.c.l.b16 %v4359
        %v4423 = vunpack.c.l.b16 %v4360
        %v4424 = vunpack.c.l.b16 %v4361
        %v4425 = vunpack.c.l.b16 %v4362
        %v4426 = vunpack.c.l.b16 %v4363
        %v4427 = vunpack.c.l.b16 %v4364
        %v4428 = vpack.c.b16 %v4401, %v4400
        %v4429 = vpack.c.b16 %v4403, %v4402
        %v4430 = vpack.c.b16 %v4405, %v4404
        %v4431 = vpack.c.b16 %v4407, %v4406
        %v4432 = vpack.c.b16 %v4409, %v4408
        %v4433 = vpack.c.b16 %v4411, %v4410
        %v4434 = vpack.c.b16 %v4413, %v4412
        %v4435 = vpack.c.b16 %v4415, %v4414
        %v4436 = vpack.c.b16 %v4417, %v4416
        %v4437 = vpack.c.b16 %v4419, %v4418
        %v4438 = vpack.c.b16 %v4421, %v4420
        %v4439 = vpack.c.b16 %v4423, %v4422
        %v4440 = vpack.c.b16 %v4425, %v4424
        %v4441 = vpack.c.b16 %v4427, %v4426
        %v4448 = vunpack.c.l.b16 %v4366
        %v4449 = vunpack.c.l.b16 %v4367
        %v4450 = vunpack.c.l.b16 %v4368
        %v4451 = vunpack.c.l.b16 %v4369
        %v4452 = vunpack.c.l.b16 %v4370
        %v4453 = vunpack.c.l.b16 %v4371
        %v4454 = vpack.c.b16 %v4449, %v4448
        %v4455 = vpack.c.b16 %v4451, %v4450
        %v4456 = vpack.c.b16 %v4453, %v4452
        %vm4460 = vcmask 392192
        %v4462 = vsel %vm4460, %v4428, 0
        %v4465 = vsel %vm4460, %v4429, 0
        %v4468 = vsel %vm4460, %v4430, 0
        %v4471 = vsel %vm4460, %v4431, 0
        %v4474 = vsel %vm4460, %v4432, 0
        %v4477 = vsel %vm4460, %v4433, 0
        %v4480 = vsel %vm4460, %v4434, 0
        %v4483 = vsel %vm4460, %v4435, 0
        %v4486 = vsel %vm4460, %v4436, 0
        %v4489 = vsel %vm4460, %v4437, 0
        %v4492 = vsel %vm4460, %v4438, 0
        %v4495 = vsel %vm4460, %v4439, 0
        %v4498 = vsel %vm4460, %v4440, 0
        %v4501 = vsel %vm4460, %v4441, 0
        %4503 = vmatprep.subr.bf16.mxu0 0
        %4504 = vmatpush1.bf16.msra.mxu0 0
        %4505 = vmatprep.subr.bf16.mxu0 0
        %4506 = vmatpush1.bf16.msra.mxu0 0
        %4507 = vmatprep.subr.bf16.mxu0 0
        %4508 = vmatpush1.bf16.msra.mxu0 0
        %4509 = vmatprep.subr.bf16.mxu0 0
        %4510 = vmatpush1.bf16.msra.mxu0 0
        %4511 = vmatprep.subr.bf16.mxu0 0
        %4512 = vmatpush1.bf16.msra.mxu0 0
        %4513 = vmatprep.subr.bf16.mxu0 0
        %4514 = vmatpush1.bf16.msra.mxu0 %v4456
        %4515 = vmatprep.subr.bf16.mxu0 0
        %4516 = vmatpush1.bf16.msra.mxu0 %v4455
        %4517 = vmatprep.subr.bf16.mxu0 0
        %4518 = vmatpush1.bf16.msra.mxu0 %v4454
        %4519 = vmatprep.subr.bf16.mxu0 0
        %4520 = vmatpush2.bf16.msra.mxu0 0
        %4521 = vmatprep.subr.bf16.mxu0 0
        %4522 = vmatpush2.bf16.msra.mxu0 0
        %4523 = vmatprep.subr.bf16.mxu0 0
        %4524 = vmatpush2.bf16.msra.mxu0 0
        %4525 = vmatprep.subr.bf16.mxu0 0
        %4526 = vmatpush2.bf16.msra.mxu0 0
        %4527 = vmatprep.subr.bf16.mxu0 0
        %4528 = vmatpush2.bf16.msra.mxu0 0
        %4529 = vmatprep.subr.bf16.mxu0 0
        %4530 = vmatpush2.bf16.msra.mxu0 0
        %4531 = vmatprep.subr.bf16.mxu0 0
        %4532 = vmatpush2.bf16.msra.mxu0 0
        %4533 = vmatprep.subr.bf16.mxu0 0
        %4534 = vmatpush2.bf16.msra.mxu0 0
        %4535 = vmatprep.mubr.bf16.mxu0 0
        %4536 = vmatmul.mubr.bf16.gmra.mxu0 %v4462
        %v4537 = vpop.f32.mrf.mxu0
        %v4538 = vadd.f32 0.0, %v4537
        %v4539 = vpop.f32.mrf.mxu0
        %v4540 = vpop.f32.mrf.mxu0
        %v4541 = vadd.f32 0.0, %v4540
        %v4542 = vpop.f32.mrf.mxu0
        %4543 = vmatprep.mubr.bf16.mxu0 0
        %4544 = vmatmul.mubr.bf16.gmra.mxu0 %v4465
        %v4545 = vpop.f32.mrf.mxu0
        %v4546 = vadd.f32 0.0, %v4545
        %v4547 = vpop.f32.mrf.mxu0
        %v4548 = vpop.f32.mrf.mxu0
        %v4549 = vadd.f32 0.0, %v4548
        %v4550 = vpop.f32.mrf.mxu0
        %4551 = vmatprep.mubr.bf16.mxu0 0
        %4552 = vmatmul.mubr.bf16.gmra.mxu0 %v4468
        %v4553 = vpop.f32.mrf.mxu0
        %v4554 = vadd.f32 0.0, %v4553
        %v4555 = vpop.f32.mrf.mxu0
        %v4556 = vpop.f32.mrf.mxu0
        %v4557 = vadd.f32 0.0, %v4556
        %v4558 = vpop.f32.mrf.mxu0
        %4559 = vmatprep.mubr.bf16.mxu0 0
        %4560 = vmatmul.mubr.bf16.gmra.mxu0 %v4471
        %v4561 = vpop.f32.mrf.mxu0
        %v4562 = vadd.f32 0.0, %v4561
        %v4563 = vpop.f32.mrf.mxu0
        %v4564 = vpop.f32.mrf.mxu0
        %v4565 = vadd.f32 0.0, %v4564
        %v4566 = vpop.f32.mrf.mxu0
        %4567 = vmatprep.mubr.bf16.mxu0 0
        %4568 = vmatmul.mubr.bf16.gmra.mxu0 %v4474
        %v4569 = vpop.f32.mrf.mxu0
        %v4570 = vadd.f32 0.0, %v4569
        %v4571 = vpop.f32.mrf.mxu0
        %v4572 = vpop.f32.mrf.mxu0
        %v4573 = vadd.f32 0.0, %v4572
        %v4574 = vpop.f32.mrf.mxu0
        %4575 = vmatprep.mubr.bf16.mxu0 0
        %4576 = vmatmul.mubr.bf16.gmra.mxu0 %v4477
        %v4577 = vpop.f32.mrf.mxu0
        %v4578 = vadd.f32 0.0, %v4577
        %v4579 = vpop.f32.mrf.mxu0
        %v4580 = vpop.f32.mrf.mxu0
        %v4581 = vadd.f32 0.0, %v4580
        %v4582 = vpop.f32.mrf.mxu0
        %4583 = vmatprep.mubr.bf16.mxu0 0
        %4584 = vmatmul.mubr.bf16.gmra.mxu0 %v4480
        %v4585 = vpop.f32.mrf.mxu0
        %v4586 = vadd.f32 0.0, %v4585
        %v4587 = vpop.f32.mrf.mxu0
        %v4588 = vpop.f32.mrf.mxu0
        %v4589 = vadd.f32 0.0, %v4588
        %v4590 = vpop.f32.mrf.mxu0
        %4591 = vmatprep.mubr.bf16.mxu0 0
        %4592 = vmatmul.mubr.bf16.gmra.mxu0 %v4483
        %v4593 = vpop.f32.mrf.mxu0
        %v4594 = vadd.f32 0.0, %v4593
        %v4595 = vpop.f32.mrf.mxu0
        %v4596 = vpop.f32.mrf.mxu0
        %v4597 = vadd.f32 0.0, %v4596
        %v4598 = vpop.f32.mrf.mxu0
        %4599 = vmatprep.mubr.bf16.mxu0 0
        %4600 = vmatmul.mubr.bf16.gmra.mxu0 %v4486
        %v4601 = vpop.f32.mrf.mxu0
        %v4602 = vadd.f32 0.0, %v4601
        %v4603 = vpop.f32.mrf.mxu0
        %v4604 = vpop.f32.mrf.mxu0
        %v4605 = vadd.f32 0.0, %v4604
        %v4606 = vpop.f32.mrf.mxu0
        %4607 = vmatprep.mubr.bf16.mxu0 0
        %4608 = vmatmul.mubr.bf16.gmra.mxu0 %v4489
        %v4609 = vpop.f32.mrf.mxu0
        %v4610 = vadd.f32 0.0, %v4609
        %v4611 = vpop.f32.mrf.mxu0
        %v4612 = vpop.f32.mrf.mxu0
        %v4613 = vadd.f32 0.0, %v4612
        %v4614 = vpop.f32.mrf.mxu0
        %4615 = vmatprep.mubr.bf16.mxu0 0
        %4616 = vmatmul.mubr.bf16.gmra.mxu0 %v4492
        %v4617 = vpop.f32.mrf.mxu0
        %v4618 = vadd.f32 0.0, %v4617
        %v4619 = vpop.f32.mrf.mxu0
        %v4620 = vpop.f32.mrf.mxu0
        %v4621 = vadd.f32 0.0, %v4620
        %v4622 = vpop.f32.mrf.mxu0
        %4623 = vmatprep.mubr.bf16.mxu0 0
        %4624 = vmatmul.mubr.bf16.gmra.mxu0 %v4495
        %v4625 = vpop.f32.mrf.mxu0
        %v4626 = vadd.f32 0.0, %v4625
        %v4627 = vpop.f32.mrf.mxu0
        %v4628 = vpop.f32.mrf.mxu0
        %v4629 = vadd.f32 0.0, %v4628
        %v4630 = vpop.f32.mrf.mxu0
        %4631 = vmatprep.mubr.bf16.mxu0 0
        %4632 = vmatmul.mubr.bf16.gmra.mxu0 %v4498
        %v4633 = vpop.f32.mrf.mxu0
        %v4634 = vadd.f32 0.0, %v4633
        %v4635 = vpop.f32.mrf.mxu0
        %v4636 = vpop.f32.mrf.mxu0
        %v4637 = vadd.f32 0.0, %v4636
        %v4638 = vpop.f32.mrf.mxu0
        %4639 = vmatprep.mubr.bf16.mxu0 0
        %4640 = vmatmul.mubr.bf16.gmra.mxu0 %v4501
        %v4641 = vpop.f32.mrf.mxu0
        %v4642 = vadd.f32 0.0, %v4641
        %v4643 = vpop.f32.mrf.mxu0
        %v4644 = vpop.f32.mrf.mxu0
        %v4645 = vadd.f32 0.0, %v4644
        %v4646 = vpop.f32.mrf.mxu0
        %4647 = vdwg.mxu0
        %v4676 = vunpack.c.l.b16 %v4299
        %v4677 = vunpack.c.l.b16 %v4300
        %v4678 = vunpack.c.l.b16 %v4301
        %v4679 = vunpack.c.l.b16 %v4302
        %v4680 = vunpack.c.l.b16 %v4303
        %v4681 = vunpack.c.l.b16 %v4304
        %v4682 = vunpack.c.l.b16 %v4305
        %v4683 = vunpack.c.l.b16 %v4306
        %v4684 = vunpack.c.l.b16 %v4307
        %v4685 = vunpack.c.l.b16 %v4308
        %v4686 = vunpack.c.l.b16 %v4309
        %v4687 = vunpack.c.l.b16 %v4310
        %v4688 = vunpack.c.l.b16 %v4311
        %v4689 = vunpack.c.l.b16 %v4312
        %v4690 = vunpack.c.l.b16 %v4313
        %v4691 = vunpack.c.l.b16 %v4314
        %v4692 = vunpack.c.l.b16 %v4315
        %v4693 = vunpack.c.l.b16 %v4316
        %v4694 = vunpack.c.l.b16 %v4317
        %v4695 = vunpack.c.l.b16 %v4318
        %v4696 = vunpack.c.l.b16 %v4319
        %v4697 = vunpack.c.l.b16 %v4320
        %v4698 = vunpack.c.l.b16 %v4321
        %v4699 = vunpack.c.l.b16 %v4322
        %v4700 = vunpack.c.l.b16 %v4323
        %v4701 = vunpack.c.l.b16 %v4324
        %v4702 = vunpack.c.l.b16 %v4325
        %v4703 = vunpack.c.l.b16 %v4326
        %v4704 = vpack.c.b16 %v4677, %v4676
        %v4705 = vpack.c.b16 %v4679, %v4678
        %v4706 = vpack.c.b16 %v4681, %v4680
        %v4707 = vpack.c.b16 %v4683, %v4682
        %v4708 = vpack.c.b16 %v4685, %v4684
        %v4709 = vpack.c.b16 %v4687, %v4686
        %v4710 = vpack.c.b16 %v4689, %v4688
        %v4711 = vpack.c.b16 %v4691, %v4690
        %v4712 = vpack.c.b16 %v4693, %v4692
        %v4713 = vpack.c.b16 %v4695, %v4694
        %v4714 = vpack.c.b16 %v4697, %v4696
        %v4715 = vpack.c.b16 %v4699, %v4698
        %v4716 = vpack.c.b16 %v4701, %v4700
        %v4717 = vpack.c.b16 %v4703, %v4702
        %v4724 = vunpack.c.l.b16 %v4327
        %v4725 = vunpack.c.l.b16 %v4328
        %v4726 = vunpack.c.l.b16 %v4329
        %v4727 = vunpack.c.l.b16 %v4330
        %v4728 = vunpack.c.l.b16 %v4331
        %v4729 = vunpack.c.l.b16 %v4332
        %v4730 = vpack.c.b16 %v4725, %v4724
        %v4731 = vpack.c.b16 %v4727, %v4726
        %v4732 = vpack.c.b16 %v4729, %v4728
        %v4737 = vsel %vm4460, %v4704, 0
        %v4740 = vsel %vm4460, %v4705, 0
        %v4743 = vsel %vm4460, %v4706, 0
        %v4746 = vsel %vm4460, %v4707, 0
        %v4749 = vsel %vm4460, %v4708, 0
        %v4752 = vsel %vm4460, %v4709, 0
        %v4755 = vsel %vm4460, %v4710, 0
        %v4758 = vsel %vm4460, %v4711, 0
        %v4761 = vsel %vm4460, %v4712, 0
        %v4764 = vsel %vm4460, %v4713, 0
        %v4767 = vsel %vm4460, %v4714, 0
        %v4770 = vsel %vm4460, %v4715, 0
        %v4773 = vsel %vm4460, %v4716, 0
        %v4776 = vsel %vm4460, %v4717, 0
        %4778 = vmatprep.subr.bf16.mxu0 0
        %4779 = vmatpush1.bf16.msra.mxu0 0
        %4780 = vmatprep.subr.bf16.mxu0 0
        %4781 = vmatpush1.bf16.msra.mxu0 0
        %4782 = vmatprep.subr.bf16.mxu0 0
        %4783 = vmatpush1.bf16.msra.mxu0 0
        %4784 = vmatprep.subr.bf16.mxu0 0
        %4785 = vmatpush1.bf16.msra.mxu0 0
        %4786 = vmatprep.subr.bf16.mxu0 0
        %4787 = vmatpush1.bf16.msra.mxu0 0
        %4788 = vmatprep.subr.bf16.mxu0 0
        %4789 = vmatpush1.bf16.msra.mxu0 %v4732
        %4790 = vmatprep.subr.bf16.mxu0 0
        %4791 = vmatpush1.bf16.msra.mxu0 %v4731
        %4792 = vmatprep.subr.bf16.mxu0 0
        %4793 = vmatpush1.bf16.msra.mxu0 %v4730
        %4794 = vmatprep.subr.bf16.mxu0 0
        %4795 = vmatpush2.bf16.msra.mxu0 0
        %4796 = vmatprep.subr.bf16.mxu0 0
        %4797 = vmatpush2.bf16.msra.mxu0 0
        %4798 = vmatprep.subr.bf16.mxu0 0
        %4799 = vmatpush2.bf16.msra.mxu0 0
        %4800 = vmatprep.subr.bf16.mxu0 0
        %4801 = vmatpush2.bf16.msra.mxu0 0
        %4802 = vmatprep.subr.bf16.mxu0 0
        %4803 = vmatpush2.bf16.msra.mxu0 0
        %4804 = vmatprep.subr.bf16.mxu0 0
        %4805 = vmatpush2.bf16.msra.mxu0 0
        %4806 = vmatprep.subr.bf16.mxu0 0
        %4807 = vmatpush2.bf16.msra.mxu0 0
        %4808 = vmatprep.subr.bf16.mxu0 0
        %4809 = vmatpush2.bf16.msra.mxu0 0
        %4810 = vmatprep.mubr.bf16.mxu0 0
        %4811 = vmatmul.mubr.bf16.gmra.mxu0 %v4737
        %v4812 = vpop.f32.mrf.mxu0
        %v4813 = vadd.f32 %v4538, %v4812
        %v4814 = vpop.f32.mrf.mxu0
        %v4815 = vpop.f32.mrf.mxu0
        %v4816 = vadd.f32 %v4541, %v4815
        %v4817 = vpop.f32.mrf.mxu0
        %4818 = vmatprep.mubr.bf16.mxu0 0
        %4819 = vmatmul.mubr.bf16.gmra.mxu0 %v4740
        %v4820 = vpop.f32.mrf.mxu0
        %v4821 = vadd.f32 %v4546, %v4820
        %v4822 = vpop.f32.mrf.mxu0
        %v4823 = vpop.f32.mrf.mxu0
        %v4824 = vadd.f32 %v4549, %v4823
        %v4825 = vpop.f32.mrf.mxu0
        %4826 = vmatprep.mubr.bf16.mxu0 0
        %4827 = vmatmul.mubr.bf16.gmra.mxu0 %v4743
        %v4828 = vpop.f32.mrf.mxu0
        %v4829 = vadd.f32 %v4554, %v4828
        %v4830 = vpop.f32.mrf.mxu0
        %v4831 = vpop.f32.mrf.mxu0
        %v4832 = vadd.f32 %v4557, %v4831
        %v4833 = vpop.f32.mrf.mxu0
        %4834 = vmatprep.mubr.bf16.mxu0 0
        %4835 = vmatmul.mubr.bf16.gmra.mxu0 %v4746
        %v4836 = vpop.f32.mrf.mxu0
        %v4837 = vadd.f32 %v4562, %v4836
        %v4838 = vpop.f32.mrf.mxu0
        %v4839 = vpop.f32.mrf.mxu0
        %v4840 = vadd.f32 %v4565, %v4839
        %v4841 = vpop.f32.mrf.mxu0
        %4842 = vmatprep.mubr.bf16.mxu0 0
        %4843 = vmatmul.mubr.bf16.gmra.mxu0 %v4749
        %v4844 = vpop.f32.mrf.mxu0
        %v4845 = vadd.f32 %v4570, %v4844
        %v4846 = vpop.f32.mrf.mxu0
        %v4847 = vpop.f32.mrf.mxu0
        %v4848 = vadd.f32 %v4573, %v4847
        %v4849 = vpop.f32.mrf.mxu0
        %4850 = vmatprep.mubr.bf16.mxu0 0
        %4851 = vmatmul.mubr.bf16.gmra.mxu0 %v4752
        %v4852 = vpop.f32.mrf.mxu0
        %v4853 = vadd.f32 %v4578, %v4852
        %v4854 = vpop.f32.mrf.mxu0
        %v4855 = vpop.f32.mrf.mxu0
        %v4856 = vadd.f32 %v4581, %v4855
        %v4857 = vpop.f32.mrf.mxu0
        %4858 = vmatprep.mubr.bf16.mxu0 0
        %4859 = vmatmul.mubr.bf16.gmra.mxu0 %v4755
        %v4860 = vpop.f32.mrf.mxu0
        %v4861 = vadd.f32 %v4586, %v4860
        %v4862 = vpop.f32.mrf.mxu0
        %v4863 = vpop.f32.mrf.mxu0
        %v4864 = vadd.f32 %v4589, %v4863
        %v4865 = vpop.f32.mrf.mxu0
        %4866 = vmatprep.mubr.bf16.mxu0 0
        %4867 = vmatmul.mubr.bf16.gmra.mxu0 %v4758
        %v4868 = vpop.f32.mrf.mxu0
        %v4869 = vadd.f32 %v4594, %v4868
        %v4870 = vpop.f32.mrf.mxu0
        %v4871 = vpop.f32.mrf.mxu0
        %v4872 = vadd.f32 %v4597, %v4871
        %v4873 = vpop.f32.mrf.mxu0
        %4874 = vmatprep.mubr.bf16.mxu0 0
        %4875 = vmatmul.mubr.bf16.gmra.mxu0 %v4761
        %v4876 = vpop.f32.mrf.mxu0
        %v4877 = vadd.f32 %v4602, %v4876
        %v4878 = vpop.f32.mrf.mxu0
        %v4879 = vpop.f32.mrf.mxu0
        %v4880 = vadd.f32 %v4605, %v4879
        %v4881 = vpop.f32.mrf.mxu0
        %4882 = vmatprep.mubr.bf16.mxu0 0
        %4883 = vmatmul.mubr.bf16.gmra.mxu0 %v4764
        %v4884 = vpop.f32.mrf.mxu0
        %v4885 = vadd.f32 %v4610, %v4884
        %v4886 = vpop.f32.mrf.mxu0
        %v4887 = vpop.f32.mrf.mxu0
        %v4888 = vadd.f32 %v4613, %v4887
        %v4889 = vpop.f32.mrf.mxu0
        %4890 = vmatprep.mubr.bf16.mxu0 0
        %4891 = vmatmul.mubr.bf16.gmra.mxu0 %v4767
        %v4892 = vpop.f32.mrf.mxu0
        %v4893 = vadd.f32 %v4618, %v4892
        %v4894 = vpop.f32.mrf.mxu0
        %v4895 = vpop.f32.mrf.mxu0
        %v4896 = vadd.f32 %v4621, %v4895
        %v4897 = vpop.f32.mrf.mxu0
        %4898 = vmatprep.mubr.bf16.mxu0 0
        %4899 = vmatmul.mubr.bf16.gmra.mxu0 %v4770
        %v4900 = vpop.f32.mrf.mxu0
        %v4901 = vadd.f32 %v4626, %v4900
        %v4902 = vpop.f32.mrf.mxu0
        %v4903 = vpop.f32.mrf.mxu0
        %v4904 = vadd.f32 %v4629, %v4903
        %v4905 = vpop.f32.mrf.mxu0
        %4906 = vmatprep.mubr.bf16.mxu0 0
        %4907 = vmatmul.mubr.bf16.gmra.mxu0 %v4773
        %v4908 = vpop.f32.mrf.mxu0
        %v4909 = vadd.f32 %v4634, %v4908
        %v4910 = vpop.f32.mrf.mxu0
        %v4911 = vpop.f32.mrf.mxu0
        %v4912 = vadd.f32 %v4637, %v4911
        %v4913 = vpop.f32.mrf.mxu0
        %4914 = vmatprep.mubr.bf16.mxu0 0
        %4915 = vmatmul.mubr.bf16.gmra.mxu0 %v4776
        %v4916 = vpop.f32.mrf.mxu0
        %v4917 = vadd.f32 %v4642, %v4916
        %v4918 = vpop.f32.mrf.mxu0
        %v4919 = vpop.f32.mrf.mxu0
        %v4920 = vadd.f32 %v4645, %v4919
        %v4921 = vpop.f32.mrf.mxu0
        %4922 = vdwg.mxu0
        %s4923 = sadd.s32 %s4295, 2
        %s4924 = smul.u32 %s4923, 2
        %s4925 = smul.addr %s4924, 4
        %s4926 = scalar_lea.vmem [#allocation2], %s4925
        %v4927 = vld [vmem:[%s4926] sm:$0xf]
        %v4928 = vld [vmem:[%s4926 + $0x4] sm:$0xf]
        %v4929 = vld [vmem:[%s4926 + $0x8] sm:$0xf]
        %v4930 = vld [vmem:[%s4926 + $0xc] sm:$0xf]
        %v4931 = vld [vmem:[%s4926 + $0x10] sm:$0xf]
        %v4932 = vld [vmem:[%s4926 + $0x14] sm:$0xf]
        %v4933 = vld [vmem:[%s4926 + $0x18] sm:$0xf]
        %v4934 = vld [vmem:[%s4926 + $0x1c] sm:$0xf]
        %v4935 = vld [vmem:[%s4926 + $0x20] sm:$0xf]
        %v4936 = vld [vmem:[%s4926 + $0x24] sm:$0xf]
        %v4937 = vld [vmem:[%s4926 + $0x28] sm:$0xf]
        %v4938 = vld [vmem:[%s4926 + $0x2c] sm:$0xf]
        %v4939 = vld [vmem:[%s4926 + $0x30] sm:$0xf]
        %v4940 = vld [vmem:[%s4926 + $0x34] sm:$0xf]
        %v4941 = vld [vmem:[%s4926 + $0x38] sm:$0xf]
        %v4942 = vld [vmem:[%s4926 + $0x3c] sm:$0xf]
        %v4943 = vld [vmem:[%s4926 + $0x40] sm:$0xf]
        %v4944 = vld [vmem:[%s4926 + $0x44] sm:$0xf]
        %v4945 = vld [vmem:[%s4926 + $0x48] sm:$0xf]
        %v4946 = vld [vmem:[%s4926 + $0x4c] sm:$0xf]
        %v4947 = vld [vmem:[%s4926 + $0x50] sm:$0xf]
        %v4948 = vld [vmem:[%s4926 + $0x54] sm:$0xf]
        %v4949 = vld [vmem:[%s4926 + $0x58] sm:$0xf]
        %v4950 = vld [vmem:[%s4926 + $0x5c] sm:$0xf]
        %v4951 = vld [vmem:[%s4926 + $0x60] sm:$0xf]
        %v4952 = vld [vmem:[%s4926 + $0x64] sm:$0xf]
        %v4953 = vld [vmem:[%s4926 + $0x68] sm:$0xf]
        %v4954 = vld [vmem:[%s4926 + $0x6c] sm:$0xf]
        %s4955 = scalar_lea.vmem %s1, 48
        %v4956 = vld [vmem:[%s4955] sm:$0xf]
        %v4957 = vld [vmem:[%s4955 + $0x4] sm:$0xf]
        %v4958 = vld [vmem:[%s4955 + $0x8] sm:$0xf]
        %v4959 = vld [vmem:[%s4955 + $0xc] sm:$0xf]
        %v4960 = vld [vmem:[%s4955 + $0x10] sm:$0xf]
        %v4961 = vld [vmem:[%s4955 + $0x14] sm:$0xf]
        %v4990 = vunpack.c.l.b16 %v4927
        %v4991 = vunpack.c.l.b16 %v4928
        %v4992 = vunpack.c.l.b16 %v4929
        %v4993 = vunpack.c.l.b16 %v4930
        %v4994 = vunpack.c.l.b16 %v4931
        %v4995 = vunpack.c.l.b16 %v4932
        %v4996 = vunpack.c.l.b16 %v4933
        %v4997 = vunpack.c.l.b16 %v4934
        %v4998 = vunpack.c.l.b16 %v4935
        %v4999 = vunpack.c.l.b16 %v4936
        %v5000 = vunpack.c.l.b16 %v4937
        %v5001 = vunpack.c.l.b16 %v4938
        %v5002 = vunpack.c.l.b16 %v4939
        %v5003 = vunpack.c.l.b16 %v4940
        %v5004 = vunpack.c.l.b16 %v4941
        %v5005 = vunpack.c.l.b16 %v4942
        %v5006 = vunpack.c.l.b16 %v4943
        %v5007 = vunpack.c.l.b16 %v4944
        %v5008 = vunpack.c.l.b16 %v4945
        %v5009 = vunpack.c.l.b16 %v4946
        %v5010 = vunpack.c.l.b16 %v4947
        %v5011 = vunpack.c.l.b16 %v4948
        %v5012 = vunpack.c.l.b16 %v4949
        %v5013 = vunpack.c.l.b16 %v4950
        %v5014 = vunpack.c.l.b16 %v4951
        %v5015 = vunpack.c.l.b16 %v4952
        %v5016 = vunpack.c.l.b16 %v4953
        %v5017 = vunpack.c.l.b16 %v4954
        %v5018 = vpack.c.b16 %v4991, %v4990
        %v5019 = vpack.c.b16 %v4993, %v4992
        %v5020 = vpack.c.b16 %v4995, %v4994
        %v5021 = vpack.c.b16 %v4997, %v4996
        %v5022 = vpack.c.b16 %v4999, %v4998
        %v5023 = vpack.c.b16 %v5001, %v5000
        %v5024 = vpack.c.b16 %v5003, %v5002
        %v5025 = vpack.c.b16 %v5005, %v5004
        %v5026 = vpack.c.b16 %v5007, %v5006
        %v5027 = vpack.c.b16 %v5009, %v5008
        %v5028 = vpack.c.b16 %v5011, %v5010
        %v5029 = vpack.c.b16 %v5013, %v5012
        %v5030 = vpack.c.b16 %v5015, %v5014
        %v5031 = vpack.c.b16 %v5017, %v5016
        %v5038 = vunpack.c.l.b16 %v4956
        %v5039 = vunpack.c.l.b16 %v4957
        %v5040 = vunpack.c.l.b16 %v4958
        %v5041 = vunpack.c.l.b16 %v4959
        %v5042 = vunpack.c.l.b16 %v4960
        %v5043 = vunpack.c.l.b16 %v4961
        %v5044 = vpack.c.b16 %v5039, %v5038
        %v5045 = vpack.c.b16 %v5041, %v5040
        %v5046 = vpack.c.b16 %v5043, %v5042
        %v5051 = vsel %vm4460, %v5018, 0
        %v5054 = vsel %vm4460, %v5019, 0
        %v5057 = vsel %vm4460, %v5020, 0
        %v5060 = vsel %vm4460, %v5021, 0
        %v5063 = vsel %vm4460, %v5022, 0
        %v5066 = vsel %vm4460, %v5023, 0
        %v5069 = vsel %vm4460, %v5024, 0
        %v5072 = vsel %vm4460, %v5025, 0
        %v5075 = vsel %vm4460, %v5026, 0
        %v5078 = vsel %vm4460, %v5027, 0
        %v5081 = vsel %vm4460, %v5028, 0
        %v5084 = vsel %vm4460, %v5029, 0
        %v5087 = vsel %vm4460, %v5030, 0
        %v5090 = vsel %vm4460, %v5031, 0
        %5092 = vmatprep.subr.bf16.mxu0 0
        %5093 = vmatpush1.bf16.msra.mxu0 0
        %5094 = vmatprep.subr.bf16.mxu0 0
        %5095 = vmatpush1.bf16.msra.mxu0 0
        %5096 = vmatprep.subr.bf16.mxu0 0
        %5097 = vmatpush1.bf16.msra.mxu0 0
        %5098 = vmatprep.subr.bf16.mxu0 0
        %5099 = vmatpush1.bf16.msra.mxu0 0
        %5100 = vmatprep.subr.bf16.mxu0 0
        %5101 = vmatpush1.bf16.msra.mxu0 0
        %5102 = vmatprep.subr.bf16.mxu0 0
        %5103 = vmatpush1.bf16.msra.mxu0 %v5046
        %5104 = vmatprep.subr.bf16.mxu0 0
        %5105 = vmatpush1.bf16.msra.mxu0 %v5045
        %5106 = vmatprep.subr.bf16.mxu0 0
        %5107 = vmatpush1.bf16.msra.mxu0 %v5044
        %5108 = vmatprep.subr.bf16.mxu0 0
        %5109 = vmatpush2.bf16.msra.mxu0 0
        %5110 = vmatprep.subr.bf16.mxu0 0
        %5111 = vmatpush2.bf16.msra.mxu0 0
        %5112 = vmatprep.subr.bf16.mxu0 0
        %5113 = vmatpush2.bf16.msra.mxu0 0
        %5114 = vmatprep.subr.bf16.mxu0 0
        %5115 = vmatpush2.bf16.msra.mxu0 0
        %5116 = vmatprep.subr.bf16.mxu0 0
        %5117 = vmatpush2.bf16.msra.mxu0 0
        %5118 = vmatprep.subr.bf16.mxu0 0
        %5119 = vmatpush2.bf16.msra.mxu0 0
        %5120 = vmatprep.subr.bf16.mxu0 0
        %5121 = vmatpush2.bf16.msra.mxu0 0
        %5122 = vmatprep.subr.bf16.mxu0 0
        %5123 = vmatpush2.bf16.msra.mxu0 0
        %5124 = vmatprep.mubr.bf16.mxu0 0
        %5125 = vmatmul.mubr.bf16.gmra.mxu0 %v5051
        %v5126 = vpop.f32.mrf.mxu0
        %v5127 = vadd.f32 0.0, %v5126
        %v5128 = vpop.f32.mrf.mxu0
        %v5129 = vpop.f32.mrf.mxu0
        %v5130 = vadd.f32 0.0, %v5129
        %v5131 = vpop.f32.mrf.mxu0
        %5132 = vmatprep.mubr.bf16.mxu0 0
        %5133 = vmatmul.mubr.bf16.gmra.mxu0 %v5054
        %v5134 = vpop.f32.mrf.mxu0
        %v5135 = vadd.f32 0.0, %v5134
        %v5136 = vpop.f32.mrf.mxu0
        %v5137 = vpop.f32.mrf.mxu0
        %v5138 = vadd.f32 0.0, %v5137
        %v5139 = vpop.f32.mrf.mxu0
        %5140 = vmatprep.mubr.bf16.mxu0 0
        %5141 = vmatmul.mubr.bf16.gmra.mxu0 %v5057
        %v5142 = vpop.f32.mrf.mxu0
        %v5143 = vadd.f32 0.0, %v5142
        %v5144 = vpop.f32.mrf.mxu0
        %v5145 = vpop.f32.mrf.mxu0
        %v5146 = vadd.f32 0.0, %v5145
        %v5147 = vpop.f32.mrf.mxu0
        %5148 = vmatprep.mubr.bf16.mxu0 0
        %5149 = vmatmul.mubr.bf16.gmra.mxu0 %v5060
        %v5150 = vpop.f32.mrf.mxu0
        %v5151 = vadd.f32 0.0, %v5150
        %v5152 = vpop.f32.mrf.mxu0
        %v5153 = vpop.f32.mrf.mxu0
        %v5154 = vadd.f32 0.0, %v5153
        %v5155 = vpop.f32.mrf.mxu0
        %5156 = vmatprep.mubr.bf16.mxu0 0
        %5157 = vmatmul.mubr.bf16.gmra.mxu0 %v5063
        %v5158 = vpop.f32.mrf.mxu0
        %v5159 = vadd.f32 0.0, %v5158
        %v5160 = vpop.f32.mrf.mxu0
        %v5161 = vpop.f32.mrf.mxu0
        %v5162 = vadd.f32 0.0, %v5161
        %v5163 = vpop.f32.mrf.mxu0
        %5164 = vmatprep.mubr.bf16.mxu0 0
        %5165 = vmatmul.mubr.bf16.gmra.mxu0 %v5066
        %v5166 = vpop.f32.mrf.mxu0
        %v5167 = vadd.f32 0.0, %v5166
        %v5168 = vpop.f32.mrf.mxu0
        %v5169 = vpop.f32.mrf.mxu0
        %v5170 = vadd.f32 0.0, %v5169
        %v5171 = vpop.f32.mrf.mxu0
        %5172 = vmatprep.mubr.bf16.mxu0 0
        %5173 = vmatmul.mubr.bf16.gmra.mxu0 %v5069
        %v5174 = vpop.f32.mrf.mxu0
        %v5175 = vadd.f32 0.0, %v5174
        %v5176 = vpop.f32.mrf.mxu0
        %v5177 = vpop.f32.mrf.mxu0
        %v5178 = vadd.f32 0.0, %v5177
        %v5179 = vpop.f32.mrf.mxu0
        %5180 = vmatprep.mubr.bf16.mxu0 0
        %5181 = vmatmul.mubr.bf16.gmra.mxu0 %v5072
        %v5182 = vpop.f32.mrf.mxu0
        %v5183 = vadd.f32 0.0, %v5182
        %v5184 = vpop.f32.mrf.mxu0
        %v5185 = vpop.f32.mrf.mxu0
        %v5186 = vadd.f32 0.0, %v5185
        %v5187 = vpop.f32.mrf.mxu0
        %5188 = vmatprep.mubr.bf16.mxu0 0
        %5189 = vmatmul.mubr.bf16.gmra.mxu0 %v5075
        %v5190 = vpop.f32.mrf.mxu0
        %v5191 = vadd.f32 0.0, %v5190
        %v5192 = vpop.f32.mrf.mxu0
        %v5193 = vpop.f32.mrf.mxu0
        %v5194 = vadd.f32 0.0, %v5193
        %v5195 = vpop.f32.mrf.mxu0
        %5196 = vmatprep.mubr.bf16.mxu0 0
        %5197 = vmatmul.mubr.bf16.gmra.mxu0 %v5078
        %v5198 = vpop.f32.mrf.mxu0
        %v5199 = vadd.f32 0.0, %v5198
        %v5200 = vpop.f32.mrf.mxu0
        %v5201 = vpop.f32.mrf.mxu0
        %v5202 = vadd.f32 0.0, %v5201
        %v5203 = vpop.f32.mrf.mxu0
        %5204 = vmatprep.mubr.bf16.mxu0 0
        %5205 = vmatmul.mubr.bf16.gmra.mxu0 %v5081
        %v5206 = vpop.f32.mrf.mxu0
        %v5207 = vadd.f32 0.0, %v5206
        %v5208 = vpop.f32.mrf.mxu0
        %v5209 = vpop.f32.mrf.mxu0
        %v5210 = vadd.f32 0.0, %v5209
        %v5211 = vpop.f32.mrf.mxu0
        %5212 = vmatprep.mubr.bf16.mxu0 0
        %5213 = vmatmul.mubr.bf16.gmra.mxu0 %v5084
        %v5214 = vpop.f32.mrf.mxu0
        %v5215 = vadd.f32 0.0, %v5214
        %v5216 = vpop.f32.mrf.mxu0
        %v5217 = vpop.f32.mrf.mxu0
        %v5218 = vadd.f32 0.0, %v5217
        %v5219 = vpop.f32.mrf.mxu0
        %5220 = vmatprep.mubr.bf16.mxu0 0
        %5221 = vmatmul.mubr.bf16.gmra.mxu0 %v5087
        %v5222 = vpop.f32.mrf.mxu0
        %v5223 = vadd.f32 0.0, %v5222
        %v5224 = vpop.f32.mrf.mxu0
        %v5225 = vpop.f32.mrf.mxu0
        %v5226 = vadd.f32 0.0, %v5225
        %v5227 = vpop.f32.mrf.mxu0
        %5228 = vmatprep.mubr.bf16.mxu0 0
        %5229 = vmatmul.mubr.bf16.gmra.mxu0 %v5090
        %v5230 = vpop.f32.mrf.mxu0
        %v5231 = vadd.f32 0.0, %v5230
        %v5232 = vpop.f32.mrf.mxu0
        %v5233 = vpop.f32.mrf.mxu0
        %v5234 = vadd.f32 0.0, %v5233
        %v5235 = vpop.f32.mrf.mxu0
        %5236 = vdwg.mxu0
        %v5237 = vadd.f32 %v4813, %v5127
        %v5238 = vadd.f32 %v4816, %v5130
        %v5239 = vadd.f32 %v4821, %v5135
        %v5240 = vadd.f32 %v4824, %v5138
        %v5241 = vadd.f32 %v4829, %v5143
        %v5242 = vadd.f32 %v4832, %v5146
        %v5243 = vadd.f32 %v4837, %v5151
        %v5244 = vadd.f32 %v4840, %v5154
        %v5245 = vadd.f32 %v4845, %v5159
        %v5246 = vadd.f32 %v4848, %v5162
        %v5247 = vadd.f32 %v4853, %v5167
        %v5248 = vadd.f32 %v4856, %v5170
        %v5249 = vadd.f32 %v4861, %v5175
        %v5250 = vadd.f32 %v4864, %v5178
        %v5251 = vadd.f32 %v4869, %v5183
        %v5252 = vadd.f32 %v4872, %v5186
        %v5253 = vadd.f32 %v4877, %v5191
        %v5254 = vadd.f32 %v4880, %v5194
        %v5255 = vadd.f32 %v4885, %v5199
        %v5256 = vadd.f32 %v4888, %v5202
        %v5257 = vadd.f32 %v4893, %v5207
        %v5258 = vadd.f32 %v4896, %v5210
        %v5259 = vadd.f32 %v4901, %v5215
        %v5260 = vadd.f32 %v4904, %v5218
        %v5261 = vadd.f32 %v4909, %v5223
        %v5262 = vadd.f32 %v4912, %v5226
        %v5263 = vadd.f32 %v4917, %v5231
        %v5264 = vadd.f32 %v4920, %v5234
        %v5266 = vlaneseq
        %v5267 = vshrl.u32 %v5266, 7
        %v5268 = vsub.s32 0, %v5267
        %v5269 = vrot.slane %v4286, %v5268
        %v5271 = vadd.f32 %v5237, %v5269
        %v5272 = vadd.f32 %v5238, %v5269
        %v5273 = vadd.f32 %v5239, %v5269
        %v5274 = vadd.f32 %v5240, %v5269
        %v5275 = vadd.f32 %v5241, %v5269
        %v5276 = vadd.f32 %v5242, %v5269
        %v5277 = vadd.f32 %v5243, %v5269
        %v5278 = vadd.f32 %v5244, %v5269
        %v5279 = vadd.f32 %v5245, %v5269
        %v5280 = vadd.f32 %v5246, %v5269
        %v5281 = vadd.f32 %v5247, %v5269
        %v5282 = vadd.f32 %v5248, %v5269
        %v5283 = vadd.f32 %v5249, %v5269
        %v5284 = vadd.f32 %v5250, %v5269
        %v5285 = vadd.f32 %v5251, %v5269
        %v5286 = vadd.f32 %v5252, %v5269
        %v5287 = vadd.f32 %v5253, %v5269
        %v5288 = vadd.f32 %v5254, %v5269
        %v5289 = vadd.f32 %v5255, %v5269
        %v5290 = vadd.f32 %v5256, %v5269
        %v5291 = vadd.f32 %v5257, %v5269
        %v5292 = vadd.f32 %v5258, %v5269
        %v5293 = vadd.f32 %v5259, %v5269
        %v5294 = vadd.f32 %v5260, %v5269
        %v5295 = vadd.f32 %v5261, %v5269
        %v5296 = vadd.f32 %v5262, %v5269
        %v5297 = vadd.f32 %v5263, %v5269
        %v5298 = vadd.f32 %v5264, %v5269
        %v5299 = vpack.c.bf16 %v5272, %v5271
        %v5300 = vpack.c.bf16 %v5274, %v5273
        %v5301 = vpack.c.bf16 %v5276, %v5275
        %v5302 = vpack.c.bf16 %v5278, %v5277
        %v5303 = vpack.c.bf16 %v5280, %v5279
        %v5304 = vpack.c.bf16 %v5282, %v5281
        %v5305 = vpack.c.bf16 %v5284, %v5283
        %v5306 = vpack.c.bf16 %v5286, %v5285
        %v5307 = vpack.c.bf16 %v5288, %v5287
        %v5308 = vpack.c.bf16 %v5290, %v5289
        %v5309 = vpack.c.bf16 %v5292, %v5291
        %v5310 = vpack.c.bf16 %v5294, %v5293
        %v5311 = vpack.c.bf16 %v5296, %v5295
        %v5312 = vpack.c.bf16 %v5298, %v5297
        %v5327 = vunpack.c.l.b16 %v5299
        %v5328 = vunpack.c.h.b16 %v5299
        %v5329 = vunpack.c.l.b16 %v5300
        %v5330 = vunpack.c.h.b16 %v5300
        %v5331 = vunpack.c.l.b16 %v5301
        %v5332 = vunpack.c.h.b16 %v5301
        %v5333 = vunpack.c.l.b16 %v5302
        %v5334 = vunpack.c.h.b16 %v5302
        %v5335 = vunpack.c.l.b16 %v5303
        %v5336 = vunpack.c.h.b16 %v5303
        %v5337 = vunpack.c.l.b16 %v5304
        %v5338 = vunpack.c.h.b16 %v5304
        %v5339 = vunpack.c.l.b16 %v5305
        %v5340 = vunpack.c.h.b16 %v5305
        %v5341 = vunpack.c.l.b16 %v5306
        %v5342 = vunpack.c.h.b16 %v5306
        %v5343 = vunpack.c.l.b16 %v5307
        %v5344 = vunpack.c.h.b16 %v5307
        %v5345 = vunpack.c.l.b16 %v5308
        %v5346 = vunpack.c.h.b16 %v5308
        %v5347 = vunpack.c.l.b16 %v5309
        %v5348 = vunpack.c.h.b16 %v5309
        %v5349 = vunpack.c.l.b16 %v5310
        %v5350 = vunpack.c.h.b16 %v5310
        %v5351 = vunpack.c.l.b16 %v5311
        %v5352 = vunpack.c.h.b16 %v5311
        %v5353 = vunpack.c.l.b16 %v5312
        %v5354 = vunpack.c.h.b16 %v5312
        %v5355 = vpack.c.b16 %v5327, %v5327
        %v5356 = vpack.c.b16 %v5328, %v5328
        %v5357 = vpack.c.b16 %v5329, %v5329
        %v5358 = vpack.c.b16 %v5330, %v5330
        %v5359 = vpack.c.b16 %v5331, %v5331
        %v5360 = vpack.c.b16 %v5332, %v5332
        %v5361 = vpack.c.b16 %v5333, %v5333
        %v5362 = vpack.c.b16 %v5334, %v5334
        %v5363 = vpack.c.b16 %v5335, %v5335
        %v5364 = vpack.c.b16 %v5336, %v5336
        %v5365 = vpack.c.b16 %v5337, %v5337
        %v5366 = vpack.c.b16 %v5338, %v5338
        %v5367 = vpack.c.b16 %v5339, %v5339
        %v5368 = vpack.c.b16 %v5340, %v5340
        %v5369 = vpack.c.b16 %v5341, %v5341
        %v5370 = vpack.c.b16 %v5342, %v5342
        %v5371 = vpack.c.b16 %v5343, %v5343
        %v5372 = vpack.c.b16 %v5344, %v5344
        %v5373 = vpack.c.b16 %v5345, %v5345
        %v5374 = vpack.c.b16 %v5346, %v5346
        %v5375 = vpack.c.b16 %v5347, %v5347
        %v5376 = vpack.c.b16 %v5348, %v5348
        %v5377 = vpack.c.b16 %v5349, %v5349
        %v5378 = vpack.c.b16 %v5350, %v5350
        %v5379 = vpack.c.b16 %v5351, %v5351
        %v5380 = vpack.c.b16 %v5352, %v5352
        %v5381 = vpack.c.b16 %v5353, %v5353
        %v5382 = vpack.c.b16 %v5354, %v5354
        %s5411 = smul.addr %s4296, 4
        %s5412 = scalar_lea.vmem %s313, %s5411
        %vm5413 = vcmask 257024
        %5414 = vst.msk [vmem:[%s5412] sm:$0xf] %vm5413, %v5355
        %5415 = vst.msk [vmem:[%s5412 + $0x4] sm:$0xf] %vm5413, %v5356
        %5416 = vst.msk [vmem:[%s5412 + $0x8] sm:$0xf] %vm5413, %v5357
        %5417 = vst.msk [vmem:[%s5412 + $0xc] sm:$0xf] %vm5413, %v5358
        %5418 = vst.msk [vmem:[%s5412 + $0x10] sm:$0xf] %vm5413, %v5359
        %5419 = vst.msk [vmem:[%s5412 + $0x14] sm:$0xf] %vm5413, %v5360
        %5420 = vst.msk [vmem:[%s5412 + $0x18] sm:$0xf] %vm5413, %v5361
        %5421 = vst.msk [vmem:[%s5412 + $0x1c] sm:$0xf] %vm5413, %v5362
        %5422 = vst.msk [vmem:[%s5412 + $0x20] sm:$0xf] %vm5413, %v5363
        %5423 = vst.msk [vmem:[%s5412 + $0x24] sm:$0xf] %vm5413, %v5364
        %5424 = vst.msk [vmem:[%s5412 + $0x28] sm:$0xf] %vm5413, %v5365
        %5425 = vst.msk [vmem:[%s5412 + $0x2c] sm:$0xf] %vm5413, %v5366
        %5426 = vst.msk [vmem:[%s5412 + $0x30] sm:$0xf] %vm5413, %v5367
        %5427 = vst.msk [vmem:[%s5412 + $0x34] sm:$0xf] %vm5413, %v5368
        %5428 = vst.msk [vmem:[%s5412 + $0x38] sm:$0xf] %vm5413, %v5369
        %5429 = vst.msk [vmem:[%s5412 + $0x3c] sm:$0xf] %vm5413, %v5370
        %5430 = vst.msk [vmem:[%s5412 + $0x40] sm:$0xf] %vm5413, %v5371
        %5431 = vst.msk [vmem:[%s5412 + $0x44] sm:$0xf] %vm5413, %v5372
        %5432 = vst.msk [vmem:[%s5412 + $0x48] sm:$0xf] %vm5413, %v5373
        %5433 = vst.msk [vmem:[%s5412 + $0x4c] sm:$0xf] %vm5413, %v5374
        %5434 = vst.msk [vmem:[%s5412 + $0x50] sm:$0xf] %vm5413, %v5375
        %5435 = vst.msk [vmem:[%s5412 + $0x54] sm:$0xf] %vm5413, %v5376
        %5436 = vst.msk [vmem:[%s5412 + $0x58] sm:$0xf] %vm5413, %v5377
        %5437 = vst.msk [vmem:[%s5412 + $0x5c] sm:$0xf] %vm5413, %v5378
        %5438 = vst.msk [vmem:[%s5412 + $0x60] sm:$0xf] %vm5413, %v5379
        %5439 = vst.msk [vmem:[%s5412 + $0x64] sm:$0xf] %vm5413, %v5380
        %5440 = vst.msk [vmem:[%s5412 + $0x68] sm:$0xf] %vm5413, %v5381
        %5441 = vst.msk [vmem:[%s5412 + $0x6c] sm:$0xf] %vm5413, %v5382
        %vm5442 = vcmask 261120
        %v5443 = vsel %vm5442, %v5271, 0.0
        %v5444 = vsel %vm5442, %v5272, 0.0
        %v5445 = vadd.f32 %v5443, %v5444
        %v5446 = vsel %vm5442, %v5273, 0.0
        %v5447 = vadd.f32 %v5445, %v5446
        %v5448 = vsel %vm5442, %v5274, 0.0
        %v5449 = vadd.f32 %v5447, %v5448
        %v5450 = vsel %vm5442, %v5275, 0.0
        %v5451 = vadd.f32 %v5449, %v5450
        %v5452 = vsel %vm5442, %v5276, 0.0
        %v5453 = vadd.f32 %v5451, %v5452
        %v5454 = vsel %vm5442, %v5277, 0.0
        %v5455 = vadd.f32 %v5453, %v5454
        %v5456 = vsel %vm5442, %v5278, 0.0
        %v5457 = vadd.f32 %v5455, %v5456
        %v5458 = vsel %vm5442, %v5279, 0.0
        %v5459 = vadd.f32 %v5457, %v5458
        %v5460 = vsel %vm5442, %v5280, 0.0
        %v5461 = vadd.f32 %v5459, %v5460
        %v5462 = vsel %vm5442, %v5281, 0.0
        %v5463 = vadd.f32 %v5461, %v5462
        %v5464 = vsel %vm5442, %v5282, 0.0
        %v5465 = vadd.f32 %v5463, %v5464
        %v5466 = vsel %vm5442, %v5283, 0.0
        %v5467 = vadd.f32 %v5465, %v5466
        %v5468 = vsel %vm5442, %v5284, 0.0
        %v5469 = vadd.f32 %v5467, %v5468
        %v5470 = vsel %vm5442, %v5285, 0.0
        %v5471 = vadd.f32 %v5469, %v5470
        %v5472 = vsel %vm5442, %v5286, 0.0
        %v5473 = vadd.f32 %v5471, %v5472
        %v5474 = vsel %vm5442, %v5287, 0.0
        %v5475 = vadd.f32 %v5473, %v5474
        %v5476 = vsel %vm5442, %v5288, 0.0
        %v5477 = vadd.f32 %v5475, %v5476
        %v5478 = vsel %vm5442, %v5289, 0.0
        %v5479 = vadd.f32 %v5477, %v5478
        %v5480 = vsel %vm5442, %v5290, 0.0
        %v5481 = vadd.f32 %v5479, %v5480
        %v5482 = vsel %vm5442, %v5291, 0.0
        %v5483 = vadd.f32 %v5481, %v5482
        %v5484 = vsel %vm5442, %v5292, 0.0
        %v5485 = vadd.f32 %v5483, %v5484
        %v5486 = vsel %vm5442, %v5293, 0.0
        %v5487 = vadd.f32 %v5485, %v5486
        %v5488 = vsel %vm5442, %v5294, 0.0
        %v5489 = vadd.f32 %v5487, %v5488
        %v5490 = vsel %vm5442, %v5295, 0.0
        %v5491 = vadd.f32 %v5489, %v5490
        %v5492 = vsel %vm5442, %v5296, 0.0
        %v5493 = vadd.f32 %v5491, %v5492
        %v5494 = vsel %vm5442, %v5297, 0.0
        %v5495 = vadd.f32 %v5493, %v5494
        %v5496 = vsel %vm5442, %v5298, 0.0
        %v5497 = vadd.f32 %v5495, %v5496
        %v5498 = vrot.slane %v5497, 4
        %v5499 = vadd.f32 %v5497, %v5498
        %v5500 = vrot.slane %v5499, 2
        %v5501 = vadd.f32 %v5499, %v5500
        %v5502 = vrot.slane %v5501, 1
        %v5503 = vadd.f32 %v5501, %v5502
        %v5504 = vadd.f32 %v4293, %v5503
        %v5505 = vmul.f32 %v5271, %v5271
        %v5506 = vmul.f32 %v5272, %v5272
        %v5507 = vmul.f32 %v5273, %v5273
        %v5508 = vmul.f32 %v5274, %v5274
        %v5509 = vmul.f32 %v5275, %v5275
        %v5510 = vmul.f32 %v5276, %v5276
        %v5511 = vmul.f32 %v5277, %v5277
        %v5512 = vmul.f32 %v5278, %v5278
        %v5513 = vmul.f32 %v5279, %v5279
        %v5514 = vmul.f32 %v5280, %v5280
        %v5515 = vmul.f32 %v5281, %v5281
        %v5516 = vmul.f32 %v5282, %v5282
        %v5517 = vmul.f32 %v5283, %v5283
        %v5518 = vmul.f32 %v5284, %v5284
        %v5519 = vmul.f32 %v5285, %v5285
        %v5520 = vmul.f32 %v5286, %v5286
        %v5521 = vmul.f32 %v5287, %v5287
        %v5522 = vmul.f32 %v5288, %v5288
        %v5523 = vmul.f32 %v5289, %v5289
        %v5524 = vmul.f32 %v5290, %v5290
        %v5525 = vmul.f32 %v5291, %v5291
        %v5526 = vmul.f32 %v5292, %v5292
        %v5527 = vmul.f32 %v5293, %v5293
        %v5528 = vmul.f32 %v5294, %v5294
        %v5529 = vmul.f32 %v5295, %v5295
        %v5530 = vmul.f32 %v5296, %v5296
        %v5531 = vmul.f32 %v5297, %v5297
        %v5532 = vmul.f32 %v5298, %v5298
        %v5533 = vsel %vm5442, %v5505, 0.0
        %v5534 = vsel %vm5442, %v5506, 0.0
        %v5535 = vadd.f32 %v5533, %v5534
        %v5536 = vsel %vm5442, %v5507, 0.0
        %v5537 = vadd.f32 %v5535, %v5536
        %v5538 = vsel %vm5442, %v5508, 0.0
        %v5539 = vadd.f32 %v5537, %v5538
        %v5540 = vsel %vm5442, %v5509, 0.0
        %v5541 = vadd.f32 %v5539, %v5540
        %v5542 = vsel %vm5442, %v5510, 0.0
        %v5543 = vadd.f32 %v5541, %v5542
        %v5544 = vsel %vm5442, %v5511, 0.0
        %v5545 = vadd.f32 %v5543, %v5544
        %v5546 = vsel %vm5442, %v5512, 0.0
        %v5547 = vadd.f32 %v5545, %v5546
        %v5548 = vsel %vm5442, %v5513, 0.0
        %v5549 = vadd.f32 %v5547, %v5548
        %v5550 = vsel %vm5442, %v5514, 0.0
        %v5551 = vadd.f32 %v5549, %v5550
        %v5552 = vsel %vm5442, %v5515, 0.0
        %v5553 = vadd.f32 %v5551, %v5552
        %v5554 = vsel %vm5442, %v5516, 0.0
        %v5555 = vadd.f32 %v5553, %v5554
        %v5556 = vsel %vm5442, %v5517, 0.0
        %v5557 = vadd.f32 %v5555, %v5556
        %v5558 = vsel %vm5442, %v5518, 0.0
        %v5559 = vadd.f32 %v5557, %v5558
        %v5560 = vsel %vm5442, %v5519, 0.0
        %v5561 = vadd.f32 %v5559, %v5560
        %v5562 = vsel %vm5442, %v5520, 0.0
        %v5563 = vadd.f32 %v5561, %v5562
        %v5564 = vsel %vm5442, %v5521, 0.0
        %v5565 = vadd.f32 %v5563, %v5564
        %v5566 = vsel %vm5442, %v5522, 0.0
        %v5567 = vadd.f32 %v5565, %v5566
        %v5568 = vsel %vm5442, %v5523, 0.0
        %v5569 = vadd.f32 %v5567, %v5568
        %v5570 = vsel %vm5442, %v5524, 0.0
        %v5571 = vadd.f32 %v5569, %v5570
        %v5572 = vsel %vm5442, %v5525, 0.0
        %v5573 = vadd.f32 %v5571, %v5572
        %v5574 = vsel %vm5442, %v5526, 0.0
        %v5575 = vadd.f32 %v5573, %v5574
        %v5576 = vsel %vm5442, %v5527, 0.0
        %v5577 = vadd.f32 %v5575, %v5576
        %v5578 = vsel %vm5442, %v5528, 0.0
        %v5579 = vadd.f32 %v5577, %v5578
        %v5580 = vsel %vm5442, %v5529, 0.0
        %v5581 = vadd.f32 %v5579, %v5580
        %v5582 = vsel %vm5442, %v5530, 0.0
        %v5583 = vadd.f32 %v5581, %v5582
        %v5584 = vsel %vm5442, %v5531, 0.0
        %v5585 = vadd.f32 %v5583, %v5584
        %v5586 = vsel %vm5442, %v5532, 0.0
        %v5587 = vadd.f32 %v5585, %v5586
        %v5588 = vrot.slane %v5587, 4
        %v5589 = vadd.f32 %v5587, %v5588
        %v5590 = vrot.slane %v5589, 2
        %v5591 = vadd.f32 %v5589, %v5590
        %v5592 = vrot.slane %v5591, 1
        %v5593 = vadd.f32 %v5591, %v5592
        %v5594 = vadd.f32 %v4294, %v5593
      $region72: #{conv_bn.1} parent=39 // loop_footer
        %s4292 = sadd.s32 1, %s4288
      $region73: #{conv_bn.1} parent=39 // loop_footer_branch
        %4287 = sbr.rel target = $region69
      $region74: #{conv_bn.1} parent=39 // loop_exit
        _
      %v5595 = vld [vmem:[%s317] sm:$0x1]
      %v5596 = vadd.f32 %v5595, %v4293
      %vm5597 = vcmask 253952
      %5598 = vst.msk [vmem:[%s317] sm:$0x1] %vm5597, %v5596
      %v5599 = vld [vmem:[%s320] sm:$0x1]
      %v5600 = vadd.f32 %v5599, %v4294
      %5601 = vst.msk [vmem:[%s320] sm:$0x1] %vm5597, %v5600
      %s5602 = smul.u32 56, %s24
      %p5603 = scmp.lt.s32.totalorder %s23, 1
      %s5604 = scalar_select %p5603, %s23, 1
      %p5605 = scmp.lt.s32.totalorder %s5602, 111
      %s5606 = scalar_select %p5605, %s5602, 111
      %s5607 = smul.addr %s5606, 2
      %s5608 = smul.addr %s5604, 224
      %s5609 = sadd.s32 %s5607, %s5608
      %s5610 = smul.addr %s5609, 4
      %s5611 = scalar_lea.vmem %s5, %s5610
      %p5612 = scmp.lt.s32.totalorder %s23, 1
      %s5613 = scalar_select %p5612, %s23, 1
      %s5614 = scalar_lea.vmem %s6, %s5613
      %p5615 = scmp.lt.s32.totalorder %s23, 1
      %s5616 = scalar_select %p5615, %s23, 1
      %s5617 = scalar_lea.vmem %s7, %s5616
      // Predicated region
      $region75: #{conv_bn.1} parent=39 // pred_check
        %p5618 = pneg %p161
      $region76: #{conv_bn.1} parent=39 // pred_check_branch
        %5620 = sbr.rel (%p5618) target = $region78
      $region77: #{conv_bn.1} parent=39 // pred_region
        %s5621 = smul.u32 56, %s24
      $region78: #{conv_bn.1} parent=39 // pred_fallthru
        _
      // Predicated region
      $region79: #{conv_bn.1} parent=39 // pred_check
        %p5622 = pneg %p187
      $region80: #{conv_bn.1} parent=39 // pred_check_branch
        %5624 = sbr.rel (%p5622) target = $region82
      $region81: #{conv_bn.1} parent=39 // pred_region
        _
      $region82: #{conv_bn.1} parent=39 // pred_fallthru
        _
      // Predicated region
      $region83: #{conv_bn.1} parent=39 // pred_check
        %p5625 = pneg %p213
      $region84: #{conv_bn.1} parent=39 // pred_check_branch
        %5627 = sbr.rel (%p5625) target = $region86
      $region85: #{conv_bn.1} parent=39 // pred_region
        _
      $region86: #{conv_bn.1} parent=39 // pred_fallthru
        _
    $region40: #{conv_bn.1} parent=5 // pred_fallthru
      _
    %p5628 = scmp.le.s32.totalorder 2, %s14
    // Predicated region
    $region87: #{conv_bn.1} parent=5 // pred_check
      %p5629 = pneg %p5628
    $region88: #{conv_bn.1} parent=5 // pred_check_branch
      %5631 = sbr.rel (%p5629) target = $region90
    $region89: #{conv_bn.1} parent=5 // pred_region
      %s5632 = ssub.s32 %s14, 2
      // Predicated region
      $region91: #{conv_bn.1} parent=89 // pred_check
        %p5633 = pneg %p167
      $region92: #{conv_bn.1} parent=89 // pred_check_branch
        %5635 = sbr.rel (%p5633) target = $region94
      $region93: #{conv_bn.1} parent=89 // pred_region
        %s5636 = smul.u32 56, %s26
        %p5637 = scmp.lt.s32.totalorder %s25, 1
        %s5638 = scalar_select %p5637, %s25, 1
        %p5639 = scmp.lt.s32.totalorder %s5636, 111
        %s5640 = scalar_select %p5639, %s5636, 111
        %s5641 = smul.addr %s5640, 2
        %s5642 = smul.addr %s5638, 224
        %s5643 = sadd.s32 %s5641, %s5642
        %s5644 = smul.addr %s5643, 4
        %s5645 = scalar_lea.vmem %s5, %s5644
      $region94: #{conv_bn.1} parent=89 // pred_fallthru
        _
      // Predicated region
      $region95: #{conv_bn.1} parent=89 // pred_check
        %p5646 = pneg %p193
      $region96: #{conv_bn.1} parent=89 // pred_check_branch
        %5648 = sbr.rel (%p5646) target = $region98
      $region97: #{conv_bn.1} parent=89 // pred_region
        %p5649 = scmp.lt.s32.totalorder %s25, 1
        %s5650 = scalar_select %p5649, %s25, 1
        %s5651 = scalar_lea.vmem %s6, %s5650
      $region98: #{conv_bn.1} parent=89 // pred_fallthru
        _
      // Predicated region
      $region99: #{conv_bn.1} parent=89 // pred_check
        %p5652 = pneg %p219
      $region100: #{conv_bn.1} parent=89 // pred_check_branch
        %5654 = sbr.rel (%p5652) target = $region102
      $region101: #{conv_bn.1} parent=89 // pred_region
        %p5655 = scmp.lt.s32.totalorder %s25, 1
        %s5656 = scalar_select %p5655, %s25, 1
        %s5657 = scalar_lea.vmem %s7, %s5656
      $region102: #{conv_bn.1} parent=89 // pred_fallthru
        _
    $region90: #{conv_bn.1} parent=5 // pred_fallthru
      _
  $region6: #{conv_bn.1} parent=0 // loop_footer
    %s18 = sadd.s32 1, %s14
  $region7: #{conv_bn.1} parent=0 // loop_footer_branch
    %13 = sbr.rel target = $region3
  $region8: #{conv_bn.1} parent=0 // loop_exit
    _

</llo_original>
